<compile_context>
chip_gen: v5e
topology: v5e:2x2
jax: 0.10.0
libtpu: 0.0.40
codegen_flags: <defaults>
</compile_context>

<pallas_src>
import jax
import jax.numpy as jnp
from jax.experimental import pallas as pl
from jax.experimental.pallas import tpu as pltpu

D_MODEL = 32
HISTORY_LENGTH = 5
IN_FEATURES = 1 + HISTORY_LENGTH   # 6
H1, H2 = 16, 32
NUM_HEADS = 4
HEAD_DIM = H2 // NUM_HEADS         # 8


def _round_up(n, m):
    return ((n + m - 1) // m) * m


def _encoder_kernel(x_ref,
                    w1_ref, b1_ref,
                    w2_ref, b2_ref,
                    wqkv_ref, bqkv_ref,
                    wo_ref, bo_ref,
                    wout_ref, bout_ref,
                    out_ref):
    Bt, S, F = x_ref.shape
    M = Bt * S

    # --- dense layers on the whole (Bt*S, .) slab (big-M matmuls) ------------
    x2d = x_ref[...].reshape(M, F)                                  # (M, 6)

    h1 = jnp.dot(x2d, w1_ref[...], preferred_element_type=jnp.float32) + b1_ref[...]
    h1 = jnp.maximum(h1, 0.0)                                       # (M, 16)

    h2 = jnp.dot(h1, w2_ref[...], preferred_element_type=jnp.float32) + b2_ref[...]
    h2 = jnp.maximum(h2, 0.0)                                       # (M, 32)

    # --- multi-head attention ------------------------------------------------
    wqkv = wqkv_ref[...]                                            # (3, H, 32, 8)
    bqkv = bqkv_ref[...]                                            # (3, H, 1, 8)
    wo = wo_ref[...]                                                # (H, 8, 32)
    scale = 1.0 / (HEAD_DIM ** 0.5)
    inv_s = 1.0 / S

    attn2d = None                                                   # accumulates (M, 32)
    for h in range(NUM_HEADS):                                      # 4x, unrolled at trace time
        # per-head projections, still big-M matmuls; leading-axis weight indexing
        qh = jnp.dot(h2, wqkv[0, h], preferred_element_type=jnp.float32) + bqkv[0, h]
        kh = jnp.dot(h2, wqkv[1, h], preferred_element_type=jnp.float32) + bqkv[1, h]
        vh = jnp.dot(h2, wqkv[2, h], preferred_element_type=jnp.float32) + bqkv[2, h]
        qh = qh.reshape(Bt, S, HEAD_DIM)                            # layout-preserving split
        kh = kh.reshape(Bt, S, HEAD_DIM)
        vh = vh.reshape(Bt, S, HEAD_DIM)

        s = jnp.einsum('bqd,bkd->bqk', qh, kh,
                       preferred_element_type=jnp.float32) * scale  # (Bt, S, S)
        s = s - jnp.max(s, axis=-1, keepdims=True)
        p = jnp.exp(s)
        p = p * pl.reciprocal(jnp.sum(p, axis=-1, keepdims=True), approx=True)

        oh = jnp.einsum('bqk,bkd->bqd', p, vh,
                        preferred_element_type=jnp.float32)         # (Bt, S, 8)

        # concat-of-heads @ Wo^T == sum_h (oh @ Wo^T[head_rows, :])
        contrib = jnp.dot(oh.reshape(M, HEAD_DIM), wo[h],
                          preferred_element_type=jnp.float32)       # (M, 32)
        attn2d = contrib if attn2d is None else attn2d + contrib

    attn2d = attn2d + bo_ref[...]                                   # bias added once

    # --- mean-pool over sequence, final projection ---------------------------
    pooled = jnp.sum(attn2d.reshape(Bt, S, H2), axis=1) * inv_s     # (Bt, 32)
    out_ref[...] = (jnp.dot(pooled, wout_ref[...],
                            preferred_element_type=jnp.float32) + bout_ref[...])


def exploration_encoder_forward(x, params, *, block_b=512):
    """x: (B, S, 6) float32 -> (B, d_model) float32."""
    x = jnp.asarray(x, jnp.float32)
    B, S, F = x.shape
    d_model = params["wout_t"].shape[1]

    # Batch tile: multiple of 8 (sublane-dense output), capped so large B keeps a
    # >=2-step parallel grid (v7x megacore) while fitting comfortably in VMEM.
    Bt = min(_round_up(block_b, 8), _round_up(B, 8))
    B_pad = _round_up(B, Bt)
    if B_pad != B:
        x = jnp.pad(x, ((0, B_pad - B), (0, 0), (0, 0)))

    # Pack attention weights with a leading head axis (no lane slicing in-kernel).
    def per_head_w(w_t):   # (32_in, 32_out) -> (H, 32_in, 8)
        return w_t.reshape(H2, NUM_HEADS, HEAD_DIM).transpose(1, 0, 2)

    def per_head_b(b):     # (1, 32) -> (H, 1, 8)
        return b.reshape(1, NUM_HEADS, HEAD_DIM).transpose(1, 0, 2)

    wqkv = jnp.stack([per_head_w(params["wq_t"]),
                      per_head_w(params["wk_t"]),
                      per_head_w(params["wv_t"])])                  # (3, H, 32, 8)
    bqkv = jnp.stack([per_head_b(params["bq"]),
                      per_head_b(params["bk"]),
                      per_head_b(params["bv"])])                    # (3, H, 1, 8)
    wo_h = params["wo_t"].reshape(NUM_HEADS, HEAD_DIM, H2)          # (H, 8, 32)

    def w_spec(shape):
        return pl.BlockSpec(shape, lambda b, _n=len(shape): (0,) * _n)

    inputs = [
        (x,                 pl.BlockSpec((Bt, S, F), lambda b: (b, 0, 0))),
        (params["w1_t"],    w_spec((F, H1))),
        (params["b1"],      w_spec((1, H1))),
        (params["w2_t"],    w_spec((H1, H2))),
        (params["b2"],      w_spec((1, H2))),
        (wqkv,              w_spec((3, NUM_HEADS, H2, HEAD_DIM))),
        (bqkv,              w_spec((3, NUM_HEADS, 1, HEAD_DIM))),
        (wo_h,              w_spec((NUM_HEADS, HEAD_DIM, H2))),
        (params["bo"],      w_spec((1, H2))),
        (params["wout_t"],  w_spec((H2, d_model))),
        (params["bout"],    w_spec((1, d_model))),
    ]

    out = pl.pallas_call(
        _encoder_kernel,
        out_shape=jax.ShapeDtypeStruct((B_pad, d_model), jnp.float32),
        grid_spec=pltpu.PrefetchScalarGridSpec(
            num_scalar_prefetch=0,
            grid=(B_pad // Bt,),
            in_specs=[spec for _, spec in inputs],
            out_specs=pl.BlockSpec((Bt, d_model), lambda b: (b, 0)),
        ),
        compiler_params=pltpu.CompilerParams(
            dimension_semantics=("parallel",)),
    )(*[arr for arr, _ in inputs])
    return out[:B]


def init_params(key, d_model=D_MODEL):
    """Deterministic synthetic parameters (PyTorch shapes, stored transposed)."""
    ks = jax.random.split(key, 14)
    n = lambda k, shape: (0.1 * jax.random.normal(k, shape)).astype(jnp.float32)
    return {
        "w1_t":  n(ks[0], (IN_FEATURES, H1)),        # fc1.weight^T
        "b1":    n(ks[1], (1, H1)),
        "w2_t":  n(ks[2], (H1, H2)),                 # fc2.weight^T
        "b2":    n(ks[3], (1, H2)),
        "wq_t":  n(ks[4], (H2, H2)),                 # in_proj (q)^T
        "bq":    n(ks[5], (1, H2)),
        "wk_t":  n(ks[6], (H2, H2)),                 # in_proj (k)^T
        "bk":    n(ks[7], (1, H2)),
        "wv_t":  n(ks[8], (H2, H2)),                 # in_proj (v)^T
        "bv":    n(ks[9], (1, H2)),
        "wo_t":  n(ks[10], (H2, H2)),                # out_proj.weight^T
        "bo":    n(ks[11], (1, H2)),
        "wout_t": n(ks[12], (H2, d_model)),          # fc_out.weight^T
        "bout": n(ks[13], (1, d_model)),
    }


def reference_forward(x, p):
    """Pure-JAX reference mirroring PyTorch ExplorationEncoder.forward."""
    hi = jax.lax.Precision.HIGHEST
    h1 = jax.nn.relu(jnp.dot(x, p["w1_t"], precision=hi) + p["b1"])
    h2 = jax.nn.relu(jnp.dot(h1, p["w2_t"], precision=hi) + p["b2"])
    q = jnp.dot(h2, p["wq_t"], precision=hi) + p["bq"]
    k = jnp.dot(h2, p["wk_t"], precision=hi) + p["bk"]
    v = jnp.dot(h2, p["wv_t"], precision=hi) + p["bv"]
    B, S, _ = x.shape
    to_heads = lambda t: t.reshape(B, S, NUM_HEADS, HEAD_DIM).transpose(0, 2, 1, 3)
    qh, kh, vh = to_heads(q), to_heads(k), to_heads(v)
    s = jnp.einsum("bhqd,bhkd->bhqk", qh, kh, precision=hi) / (HEAD_DIM ** 0.5)
    pm = jax.nn.softmax(s, axis=-1)
    oh = jnp.einsum("bhqk,bhkd->bhqd", pm, vh, precision=hi)
    attn = oh.transpose(0, 2, 1, 3).reshape(B, S, H2)
    attn = jnp.dot(attn, p["wo_t"], precision=hi) + p["bo"]
    pooled = attn.mean(axis=1)
    return jnp.dot(pooled, p["wout_t"], precision=hi) + p["bout"]


if __name__ == "__main__":
    key = jax.random.PRNGKey(0)
    k_param, k_x = jax.random.split(key)

    B, S = 2, 8
    params = init_params(k_param, d_model=D_MODEL)
    x = jax.random.normal(k_x, (B, S, IN_FEATURES), dtype=jnp.float32)

    out = exploration_encoder_forward(x, params)
    out = jax.block_until_ready(out)

    ref = reference_forward(x, params)
    assert out.shape == (B, D_MODEL), out.shape
    assert jnp.allclose(out, ref, rtol=5e-2, atol=5e-2), \
        f"max abs diff {jnp.max(jnp.abs(out - ref))}"

    print("KERNEL_OK")
</pallas_src>

<mosaic_0001>
module attributes {stable_mosaic.version = 11 : i64} {
  func.func @_encoder_kernel(%arg0: i32, %arg1: memref<8x8x6xf32, #tpu.memory_space<vmem>>, %arg2: memref<6x16xf32, #tpu.memory_space<vmem>>, %arg3: memref<1x16xf32, #tpu.memory_space<vmem>>, %arg4: memref<16x32xf32, #tpu.memory_space<vmem>>, %arg5: memref<1x32xf32, #tpu.memory_space<vmem>>, %arg6: memref<3x4x32x8xf32, #tpu.memory_space<vmem>>, %arg7: memref<3x4x1x8xf32, #tpu.memory_space<vmem>>, %arg8: memref<4x8x32xf32, #tpu.memory_space<vmem>>, %arg9: memref<1x32xf32, #tpu.memory_space<vmem>>, %arg10: memref<32x32xf32, #tpu.memory_space<vmem>>, %arg11: memref<1x32xf32, #tpu.memory_space<vmem>>, %arg12: memref<8x32xf32, #tpu.memory_space<vmem>>) attributes {dimension_semantics = [#tpu.dimension_semantics<parallel>], iteration_bounds = array<i64: 1>, scalar_prefetch = 0 : i64, scratch_operands = 0 : i64, tpu.core_type = #tpu.core_type<tc>, window_params = [{transform_indices = @transform_0, window_bounds = array<i64: 8, 8, 6>}, {pipeline_mode = #tpu.pipeline_mode<synchronous>, transform_indices = @transform_1, window_bounds = array<i64: 6, 16>}, {pipeline_mode = #tpu.pipeline_mode<synchronous>, transform_indices = @transform_2, window_bounds = array<i64: 1, 16>}, {pipeline_mode = #tpu.pipeline_mode<synchronous>, transform_indices = @transform_3, window_bounds = array<i64: 16, 32>}, {pipeline_mode = #tpu.pipeline_mode<synchronous>, transform_indices = @transform_4, window_bounds = array<i64: 1, 32>}, {pipeline_mode = #tpu.pipeline_mode<synchronous>, transform_indices = @transform_5, window_bounds = array<i64: 3, 4, 32, 8>}, {pipeline_mode = #tpu.pipeline_mode<synchronous>, transform_indices = @transform_6, window_bounds = array<i64: 3, 4, 1, 8>}, {pipeline_mode = #tpu.pipeline_mode<synchronous>, transform_indices = @transform_7, window_bounds = array<i64: 4, 8, 32>}, {pipeline_mode = #tpu.pipeline_mode<synchronous>, transform_indices = @transform_8, window_bounds = array<i64: 1, 32>}, {pipeline_mode = #tpu.pipeline_mode<synchronous>, transform_indices = @transform_9, window_bounds = array<i64: 32, 32>}, {pipeline_mode = #tpu.pipeline_mode<synchronous>, transform_indices = @transform_10, window_bounds = array<i64: 1, 32>}, {transform_indices = @transform_11, window_bounds = array<i64: 8, 32>}]} {
    %c0 = arith.constant 0 : index
    %c0_0 = arith.constant 0 : index
    %c0_1 = arith.constant 0 : index
    %0 = vector.load %arg1[%c0, %c0_0, %c0_1] : memref<8x8x6xf32, #tpu.memory_space<vmem>>, vector<8x8x6xf32>
    %1 = vector.shape_cast %0 : vector<8x8x6xf32> to vector<64x6xf32>
    %c0_2 = arith.constant 0 : index
    %c0_3 = arith.constant 0 : index
    %2 = vector.load %arg2[%c0_2, %c0_3] : memref<6x16xf32, #tpu.memory_space<vmem>>, vector<6x16xf32>
    %cst = arith.constant dense<0.000000e+00> : vector<64x16xf32>
    %3 = tpu.matmul %1, %2, %cst {dimension_numbers = #tpu.dot_dimension_numbers<[1], [0], [0], [1], [0, 0, 1, 1], [], []>} : vector<64x6xf32>, vector<6x16xf32>, vector<64x16xf32> -> vector<64x16xf32>
    %c0_4 = arith.constant 0 : index
    %c0_5 = arith.constant 0 : index
    %4 = vector.load %arg3[%c0_4, %c0_5] : memref<1x16xf32, #tpu.memory_space<vmem>>, vector<1x16xf32>
    %5 = vector.broadcast %4 : vector<1x16xf32> to vector<64x16xf32>
    %6 = arith.addf %3, %5 : vector<64x16xf32>
    %cst_6 = arith.constant 0.000000e+00 : f32
    %7 = vector.broadcast %cst_6 : f32 to vector<64x16xf32>
    %8 = arith.maximumf %6, %7 : vector<64x16xf32>
    %c0_7 = arith.constant 0 : index
    %c0_8 = arith.constant 0 : index
    %9 = vector.load %arg4[%c0_7, %c0_8] : memref<16x32xf32, #tpu.memory_space<vmem>>, vector<16x32xf32>
    %cst_9 = arith.constant dense<0.000000e+00> : vector<64x32xf32>
    %10 = tpu.matmul %8, %9, %cst_9 {dimension_numbers = #tpu.dot_dimension_numbers<[1], [0], [0], [1], [0, 0, 1, 1], [], []>} : vector<64x16xf32>, vector<16x32xf32>, vector<64x32xf32> -> vector<64x32xf32>
    %c0_10 = arith.constant 0 : index
    %c0_11 = arith.constant 0 : index
    %11 = vector.load %arg5[%c0_10, %c0_11] : memref<1x32xf32, #tpu.memory_space<vmem>>, vector<1x32xf32>
    %12 = vector.broadcast %11 : vector<1x32xf32> to vector<64x32xf32>
    %13 = arith.addf %10, %12 : vector<64x32xf32>
    %cst_12 = arith.constant 0.000000e+00 : f32
    %14 = vector.broadcast %cst_12 : f32 to vector<64x32xf32>
    %15 = arith.maximumf %13, %14 : vector<64x32xf32>
    %c0_13 = arith.constant 0 : index
    %c0_14 = arith.constant 0 : index
    %c0_15 = arith.constant 0 : index
    %c0_16 = arith.constant 0 : index
    %16 = vector.load %arg6[%c0_13, %c0_14, %c0_15, %c0_16] : memref<3x4x32x8xf32, #tpu.memory_space<vmem>>, vector<3x4x32x8xf32>
    %c0_17 = arith.constant 0 : index
    %c0_18 = arith.constant 0 : index
    %c0_19 = arith.constant 0 : index
    %c0_20 = arith.constant 0 : index
    %17 = vector.load %arg7[%c0_17, %c0_18, %c0_19, %c0_20] : memref<3x4x1x8xf32, #tpu.memory_space<vmem>>, vector<3x4x1x8xf32>
    %c0_21 = arith.constant 0 : index
    %c0_22 = arith.constant 0 : index
    %c0_23 = arith.constant 0 : index
    %18 = vector.load %arg8[%c0_21, %c0_22, %c0_23] : memref<4x8x32xf32, #tpu.memory_space<vmem>>, vector<4x8x32xf32>
    %19 = vector.extract_strided_slice %16 {offsets = [0, 0, 0, 0], sizes = [1, 1, 32, 8], strides = [1, 1, 1, 1]} : vector<3x4x32x8xf32> to vector<1x1x32x8xf32>
    %20 = vector.shape_cast %19 : vector<1x1x32x8xf32> to vector<32x8xf32>
    %cst_24 = arith.constant dense<0.000000e+00> : vector<64x8xf32>
    %21 = tpu.matmul %15, %20, %cst_24 {dimension_numbers = #tpu.dot_dimension_numbers<[1], [0], [0], [1], [0, 0, 1, 1], [], []>} : vector<64x32xf32>, vector<32x8xf32>, vector<64x8xf32> -> vector<64x8xf32>
    %22 = vector.extract_strided_slice %17 {offsets = [0, 0, 0, 0], sizes = [1, 1, 1, 8], strides = [1, 1, 1, 1]} : vector<3x4x1x8xf32> to vector<1x1x1x8xf32>
    %23 = vector.shape_cast %22 : vector<1x1x1x8xf32> to vector<1x8xf32>
    %24 = vector.broadcast %23 : vector<1x8xf32> to vector<64x8xf32>
    %25 = arith.addf %21, %24 : vector<64x8xf32>
    %26 = vector.extract_strided_slice %16 {offsets = [1, 0, 0, 0], sizes = [1, 1, 32, 8], strides = [1, 1, 1, 1]} : vector<3x4x32x8xf32> to vector<1x1x32x8xf32>
    %27 = vector.shape_cast %26 : vector<1x1x32x8xf32> to vector<32x8xf32>
    %cst_25 = arith.constant dense<0.000000e+00> : vector<64x8xf32>
    %28 = tpu.matmul %15, %27, %cst_25 {dimension_numbers = #tpu.dot_dimension_numbers<[1], [0], [0], [1], [0, 0, 1, 1], [], []>} : vector<64x32xf32>, vector<32x8xf32>, vector<64x8xf32> -> vector<64x8xf32>
    %29 = vector.extract_strided_slice %17 {offsets = [1, 0, 0, 0], sizes = [1, 1, 1, 8], strides = [1, 1, 1, 1]} : vector<3x4x1x8xf32> to vector<1x1x1x8xf32>
    %30 = vector.shape_cast %29 : vector<1x1x1x8xf32> to vector<1x8xf32>
    %31 = vector.broadcast %30 : vector<1x8xf32> to vector<64x8xf32>
    %32 = arith.addf %28, %31 : vector<64x8xf32>
    %33 = vector.extract_strided_slice %16 {offsets = [2, 0, 0, 0], sizes = [1, 1, 32, 8], strides = [1, 1, 1, 1]} : vector<3x4x32x8xf32> to vector<1x1x32x8xf32>
    %34 = vector.shape_cast %33 : vector<1x1x32x8xf32> to vector<32x8xf32>
    %cst_26 = arith.constant dense<0.000000e+00> : vector<64x8xf32>
    %35 = tpu.matmul %15, %34, %cst_26 {dimension_numbers = #tpu.dot_dimension_numbers<[1], [0], [0], [1], [0, 0, 1, 1], [], []>} : vector<64x32xf32>, vector<32x8xf32>, vector<64x8xf32> -> vector<64x8xf32>
    %36 = vector.extract_strided_slice %17 {offsets = [2, 0, 0, 0], sizes = [1, 1, 1, 8], strides = [1, 1, 1, 1]} : vector<3x4x1x8xf32> to vector<1x1x1x8xf32>
    %37 = vector.shape_cast %36 : vector<1x1x1x8xf32> to vector<1x8xf32>
    %38 = vector.broadcast %37 : vector<1x8xf32> to vector<64x8xf32>
    %39 = arith.addf %35, %38 : vector<64x8xf32>
    %40 = vector.shape_cast %25 : vector<64x8xf32> to vector<8x8x8xf32>
    %41 = vector.shape_cast %32 : vector<64x8xf32> to vector<8x8x8xf32>
    %42 = vector.shape_cast %39 : vector<64x8xf32> to vector<8x8x8xf32>
    "tpu.trace_start"() <{level = 10 : i32, message = "bqd,bkd->bqk"}> : () -> ()
    %cst_27 = arith.constant dense<0.000000e+00> : vector<8x8x8xf32>
    %43 = tpu.matmul %40, %41, %cst_27 {dimension_numbers = #tpu.dot_dimension_numbers<[2], [2], [1], [1], [0, 0, 0, 1, 1, 1], [0], [0]>} : vector<8x8x8xf32>, vector<8x8x8xf32>, vector<8x8x8xf32> -> vector<8x8x8xf32>
    "tpu.trace_stop"() : () -> ()
    %cst_28 = arith.constant 0.353553385 : f32
    %44 = vector.broadcast %cst_28 : f32 to vector<8x8x8xf32>
    %45 = arith.mulf %43, %44 : vector<8x8x8xf32>
    %cst_29 = arith.constant dense<0xFF800000> : vector<8x8xf32>
    %46 = vector.multi_reduction <maximumf>, %45, %cst_29 [2] : vector<8x8x8xf32> to vector<8x8xf32>
    %47 = vector.shape_cast %46 : vector<8x8xf32> to vector<8x8x1xf32>
    %48 = vector.broadcast %47 : vector<8x8x1xf32> to vector<8x8x8xf32>
    %49 = arith.subf %45, %48 : vector<8x8x8xf32>
    %50 = math.exp %49 : vector<8x8x8xf32>
    %cst_30 = arith.constant dense<0.000000e+00> : vector<8x8xf32>
    %51 = vector.multi_reduction <add>, %50, %cst_30 [2] : vector<8x8x8xf32> to vector<8x8xf32>
    %52 = vector.shape_cast %51 : vector<8x8xf32> to vector<8x8x1xf32>
    %53 = tpu.reciprocal %52 {approx = true} : vector<8x8x1xf32> -> vector<8x8x1xf32>
    %54 = vector.broadcast %53 : vector<8x8x1xf32> to vector<8x8x8xf32>
    %55 = arith.mulf %50, %54 : vector<8x8x8xf32>
    "tpu.trace_start"() <{level = 10 : i32, message = "bqk,bkd->bqd"}> : () -> ()
    %cst_31 = arith.constant dense<0.000000e+00> : vector<8x8x8xf32>
    %56 = tpu.matmul %55, %42, %cst_31 {dimension_numbers = #tpu.dot_dimension_numbers<[2], [1], [1], [2], [0, 0, 0, 1, 1, 2], [0], [0]>} : vector<8x8x8xf32>, vector<8x8x8xf32>, vector<8x8x8xf32> -> vector<8x8x8xf32>
    "tpu.trace_stop"() : () -> ()
    %57 = vector.shape_cast %56 : vector<8x8x8xf32> to vector<64x8xf32>
    %58 = vector.extract_strided_slice %18 {offsets = [0, 0, 0], sizes = [1, 8, 32], strides = [1, 1, 1]} : vector<4x8x32xf32> to vector<1x8x32xf32>
    %59 = vector.shape_cast %58 : vector<1x8x32xf32> to vector<8x32xf32>
    %cst_32 = arith.constant dense<0.000000e+00> : vector<64x32xf32>
    %60 = tpu.matmul %57, %59, %cst_32 {dimension_numbers = #tpu.dot_dimension_numbers<[1], [0], [0], [1], [0, 0, 1, 1], [], []>} : vector<64x8xf32>, vector<8x32xf32>, vector<64x32xf32> -> vector<64x32xf32>
    %61 = vector.extract_strided_slice %16 {offsets = [0, 1, 0, 0], sizes = [1, 1, 32, 8], strides = [1, 1, 1, 1]} : vector<3x4x32x8xf32> to vector<1x1x32x8xf32>
    %62 = vector.shape_cast %61 : vector<1x1x32x8xf32> to vector<32x8xf32>
    %cst_33 = arith.constant dense<0.000000e+00> : vector<64x8xf32>
    %63 = tpu.matmul %15, %62, %cst_33 {dimension_numbers = #tpu.dot_dimension_numbers<[1], [0], [0], [1], [0, 0, 1, 1], [], []>} : vector<64x32xf32>, vector<32x8xf32>, vector<64x8xf32> -> vector<64x8xf32>
    %64 = vector.extract_strided_slice %17 {offsets = [0, 1, 0, 0], sizes = [1, 1, 1, 8], strides = [1, 1, 1, 1]} : vector<3x4x1x8xf32> to vector<1x1x1x8xf32>
    %65 = vector.shape_cast %64 : vector<1x1x1x8xf32> to vector<1x8xf32>
    %66 = vector.broadcast %65 : vector<1x8xf32> to vector<64x8xf32>
    %67 = arith.addf %63, %66 : vector<64x8xf32>
    %68 = vector.extract_strided_slice %16 {offsets = [1, 1, 0, 0], sizes = [1, 1, 32, 8], strides = [1, 1, 1, 1]} : vector<3x4x32x8xf32> to vector<1x1x32x8xf32>
    %69 = vector.shape_cast %68 : vector<1x1x32x8xf32> to vector<32x8xf32>
    %cst_34 = arith.constant dense<0.000000e+00> : vector<64x8xf32>
    %70 = tpu.matmul %15, %69, %cst_34 {dimension_numbers = #tpu.dot_dimension_numbers<[1], [0], [0], [1], [0, 0, 1, 1], [], []>} : vector<64x32xf32>, vector<32x8xf32>, vector<64x8xf32> -> vector<64x8xf32>
    %71 = vector.extract_strided_slice %17 {offsets = [1, 1, 0, 0], sizes = [1, 1, 1, 8], strides = [1, 1, 1, 1]} : vector<3x4x1x8xf32> to vector<1x1x1x8xf32>
    %72 = vector.shape_cast %71 : vector<1x1x1x8xf32> to vector<1x8xf32>
    %73 = vector.broadcast %72 : vector<1x8xf32> to vector<64x8xf32>
    %74 = arith.addf %70, %73 : vector<64x8xf32>
    %75 = vector.extract_strided_slice %16 {offsets = [2, 1, 0, 0], sizes = [1, 1, 32, 8], strides = [1, 1, 1, 1]} : vector<3x4x32x8xf32> to vector<1x1x32x8xf32>
    %76 = vector.shape_cast %75 : vector<1x1x32x8xf32> to vector<32x8xf32>
    %cst_35 = arith.constant dense<0.000000e+00> : vector<64x8xf32>
    %77 = tpu.matmul %15, %76, %cst_35 {dimension_numbers = #tpu.dot_dimension_numbers<[1], [0], [0], [1], [0, 0, 1, 1], [], []>} : vector<64x32xf32>, vector<32x8xf32>, vector<64x8xf32> -> vector<64x8xf32>
    %78 = vector.extract_strided_slice %17 {offsets = [2, 1, 0, 0], sizes = [1, 1, 1, 8], strides = [1, 1, 1, 1]} : vector<3x4x1x8xf32> to vector<1x1x1x8xf32>
    %79 = vector.shape_cast %78 : vector<1x1x1x8xf32> to vector<1x8xf32>
    %80 = vector.broadcast %79 : vector<1x8xf32> to vector<64x8xf32>
    %81 = arith.addf %77, %80 : vector<64x8xf32>
    %82 = vector.shape_cast %67 : vector<64x8xf32> to vector<8x8x8xf32>
    %83 = vector.shape_cast %74 : vector<64x8xf32> to vector<8x8x8xf32>
    %84 = vector.shape_cast %81 : vector<64x8xf32> to vector<8x8x8xf32>
    "tpu.trace_start"() <{level = 10 : i32, message = "bqd,bkd->bqk"}> : () -> ()
    %cst_36 = arith.constant dense<0.000000e+00> : vector<8x8x8xf32>
    %85 = tpu.matmul %82, %83, %cst_36 {dimension_numbers = #tpu.dot_dimension_numbers<[2], [2], [1], [1], [0, 0, 0, 1, 1, 1], [0], [0]>} : vector<8x8x8xf32>, vector<8x8x8xf32>, vector<8x8x8xf32> -> vector<8x8x8xf32>
    "tpu.trace_stop"() : () -> ()
    %cst_37 = arith.constant 0.353553385 : f32
    %86 = vector.broadcast %cst_37 : f32 to vector<8x8x8xf32>
    %87 = arith.mulf %85, %86 : vector<8x8x8xf32>
    %cst_38 = arith.constant dense<0xFF800000> : vector<8x8xf32>
    %88 = vector.multi_reduction <maximumf>, %87, %cst_38 [2] : vector<8x8x8xf32> to vector<8x8xf32>
    %89 = vector.shape_cast %88 : vector<8x8xf32> to vector<8x8x1xf32>
    %90 = vector.broadcast %89 : vector<8x8x1xf32> to vector<8x8x8xf32>
    %91 = arith.subf %87, %90 : vector<8x8x8xf32>
    %92 = math.exp %91 : vector<8x8x8xf32>
    %cst_39 = arith.constant dense<0.000000e+00> : vector<8x8xf32>
    %93 = vector.multi_reduction <add>, %92, %cst_39 [2] : vector<8x8x8xf32> to vector<8x8xf32>
    %94 = vector.shape_cast %93 : vector<8x8xf32> to vector<8x8x1xf32>
    %95 = tpu.reciprocal %94 {approx = true} : vector<8x8x1xf32> -> vector<8x8x1xf32>
    %96 = vector.broadcast %95 : vector<8x8x1xf32> to vector<8x8x8xf32>
    %97 = arith.mulf %92, %96 : vector<8x8x8xf32>
    "tpu.trace_start"() <{level = 10 : i32, message = "bqk,bkd->bqd"}> : () -> ()
    %cst_40 = arith.constant dense<0.000000e+00> : vector<8x8x8xf32>
    %98 = tpu.matmul %97, %84, %cst_40 {dimension_numbers = #tpu.dot_dimension_numbers<[2], [1], [1], [2], [0, 0, 0, 1, 1, 2], [0], [0]>} : vector<8x8x8xf32>, vector<8x8x8xf32>, vector<8x8x8xf32> -> vector<8x8x8xf32>
    "tpu.trace_stop"() : () -> ()
    %99 = vector.shape_cast %98 : vector<8x8x8xf32> to vector<64x8xf32>
    %100 = vector.extract_strided_slice %18 {offsets = [1, 0, 0], sizes = [1, 8, 32], strides = [1, 1, 1]} : vector<4x8x32xf32> to vector<1x8x32xf32>
    %101 = vector.shape_cast %100 : vector<1x8x32xf32> to vector<8x32xf32>
    %cst_41 = arith.constant dense<0.000000e+00> : vector<64x32xf32>
    %102 = tpu.matmul %99, %101, %cst_41 {dimension_numbers = #tpu.dot_dimension_numbers<[1], [0], [0], [1], [0, 0, 1, 1], [], []>} : vector<64x8xf32>, vector<8x32xf32>, vector<64x32xf32> -> vector<64x32xf32>
    %103 = arith.addf %60, %102 : vector<64x32xf32>
    %104 = vector.extract_strided_slice %16 {offsets = [0, 2, 0, 0], sizes = [1, 1, 32, 8], strides = [1, 1, 1, 1]} : vector<3x4x32x8xf32> to vector<1x1x32x8xf32>
    %105 = vector.shape_cast %104 : vector<1x1x32x8xf32> to vector<32x8xf32>
    %cst_42 = arith.constant dense<0.000000e+00> : vector<64x8xf32>
    %106 = tpu.matmul %15, %105, %cst_42 {dimension_numbers = #tpu.dot_dimension_numbers<[1], [0], [0], [1], [0, 0, 1, 1], [], []>} : vector<64x32xf32>, vector<32x8xf32>, vector<64x8xf32> -> vector<64x8xf32>
    %107 = vector.extract_strided_slice %17 {offsets = [0, 2, 0, 0], sizes = [1, 1, 1, 8], strides = [1, 1, 1, 1]} : vector<3x4x1x8xf32> to vector<1x1x1x8xf32>
    %108 = vector.shape_cast %107 : vector<1x1x1x8xf32> to vector<1x8xf32>
    %109 = vector.broadcast %108 : vector<1x8xf32> to vector<64x8xf32>
    %110 = arith.addf %106, %109 : vector<64x8xf32>
    %111 = vector.extract_strided_slice %16 {offsets = [1, 2, 0, 0], sizes = [1, 1, 32, 8], strides = [1, 1, 1, 1]} : vector<3x4x32x8xf32> to vector<1x1x32x8xf32>
    %112 = vector.shape_cast %111 : vector<1x1x32x8xf32> to vector<32x8xf32>
    %cst_43 = arith.constant dense<0.000000e+00> : vector<64x8xf32>
    %113 = tpu.matmul %15, %112, %cst_43 {dimension_numbers = #tpu.dot_dimension_numbers<[1], [0], [0], [1], [0, 0, 1, 1], [], []>} : vector<64x32xf32>, vector<32x8xf32>, vector<64x8xf32> -> vector<64x8xf32>
    %114 = vector.extract_strided_slice %17 {offsets = [1, 2, 0, 0], sizes = [1, 1, 1, 8], strides = [1, 1, 1, 1]} : vector<3x4x1x8xf32> to vector<1x1x1x8xf32>
    %115 = vector.shape_cast %114 : vector<1x1x1x8xf32> to vector<1x8xf32>
    %116 = vector.broadcast %115 : vector<1x8xf32> to vector<64x8xf32>
    %117 = arith.addf %113, %116 : vector<64x8xf32>
    %118 = vector.extract_strided_slice %16 {offsets = [2, 2, 0, 0], sizes = [1, 1, 32, 8], strides = [1, 1, 1, 1]} : vector<3x4x32x8xf32> to vector<1x1x32x8xf32>
    %119 = vector.shape_cast %118 : vector<1x1x32x8xf32> to vector<32x8xf32>
    %cst_44 = arith.constant dense<0.000000e+00> : vector<64x8xf32>
    %120 = tpu.matmul %15, %119, %cst_44 {dimension_numbers = #tpu.dot_dimension_numbers<[1], [0], [0], [1], [0, 0, 1, 1], [], []>} : vector<64x32xf32>, vector<32x8xf32>, vector<64x8xf32> -> vector<64x8xf32>
    %121 = vector.extract_strided_slice %17 {offsets = [2, 2, 0, 0], sizes = [1, 1, 1, 8], strides = [1, 1, 1, 1]} : vector<3x4x1x8xf32> to vector<1x1x1x8xf32>
    %122 = vector.shape_cast %121 : vector<1x1x1x8xf32> to vector<1x8xf32>
    %123 = vector.broadcast %122 : vector<1x8xf32> to vector<64x8xf32>
    %124 = arith.addf %120, %123 : vector<64x8xf32>
    %125 = vector.shape_cast %110 : vector<64x8xf32> to vector<8x8x8xf32>
    %126 = vector.shape_cast %117 : vector<64x8xf32> to vector<8x8x8xf32>
    %127 = vector.shape_cast %124 : vector<64x8xf32> to vector<8x8x8xf32>
    "tpu.trace_start"() <{level = 10 : i32, message = "bqd,bkd->bqk"}> : () -> ()
    %cst_45 = arith.constant dense<0.000000e+00> : vector<8x8x8xf32>
    %128 = tpu.matmul %125, %126, %cst_45 {dimension_numbers = #tpu.dot_dimension_numbers<[2], [2], [1], [1], [0, 0, 0, 1, 1, 1], [0], [0]>} : vector<8x8x8xf32>, vector<8x8x8xf32>, vector<8x8x8xf32> -> vector<8x8x8xf32>
    "tpu.trace_stop"() : () -> ()
    %cst_46 = arith.constant 0.353553385 : f32
    %129 = vector.broadcast %cst_46 : f32 to vector<8x8x8xf32>
    %130 = arith.mulf %128, %129 : vector<8x8x8xf32>
    %cst_47 = arith.constant dense<0xFF800000> : vector<8x8xf32>
    %131 = vector.multi_reduction <maximumf>, %130, %cst_47 [2] : vector<8x8x8xf32> to vector<8x8xf32>
    %132 = vector.shape_cast %131 : vector<8x8xf32> to vector<8x8x1xf32>
    %133 = vector.broadcast %132 : vector<8x8x1xf32> to vector<8x8x8xf32>
    %134 = arith.subf %130, %133 : vector<8x8x8xf32>
    %135 = math.exp %134 : vector<8x8x8xf32>
    %cst_48 = arith.constant dense<0.000000e+00> : vector<8x8xf32>
    %136 = vector.multi_reduction <add>, %135, %cst_48 [2] : vector<8x8x8xf32> to vector<8x8xf32>
    %137 = vector.shape_cast %136 : vector<8x8xf32> to vector<8x8x1xf32>
    %138 = tpu.reciprocal %137 {approx = true} : vector<8x8x1xf32> -> vector<8x8x1xf32>
    %139 = vector.broadcast %138 : vector<8x8x1xf32> to vector<8x8x8xf32>
    %140 = arith.mulf %135, %139 : vector<8x8x8xf32>
    "tpu.trace_start"() <{level = 10 : i32, message = "bqk,bkd->bqd"}> : () -> ()
    %cst_49 = arith.constant dense<0.000000e+00> : vector<8x8x8xf32>
    %141 = tpu.matmul %140, %127, %cst_49 {dimension_numbers = #tpu.dot_dimension_numbers<[2], [1], [1], [2], [0, 0, 0, 1, 1, 2], [0], [0]>} : vector<8x8x8xf32>, vector<8x8x8xf32>, vector<8x8x8xf32> -> vector<8x8x8xf32>
    "tpu.trace_stop"() : () -> ()
    %142 = vector.shape_cast %141 : vector<8x8x8xf32> to vector<64x8xf32>
    %143 = vector.extract_strided_slice %18 {offsets = [2, 0, 0], sizes = [1, 8, 32], strides = [1, 1, 1]} : vector<4x8x32xf32> to vector<1x8x32xf32>
    %144 = vector.shape_cast %143 : vector<1x8x32xf32> to vector<8x32xf32>
    %cst_50 = arith.constant dense<0.000000e+00> : vector<64x32xf32>
    %145 = tpu.matmul %142, %144, %cst_50 {dimension_numbers = #tpu.dot_dimension_numbers<[1], [0], [0], [1], [0, 0, 1, 1], [], []>} : vector<64x8xf32>, vector<8x32xf32>, vector<64x32xf32> -> vector<64x32xf32>
    %146 = arith.addf %103, %145 : vector<64x32xf32>
    %147 = vector.extract_strided_slice %16 {offsets = [0, 3, 0, 0], sizes = [1, 1, 32, 8], strides = [1, 1, 1, 1]} : vector<3x4x32x8xf32> to vector<1x1x32x8xf32>
    %148 = vector.shape_cast %147 : vector<1x1x32x8xf32> to vector<32x8xf32>
    %cst_51 = arith.constant dense<0.000000e+00> : vector<64x8xf32>
    %149 = tpu.matmul %15, %148, %cst_51 {dimension_numbers = #tpu.dot_dimension_numbers<[1], [0], [0], [1], [0, 0, 1, 1], [], []>} : vector<64x32xf32>, vector<32x8xf32>, vector<64x8xf32> -> vector<64x8xf32>
    %150 = vector.extract_strided_slice %17 {offsets = [0, 3, 0, 0], sizes = [1, 1, 1, 8], strides = [1, 1, 1, 1]} : vector<3x4x1x8xf32> to vector<1x1x1x8xf32>
    %151 = vector.shape_cast %150 : vector<1x1x1x8xf32> to vector<1x8xf32>
    %152 = vector.broadcast %151 : vector<1x8xf32> to vector<64x8xf32>
    %153 = arith.addf %149, %152 : vector<64x8xf32>
    %154 = vector.extract_strided_slice %16 {offsets = [1, 3, 0, 0], sizes = [1, 1, 32, 8], strides = [1, 1, 1, 1]} : vector<3x4x32x8xf32> to vector<1x1x32x8xf32>
    %155 = vector.shape_cast %154 : vector<1x1x32x8xf32> to vector<32x8xf32>
    %cst_52 = arith.constant dense<0.000000e+00> : vector<64x8xf32>
    %156 = tpu.matmul %15, %155, %cst_52 {dimension_numbers = #tpu.dot_dimension_numbers<[1], [0], [0], [1], [0, 0, 1, 1], [], []>} : vector<64x32xf32>, vector<32x8xf32>, vector<64x8xf32> -> vector<64x8xf32>
    %157 = vector.extract_strided_slice %17 {offsets = [1, 3, 0, 0], sizes = [1, 1, 1, 8], strides = [1, 1, 1, 1]} : vector<3x4x1x8xf32> to vector<1x1x1x8xf32>
    %158 = vector.shape_cast %157 : vector<1x1x1x8xf32> to vector<1x8xf32>
    %159 = vector.broadcast %158 : vector<1x8xf32> to vector<64x8xf32>
    %160 = arith.addf %156, %159 : vector<64x8xf32>
    %161 = vector.extract_strided_slice %16 {offsets = [2, 3, 0, 0], sizes = [1, 1, 32, 8], strides = [1, 1, 1, 1]} : vector<3x4x32x8xf32> to vector<1x1x32x8xf32>
    %162 = vector.shape_cast %161 : vector<1x1x32x8xf32> to vector<32x8xf32>
    %cst_53 = arith.constant dense<0.000000e+00> : vector<64x8xf32>
    %163 = tpu.matmul %15, %162, %cst_53 {dimension_numbers = #tpu.dot_dimension_numbers<[1], [0], [0], [1], [0, 0, 1, 1], [], []>} : vector<64x32xf32>, vector<32x8xf32>, vector<64x8xf32> -> vector<64x8xf32>
    %164 = vector.extract_strided_slice %17 {offsets = [2, 3, 0, 0], sizes = [1, 1, 1, 8], strides = [1, 1, 1, 1]} : vector<3x4x1x8xf32> to vector<1x1x1x8xf32>
    %165 = vector.shape_cast %164 : vector<1x1x1x8xf32> to vector<1x8xf32>
    %166 = vector.broadcast %165 : vector<1x8xf32> to vector<64x8xf32>
    %167 = arith.addf %163, %166 : vector<64x8xf32>
    %168 = vector.shape_cast %153 : vector<64x8xf32> to vector<8x8x8xf32>
    %169 = vector.shape_cast %160 : vector<64x8xf32> to vector<8x8x8xf32>
    %170 = vector.shape_cast %167 : vector<64x8xf32> to vector<8x8x8xf32>
    "tpu.trace_start"() <{level = 10 : i32, message = "bqd,bkd->bqk"}> : () -> ()
    %cst_54 = arith.constant dense<0.000000e+00> : vector<8x8x8xf32>
    %171 = tpu.matmul %168, %169, %cst_54 {dimension_numbers = #tpu.dot_dimension_numbers<[2], [2], [1], [1], [0, 0, 0, 1, 1, 1], [0], [0]>} : vector<8x8x8xf32>, vector<8x8x8xf32>, vector<8x8x8xf32> -> vector<8x8x8xf32>
    "tpu.trace_stop"() : () -> ()
    %cst_55 = arith.constant 0.353553385 : f32
    %172 = vector.broadcast %cst_55 : f32 to vector<8x8x8xf32>
    %173 = arith.mulf %171, %172 : vector<8x8x8xf32>
    %cst_56 = arith.constant dense<0xFF800000> : vector<8x8xf32>
    %174 = vector.multi_reduction <maximumf>, %173, %cst_56 [2] : vector<8x8x8xf32> to vector<8x8xf32>
    %175 = vector.shape_cast %174 : vector<8x8xf32> to vector<8x8x1xf32>
    %176 = vector.broadcast %175 : vector<8x8x1xf32> to vector<8x8x8xf32>
    %177 = arith.subf %173, %176 : vector<8x8x8xf32>
    %178 = math.exp %177 : vector<8x8x8xf32>
    %cst_57 = arith.constant dense<0.000000e+00> : vector<8x8xf32>
    %179 = vector.multi_reduction <add>, %178, %cst_57 [2] : vector<8x8x8xf32> to vector<8x8xf32>
    %180 = vector.shape_cast %179 : vector<8x8xf32> to vector<8x8x1xf32>
    %181 = tpu.reciprocal %180 {approx = true} : vector<8x8x1xf32> -> vector<8x8x1xf32>
    %182 = vector.broadcast %181 : vector<8x8x1xf32> to vector<8x8x8xf32>
    %183 = arith.mulf %178, %182 : vector<8x8x8xf32>
    "tpu.trace_start"() <{level = 10 : i32, message = "bqk,bkd->bqd"}> : () -> ()
    %cst_58 = arith.constant dense<0.000000e+00> : vector<8x8x8xf32>
    %184 = tpu.matmul %183, %170, %cst_58 {dimension_numbers = #tpu.dot_dimension_numbers<[2], [1], [1], [2], [0, 0, 0, 1, 1, 2], [0], [0]>} : vector<8x8x8xf32>, vector<8x8x8xf32>, vector<8x8x8xf32> -> vector<8x8x8xf32>
    "tpu.trace_stop"() : () -> ()
    %185 = vector.shape_cast %184 : vector<8x8x8xf32> to vector<64x8xf32>
    %186 = vector.extract_strided_slice %18 {offsets = [3, 0, 0], sizes = [1, 8, 32], strides = [1, 1, 1]} : vector<4x8x32xf32> to vector<1x8x32xf32>
    %187 = vector.shape_cast %186 : vector<1x8x32xf32> to vector<8x32xf32>
    %cst_59 = arith.constant dense<0.000000e+00> : vector<64x32xf32>
    %188 = tpu.matmul %185, %187, %cst_59 {dimension_numbers = #tpu.dot_dimension_numbers<[1], [0], [0], [1], [0, 0, 1, 1], [], []>} : vector<64x8xf32>, vector<8x32xf32>, vector<64x32xf32> -> vector<64x32xf32>
    %189 = arith.addf %146, %188 : vector<64x32xf32>
    %c0_60 = arith.constant 0 : index
    %c0_61 = arith.constant 0 : index
    %190 = vector.load %arg9[%c0_60, %c0_61] : memref<1x32xf32, #tpu.memory_space<vmem>>, vector<1x32xf32>
    %191 = vector.broadcast %190 : vector<1x32xf32> to vector<64x32xf32>
    %192 = arith.addf %189, %191 : vector<64x32xf32>
    %193 = vector.shape_cast %192 : vector<64x32xf32> to vector<8x8x32xf32>
    %cst_62 = arith.constant dense<0.000000e+00> : vector<8x32xf32>
    %194 = vector.multi_reduction <add>, %193, %cst_62 [1] : vector<8x8x32xf32> to vector<8x32xf32>
    %cst_63 = arith.constant 1.250000e-01 : f32
    %195 = vector.broadcast %cst_63 : f32 to vector<8x32xf32>
    %196 = arith.mulf %194, %195 : vector<8x32xf32>
    %c0_64 = arith.constant 0 : index
    %c0_65 = arith.constant 0 : index
    %197 = vector.load %arg10[%c0_64, %c0_65] : memref<32x32xf32, #tpu.memory_space<vmem>>, vector<32x32xf32>
    %cst_66 = arith.constant dense<0.000000e+00> : vector<8x32xf32>
    %198 = tpu.matmul %196, %197, %cst_66 {dimension_numbers = #tpu.dot_dimension_numbers<[1], [0], [0], [1], [0, 0, 1, 1], [], []>} : vector<8x32xf32>, vector<32x32xf32>, vector<8x32xf32> -> vector<8x32xf32>
    %c0_67 = arith.constant 0 : index
    %c0_68 = arith.constant 0 : index
    %199 = vector.load %arg11[%c0_67, %c0_68] : memref<1x32xf32, #tpu.memory_space<vmem>>, vector<1x32xf32>
    %200 = vector.broadcast %199 : vector<1x32xf32> to vector<8x32xf32>
    %201 = arith.addf %198, %200 : vector<8x32xf32>
    %c0_69 = arith.constant 0 : index
    %c0_70 = arith.constant 0 : index
    %202 = vector.load %arg12[%c0_69, %c0_70] : memref<8x32xf32, #tpu.memory_space<vmem>>, vector<8x32xf32>
    tpu.vector_store %arg12[%c0_69, %c0_70], %201 {strides = array<i32>} : memref<8x32xf32, #tpu.memory_space<vmem>>, vector<8x32xf32>,
    return
  }
  func.func @transform_0(%arg0: i32) -> (i32, i32, i32) {
    %c0_i32 = arith.constant 0 : i32
    %c0_i32_0 = arith.constant 0 : i32
    %c0_i32_1 = arith.constant 0 : i32
    return %arg0, %c0_i32, %c0_i32_0 : i32, i32, i32
  }
  func.func @transform_1(%arg0: i32) -> (i32, i32) {
    %c0_i32 = arith.constant 0 : i32
    %c0_i32_0 = arith.constant 0 : i32
    %c0_i32_1 = arith.constant 0 : i32
    return %c0_i32, %c0_i32_0 : i32, i32
  }
  func.func @transform_2(%arg0: i32) -> (i32, i32) {
    %c0_i32 = arith.constant 0 : i32
    %c0_i32_0 = arith.constant 0 : i32
    %c0_i32_1 = arith.constant 0 : i32
    return %c0_i32, %c0_i32_0 : i32, i32
  }
  func.func @transform_3(%arg0: i32) -> (i32, i32) {
    %c0_i32 = arith.constant 0 : i32
    %c0_i32_0 = arith.constant 0 : i32
    %c0_i32_1 = arith.constant 0 : i32
    return %c0_i32, %c0_i32_0 : i32, i32
  }
  func.func @transform_4(%arg0: i32) -> (i32, i32) {
    %c0_i32 = arith.constant 0 : i32
    %c0_i32_0 = arith.constant 0 : i32
    %c0_i32_1 = arith.constant 0 : i32
    return %c0_i32, %c0_i32_0 : i32, i32
  }
  func.func @transform_5(%arg0: i32) -> (i32, i32, i32, i32) {
    %c0_i32 = arith.constant 0 : i32
    %c0_i32_0 = arith.constant 0 : i32
    %c0_i32_1 = arith.constant 0 : i32
    %c0_i32_2 = arith.constant 0 : i32
    %c0_i32_3 = arith.constant 0 : i32
    return %c0_i32, %c0_i32_0, %c0_i32_1, %c0_i32_2 : i32, i32, i32, i32
  }
  func.func @transform_6(%arg0: i32) -> (i32, i32, i32, i32) {
    %c0_i32 = arith.constant 0 : i32
    %c0_i32_0 = arith.constant 0 : i32
    %c0_i32_1 = arith.constant 0 : i32
    %c0_i32_2 = arith.constant 0 : i32
    %c0_i32_3 = arith.constant 0 : i32
    return %c0_i32, %c0_i32_0, %c0_i32_1, %c0_i32_2 : i32, i32, i32, i32
  }
  func.func @transform_7(%arg0: i32) -> (i32, i32, i32) {
    %c0_i32 = arith.constant 0 : i32
    %c0_i32_0 = arith.constant 0 : i32
    %c0_i32_1 = arith.constant 0 : i32
    %c0_i32_2 = arith.constant 0 : i32
    return %c0_i32, %c0_i32_0, %c0_i32_1 : i32, i32, i32
  }
  func.func @transform_8(%arg0: i32) -> (i32, i32) {
    %c0_i32 = arith.constant 0 : i32
    %c0_i32_0 = arith.constant 0 : i32
    %c0_i32_1 = arith.constant 0 : i32
    return %c0_i32, %c0_i32_0 : i32, i32
  }
  func.func @transform_9(%arg0: i32) -> (i32, i32) {
    %c0_i32 = arith.constant 0 : i32
    %c0_i32_0 = arith.constant 0 : i32
    %c0_i32_1 = arith.constant 0 : i32
    return %c0_i32, %c0_i32_0 : i32, i32
  }
  func.func @transform_10(%arg0: i32) -> (i32, i32) {
    %c0_i32 = arith.constant 0 : i32
    %c0_i32_0 = arith.constant 0 : i32
    %c0_i32_1 = arith.constant 0 : i32
    return %c0_i32, %c0_i32_0 : i32, i32
  }
  func.func @transform_11(%arg0: i32) -> (i32, i32) {
    %c0_i32 = arith.constant 0 : i32
    %c0_i32_0 = arith.constant 0 : i32
    return %arg0, %c0_i32 : i32, i32
  }
}

</mosaic_0001>

<llo_original>
// kernel: tpu_custom_call.1
$region0: #{tpu_custom_call.1}
  #allocation0 [shape = 'u32[]', space=smem, size = 0x4, offset = 0x4, fixed_abs, tag = 'smem constant byte address 0x4 - core index']
  #allocation1 [shape = 'u32[72,128]{1,0:T(1,128)}', space=vmem, size = 0x9000, scoped, tag = 'internal scratch']
  %s0 = inlined_call_operand.vmem [shape: f32[8,8,6], index: 0, kind: input, shape index: {}]
  %s1 = inlined_call_operand.vmem [shape: f32[6,16], index: 1, kind: input, shape index: {}]
  %s2 = inlined_call_operand.vmem [shape: f32[1,16], index: 2, kind: input, shape index: {}]
  %s3 = inlined_call_operand.vmem [shape: f32[16,32], index: 3, kind: input, shape index: {}]
  %s4 = inlined_call_operand.vmem [shape: f32[1,32], index: 4, kind: input, shape index: {}]
  %s5 = inlined_call_operand.vmem [shape: f32[3,4,32,8], index: 5, kind: input, shape index: {}]
  %s6 = inlined_call_operand.vmem [shape: f32[3,4,1,8], index: 6, kind: input, shape index: {}]
  %s7 = inlined_call_operand.vmem [shape: f32[4,8,32], index: 7, kind: input, shape index: {}]
  %s8 = inlined_call_operand.vmem [shape: f32[1,32], index: 8, kind: input, shape index: {}]
  %s9 = inlined_call_operand.vmem [shape: f32[32,32], index: 9, kind: input, shape index: {}]
  %s10 = inlined_call_operand.vmem [shape: f32[1,32], index: 10, kind: input, shape index: {}]
  %s11 = inlined_call_operand.hbm [shape: f32[8,32], index: 11, kind: output, shape index: {}]
  %s12 = sld [smem:[#allocation0]]
  $region54: #{tpu_custom_call.1} parent=0
    _
  %s14 = ssub.s32 1, %s12
  %s15 = scalar_select 0, %s14, %s12
  $region1: #{tpu_custom_call.1} parent=0
    #allocation2 [shape = 'u8[4096]{0}', space=vmem, size = 0x1000, scoped, tag = 'output window, operand 0, single buffered']
    #allocation3 [shape = 's32[1]{0}', space=sflag, size = 0x4, scoped, tag = 'scoped memory for tpu_custom_call.1']
    %16 = vsyncpa [#allocation3], 0
    // Predicated region
    $region2: #{tpu_custom_call.1} parent=1 // pred_check
      _
    $region3: #{tpu_custom_call.1} parent=1 // pred_check_branch
      %18 = sbr.rel (0) target = $region5
    $region4: #{tpu_custom_call.1} parent=1 // pred_region
      _
    $region5: #{tpu_custom_call.1} parent=1 // pred_fallthru
      _
    // Predicated region
    $region6: #{tpu_custom_call.1} parent=1 // pred_check
      _
    $region7: #{tpu_custom_call.1} parent=1 // pred_check_branch
      %20 = sbr.rel (0) target = $region9
    $region8: #{tpu_custom_call.1} parent=1 // pred_region
      _
    $region9: #{tpu_custom_call.1} parent=1 // pred_fallthru
      _
    // Predicated region
    $region10: #{tpu_custom_call.1} parent=1 // pred_check
      _
    $region11: #{tpu_custom_call.1} parent=1 // pred_check_branch
      %22 = sbr.rel (0) target = $region13
    $region12: #{tpu_custom_call.1} parent=1 // pred_region
      _
    $region13: #{tpu_custom_call.1} parent=1 // pred_fallthru
      _
    // Predicated region
    $region14: #{tpu_custom_call.1} parent=1 // pred_check
      _
    $region15: #{tpu_custom_call.1} parent=1 // pred_check_branch
      %24 = sbr.rel (0) target = $region17
    $region16: #{tpu_custom_call.1} parent=1 // pred_region
      _
    $region17: #{tpu_custom_call.1} parent=1 // pred_fallthru
      _
    // Predicated region
    $region18: #{tpu_custom_call.1} parent=1 // pred_check
      _
    $region19: #{tpu_custom_call.1} parent=1 // pred_check_branch
      %26 = sbr.rel (0) target = $region21
    $region20: #{tpu_custom_call.1} parent=1 // pred_region
      _
    $region21: #{tpu_custom_call.1} parent=1 // pred_fallthru
      _
    // Predicated region
    $region22: #{tpu_custom_call.1} parent=1 // pred_check
      _
    $region23: #{tpu_custom_call.1} parent=1 // pred_check_branch
      %28 = sbr.rel (0) target = $region25
    $region24: #{tpu_custom_call.1} parent=1 // pred_region
      _
    $region25: #{tpu_custom_call.1} parent=1 // pred_fallthru
      _
    // Predicated region
    $region26: #{tpu_custom_call.1} parent=1 // pred_check
      _
    $region27: #{tpu_custom_call.1} parent=1 // pred_check_branch
      %30 = sbr.rel (0) target = $region29
    $region28: #{tpu_custom_call.1} parent=1 // pred_region
      _
    $region29: #{tpu_custom_call.1} parent=1 // pred_fallthru
      _
    // Predicated region
    $region30: #{tpu_custom_call.1} parent=1 // pred_check
      _
    $region31: #{tpu_custom_call.1} parent=1 // pred_check_branch
      %32 = sbr.rel (0) target = $region33
    $region32: #{tpu_custom_call.1} parent=1 // pred_region
      _
    $region33: #{tpu_custom_call.1} parent=1 // pred_fallthru
      _
    // Predicated region
    $region34: #{tpu_custom_call.1} parent=1 // pred_check
      _
    $region35: #{tpu_custom_call.1} parent=1 // pred_check_branch
      %34 = sbr.rel (0) target = $region37
    $region36: #{tpu_custom_call.1} parent=1 // pred_region
      _
    $region37: #{tpu_custom_call.1} parent=1 // pred_fallthru
      _
    // Predicated region
    $region38: #{tpu_custom_call.1} parent=1 // pred_check
      _
    $region39: #{tpu_custom_call.1} parent=1 // pred_check_branch
      %36 = sbr.rel (0) target = $region41
    $region40: #{tpu_custom_call.1} parent=1 // pred_region
      _
    $region41: #{tpu_custom_call.1} parent=1 // pred_fallthru
      _
    // Predicated region
    $region42: #{tpu_custom_call.1} parent=1 // pred_check
      _
    $region43: #{tpu_custom_call.1} parent=1 // pred_check_branch
      %38 = sbr.rel (0) target = $region45
    $region44: #{tpu_custom_call.1} parent=1 // pred_region
      _
    $region45: #{tpu_custom_call.1} parent=1 // pred_fallthru
      _
    %v39 = vld [vmem:[%s0] sm:$0xff]
    %v40 = vld [vmem:[%s0 + $0x8] sm:$0xff]
    %v41 = vld [vmem:[%s0 + $0x10] sm:$0xff]
    %v42 = vld [vmem:[%s0 + $0x18] sm:$0xff]
    %v43 = vld [vmem:[%s0 + $0x20] sm:$0xff]
    %v44 = vld [vmem:[%s0 + $0x28] sm:$0xff]
    %v45 = vld [vmem:[%s0 + $0x30] sm:$0xff]
    %v46 = vld [vmem:[%s0 + $0x38] sm:$0xff]
    %v47 = vld [vmem:[%s1] sm:$0x3f]
    %v48 = vld [vmem:[%s2] sm:$0x1]
    %v50 = vperm.slane %v48, 0
    %vm52 = vcmask 48128
    %v54 = vsel %vm52, %v39, 0
    %v57 = vsel %vm52, %v40, 0
    %v60 = vsel %vm52, %v41, 0
    %v63 = vsel %vm52, %v42, 0
    %v66 = vsel %vm52, %v43, 0
    %v69 = vsel %vm52, %v44, 0
    %v72 = vsel %vm52, %v45, 0
    %v75 = vsel %vm52, %v46, 0
    %vm77 = vcmask 1045504
    %v79 = vsel %vm77, %v47, 0
    %81 = vmatpush.msra.mxu0 0.0
    %82 = vmatpush.msra.mxu0 0.0
    %83 = vmatpush.msra.mxu0 0.0
    %84 = vmatpush.msra.mxu0 0.0
    %85 = vmatpush.msra.mxu0 0.0
    %86 = vmatpush.msra.mxu0 0.0
    %87 = vmatpush.msra.mxu0 0.0
    %88 = vmatpush.msra.mxu0 0.0
    %89 = vmatpush.msra.mxu0 0.0
    %90 = vmatpush.msra.mxu0 0.0
    %91 = vmatpush.msra.mxu0 0.0
    %92 = vmatpush.msra.mxu0 0.0
    %93 = vmatpush.msra.mxu0 0.0
    %94 = vmatpush.msra.mxu0 0.0
    %95 = vmatpush.msra.mxu0 0.0
    %96 = vmatpush.msra.mxu0 %v79
    %97 = vmatmul.f32.gmra.mxu0 %v54
    %v98 = vpop.f32.mrf.mxu0
    %v99 = vadd.f32 %v50, %v98
    %100 = vmatmul.f32.gmra.mxu0 %v57
    %v101 = vpop.f32.mrf.mxu0
    %v102 = vadd.f32 %v50, %v101
    %103 = vmatmul.f32.gmra.mxu0 %v60
    %v104 = vpop.f32.mrf.mxu0
    %v105 = vadd.f32 %v50, %v104
    %106 = vmatmul.f32.gmra.mxu0 %v63
    %v107 = vpop.f32.mrf.mxu0
    %v108 = vadd.f32 %v50, %v107
    %109 = vmatmul.f32.gmra.mxu0 %v66
    %v110 = vpop.f32.mrf.mxu0
    %v111 = vadd.f32 %v50, %v110
    %112 = vmatmul.f32.gmra.mxu0 %v69
    %v113 = vpop.f32.mrf.mxu0
    %v114 = vadd.f32 %v50, %v113
    %115 = vmatmul.f32.gmra.mxu0 %v72
    %v116 = vpop.f32.mrf.mxu0
    %v117 = vadd.f32 %v50, %v116
    %118 = vmatmul.f32.gmra.mxu0 %v75
    %v119 = vpop.f32.mrf.mxu0
    %v120 = vadd.f32 %v50, %v119
    %121 = vdwg.mxu0
    %v122 = vmax.f32 %v99, 0.0
    %v123 = vmax.f32 %v102, 0.0
    %v124 = vmax.f32 %v105, 0.0
    %v125 = vmax.f32 %v108, 0.0
    %v126 = vmax.f32 %v111, 0.0
    %v127 = vmax.f32 %v114, 0.0
    %v128 = vmax.f32 %v117, 0.0
    %v129 = vmax.f32 %v120, 0.0
    %v130 = vld [vmem:[%s3] sm:$0xff]
    %v131 = vld [vmem:[%s3 + $0x8] sm:$0xff]
    %v132 = vld [vmem:[%s4] sm:$0x1]
    %v134 = vperm.slane %v132, 0
    %vm136 = vcmask 130048
    %v138 = vsel %vm136, %v122, 0
    %v141 = vsel %vm136, %v123, 0
    %v144 = vsel %vm136, %v124, 0
    %v147 = vsel %vm136, %v125, 0
    %v150 = vsel %vm136, %v126, 0
    %v153 = vsel %vm136, %v127, 0
    %v156 = vsel %vm136, %v128, 0
    %v159 = vsel %vm136, %v129, 0
    %161 = vmatpush.msra.mxu0 0.0
    %162 = vmatpush.msra.mxu0 0.0
    %163 = vmatpush.msra.mxu0 0.0
    %164 = vmatpush.msra.mxu0 0.0
    %165 = vmatpush.msra.mxu0 0.0
    %166 = vmatpush.msra.mxu0 0.0
    %167 = vmatpush.msra.mxu0 0.0
    %168 = vmatpush.msra.mxu0 0.0
    %169 = vmatpush.msra.mxu0 0.0
    %170 = vmatpush.msra.mxu0 0.0
    %171 = vmatpush.msra.mxu0 0.0
    %172 = vmatpush.msra.mxu0 0.0
    %173 = vmatpush.msra.mxu0 0.0
    %174 = vmatpush.msra.mxu0 0.0
    %175 = vmatpush.msra.mxu0 %v131
    %176 = vmatpush.msra.mxu0 %v130
    %177 = vmatmul.f32.gmra.mxu0 %v138
    %v178 = vpop.f32.mrf.mxu0
    %v179 = vadd.f32 %v134, %v178
    %180 = vmatmul.f32.gmra.mxu0 %v141
    %v181 = vpop.f32.mrf.mxu0
    %v182 = vadd.f32 %v134, %v181
    %183 = vmatmul.f32.gmra.mxu0 %v144
    %v184 = vpop.f32.mrf.mxu0
    %v185 = vadd.f32 %v134, %v184
    %186 = vmatmul.f32.gmra.mxu0 %v147
    %v187 = vpop.f32.mrf.mxu0
    %v188 = vadd.f32 %v134, %v187
    %189 = vmatmul.f32.gmra.mxu0 %v150
    %v190 = vpop.f32.mrf.mxu0
    %v191 = vadd.f32 %v134, %v190
    %192 = vmatmul.f32.gmra.mxu0 %v153
    %v193 = vpop.f32.mrf.mxu0
    %v194 = vadd.f32 %v134, %v193
    %195 = vmatmul.f32.gmra.mxu0 %v156
    %v196 = vpop.f32.mrf.mxu0
    %v197 = vadd.f32 %v134, %v196
    %198 = vmatmul.f32.gmra.mxu0 %v159
    %v199 = vpop.f32.mrf.mxu0
    %v200 = vadd.f32 %v134, %v199
    %201 = vdwg.mxu0
    %v202 = vmax.f32 %v179, 0.0
    %v203 = vmax.f32 %v182, 0.0
    %v204 = vmax.f32 %v185, 0.0
    %v205 = vmax.f32 %v188, 0.0
    %v206 = vmax.f32 %v191, 0.0
    %v207 = vmax.f32 %v194, 0.0
    %v208 = vmax.f32 %v197, 0.0
    %v209 = vmax.f32 %v200, 0.0
    %v210 = vld [vmem:[%s5] sm:$0xff]
    %v211 = vld [vmem:[%s5 + $0x8] sm:$0xff]
    %v212 = vld [vmem:[%s5 + $0x10] sm:$0xff]
    %v213 = vld [vmem:[%s5 + $0x18] sm:$0xff]
    %v214 = vld [vmem:[%s5 + $0x20] sm:$0xff]
    %v215 = vld [vmem:[%s5 + $0x28] sm:$0xff]
    %v216 = vld [vmem:[%s5 + $0x30] sm:$0xff]
    %v217 = vld [vmem:[%s5 + $0x38] sm:$0xff]
    %v218 = vld [vmem:[%s5 + $0x40] sm:$0xff]
    %v219 = vld [vmem:[%s5 + $0x48] sm:$0xff]
    %v220 = vld [vmem:[%s5 + $0x50] sm:$0xff]
    %v221 = vld [vmem:[%s5 + $0x58] sm:$0xff]
    %v222 = vld [vmem:[%s5 + $0x60] sm:$0xff]
    %v223 = vld [vmem:[%s5 + $0x68] sm:$0xff]
    %v224 = vld [vmem:[%s5 + $0x70] sm:$0xff]
    %v225 = vld [vmem:[%s5 + $0x78] sm:$0xff]
    %v226 = vld [vmem:[%s5 + $0x80] sm:$0xff]
    %v227 = vld [vmem:[%s5 + $0x88] sm:$0xff]
    %v228 = vld [vmem:[%s5 + $0x90] sm:$0xff]
    %v229 = vld [vmem:[%s5 + $0x98] sm:$0xff]
    %v230 = vld [vmem:[%s5 + $0xa0] sm:$0xff]
    %v231 = vld [vmem:[%s5 + $0xa8] sm:$0xff]
    %v232 = vld [vmem:[%s5 + $0xb0] sm:$0xff]
    %v233 = vld [vmem:[%s5 + $0xb8] sm:$0xff]
    %v234 = vld [vmem:[%s5 + $0xc0] sm:$0xff]
    %v235 = vld [vmem:[%s5 + $0xc8] sm:$0xff]
    %v236 = vld [vmem:[%s5 + $0xd0] sm:$0xff]
    %v237 = vld [vmem:[%s5 + $0xd8] sm:$0xff]
    %v238 = vld [vmem:[%s5 + $0xe0] sm:$0xff]
    %v239 = vld [vmem:[%s5 + $0xe8] sm:$0xff]
    %v240 = vld [vmem:[%s5 + $0xf0] sm:$0xff]
    %v241 = vld [vmem:[%s5 + $0xf8] sm:$0xff]
    %v242 = vld [vmem:[%s5 + $0x100] sm:$0xff]
    %v243 = vld [vmem:[%s5 + $0x108] sm:$0xff]
    %v244 = vld [vmem:[%s5 + $0x110] sm:$0xff]
    %v245 = vld [vmem:[%s5 + $0x118] sm:$0xff]
    %v246 = vld [vmem:[%s5 + $0x120] sm:$0xff]
    %v247 = vld [vmem:[%s5 + $0x128] sm:$0xff]
    %v248 = vld [vmem:[%s5 + $0x130] sm:$0xff]
    %v249 = vld [vmem:[%s5 + $0x138] sm:$0xff]
    %v250 = vld [vmem:[%s5 + $0x140] sm:$0xff]
    %v251 = vld [vmem:[%s5 + $0x148] sm:$0xff]
    %v252 = vld [vmem:[%s5 + $0x150] sm:$0xff]
    %v253 = vld [vmem:[%s5 + $0x158] sm:$0xff]
    %v254 = vld [vmem:[%s5 + $0x160] sm:$0xff]
    %v255 = vld [vmem:[%s5 + $0x168] sm:$0xff]
    %v256 = vld [vmem:[%s5 + $0x170] sm:$0xff]
    %v257 = vld [vmem:[%s5 + $0x178] sm:$0xff]
    %v258 = vld [vmem:[%s6] sm:$0x1]
    %v259 = vld [vmem:[%s6 + $0x1] sm:$0x1]
    %v260 = vld [vmem:[%s6 + $0x2] sm:$0x1]
    %v261 = vld [vmem:[%s6 + $0x3] sm:$0x1]
    %v262 = vld [vmem:[%s6 + $0x4] sm:$0x1]
    %v263 = vld [vmem:[%s6 + $0x5] sm:$0x1]
    %v264 = vld [vmem:[%s6 + $0x6] sm:$0x1]
    %v265 = vld [vmem:[%s6 + $0x7] sm:$0x1]
    %v266 = vld [vmem:[%s6 + $0x8] sm:$0x1]
    %v267 = vld [vmem:[%s6 + $0x9] sm:$0x1]
    %v268 = vld [vmem:[%s6 + $0xa] sm:$0x1]
    %v269 = vld [vmem:[%s6 + $0xb] sm:$0x1]
    %v270 = vld [vmem:[%s7] sm:$0xff]
    %v271 = vld [vmem:[%s7 + $0x8] sm:$0xff]
    %v272 = vld [vmem:[%s7 + $0x10] sm:$0xff]
    %v273 = vld [vmem:[%s7 + $0x18] sm:$0xff]
    %v275 = vperm.slane %v258, 0
    %vm277 = vcmask 261120
    %v279 = vsel %vm277, %v202, 0
    %v282 = vsel %vm277, %v203, 0
    %v285 = vsel %vm277, %v204, 0
    %v288 = vsel %vm277, %v205, 0
    %v291 = vsel %vm277, %v206, 0
    %v294 = vsel %vm277, %v207, 0
    %v297 = vsel %vm277, %v208, 0
    %v300 = vsel %vm277, %v209, 0
    %302 = vmatpush.msra.mxu0 0.0
    %303 = vmatpush.msra.mxu0 0.0
    %304 = vmatpush.msra.mxu0 0.0
    %305 = vmatpush.msra.mxu0 0.0
    %306 = vmatpush.msra.mxu0 0.0
    %307 = vmatpush.msra.mxu0 0.0
    %308 = vmatpush.msra.mxu0 0.0
    %309 = vmatpush.msra.mxu0 0.0
    %310 = vmatpush.msra.mxu0 0.0
    %311 = vmatpush.msra.mxu0 0.0
    %312 = vmatpush.msra.mxu0 0.0
    %313 = vmatpush.msra.mxu0 0.0
    %314 = vmatpush.msra.mxu0 %v213
    %315 = vmatpush.msra.mxu0 %v212
    %316 = vmatpush.msra.mxu0 %v211
    %317 = vmatpush.msra.mxu0 %v210
    %318 = vmatmul.f32.gmra.mxu0 %v279
    %v319 = vpop.f32.mrf.mxu0
    %v320 = vadd.f32 %v275, %v319
    %321 = vmatmul.f32.gmra.mxu0 %v282
    %v322 = vpop.f32.mrf.mxu0
    %v323 = vadd.f32 %v275, %v322
    %324 = vmatmul.f32.gmra.mxu0 %v285
    %v325 = vpop.f32.mrf.mxu0
    %v326 = vadd.f32 %v275, %v325
    %327 = vmatmul.f32.gmra.mxu0 %v288
    %v328 = vpop.f32.mrf.mxu0
    %v329 = vadd.f32 %v275, %v328
    %330 = vmatmul.f32.gmra.mxu0 %v291
    %v331 = vpop.f32.mrf.mxu0
    %v332 = vadd.f32 %v275, %v331
    %333 = vmatmul.f32.gmra.mxu0 %v294
    %v334 = vpop.f32.mrf.mxu0
    %v335 = vadd.f32 %v275, %v334
    %336 = vmatmul.f32.gmra.mxu0 %v297
    %v337 = vpop.f32.mrf.mxu0
    %v338 = vadd.f32 %v275, %v337
    %339 = vmatmul.f32.gmra.mxu0 %v300
    %v340 = vpop.f32.mrf.mxu0
    %v341 = vadd.f32 %v275, %v340
    %342 = vdwg.mxu0
    %v344 = vperm.slane %v262, 0
    %346 = vmatpush.msra.mxu0 0.0
    %347 = vmatpush.msra.mxu0 0.0
    %348 = vmatpush.msra.mxu0 0.0
    %349 = vmatpush.msra.mxu0 0.0
    %350 = vmatpush.msra.mxu0 0.0
    %351 = vmatpush.msra.mxu0 0.0
    %352 = vmatpush.msra.mxu0 0.0
    %353 = vmatpush.msra.mxu0 0.0
    %354 = vmatpush.msra.mxu0 0.0
    %355 = vmatpush.msra.mxu0 0.0
    %356 = vmatpush.msra.mxu0 0.0
    %357 = vmatpush.msra.mxu0 0.0
    %358 = vmatpush.msra.mxu0 %v229
    %359 = vmatpush.msra.mxu0 %v228
    %360 = vmatpush.msra.mxu0 %v227
    %361 = vmatpush.msra.mxu0 %v226
    %362 = vmatmul.f32.gmra.mxu0 %v279
    %v363 = vpop.f32.mrf.mxu0
    %v364 = vadd.f32 %v344, %v363
    %365 = vmatmul.f32.gmra.mxu0 %v282
    %v366 = vpop.f32.mrf.mxu0
    %v367 = vadd.f32 %v344, %v366
    %368 = vmatmul.f32.gmra.mxu0 %v285
    %v369 = vpop.f32.mrf.mxu0
    %v370 = vadd.f32 %v344, %v369
    %371 = vmatmul.f32.gmra.mxu0 %v288
    %v372 = vpop.f32.mrf.mxu0
    %v373 = vadd.f32 %v344, %v372
    %374 = vmatmul.f32.gmra.mxu0 %v291
    %v375 = vpop.f32.mrf.mxu0
    %v376 = vadd.f32 %v344, %v375
    %377 = vmatmul.f32.gmra.mxu0 %v294
    %v378 = vpop.f32.mrf.mxu0
    %v379 = vadd.f32 %v344, %v378
    %380 = vmatmul.f32.gmra.mxu0 %v297
    %v381 = vpop.f32.mrf.mxu0
    %v382 = vadd.f32 %v344, %v381
    %383 = vmatmul.f32.gmra.mxu0 %v300
    %v384 = vpop.f32.mrf.mxu0
    %v385 = vadd.f32 %v344, %v384
    %386 = vdwg.mxu0
    %v388 = vperm.slane %v266, 0
    %390 = vmatpush.msra.mxu0 0.0
    %391 = vmatpush.msra.mxu0 0.0
    %392 = vmatpush.msra.mxu0 0.0
    %393 = vmatpush.msra.mxu0 0.0
    %394 = vmatpush.msra.mxu0 0.0
    %395 = vmatpush.msra.mxu0 0.0
    %396 = vmatpush.msra.mxu0 0.0
    %397 = vmatpush.msra.mxu0 0.0
    %398 = vmatpush.msra.mxu0 0.0
    %399 = vmatpush.msra.mxu0 0.0
    %400 = vmatpush.msra.mxu0 0.0
    %401 = vmatpush.msra.mxu0 0.0
    %402 = vmatpush.msra.mxu0 %v245
    %403 = vmatpush.msra.mxu0 %v244
    %404 = vmatpush.msra.mxu0 %v243
    %405 = vmatpush.msra.mxu0 %v242
    %406 = vmatmul.f32.gmra.mxu0 %v279
    %v407 = vpop.f32.mrf.mxu0
    %v408 = vadd.f32 %v388, %v407
    %409 = vmatmul.f32.gmra.mxu0 %v282
    %v410 = vpop.f32.mrf.mxu0
    %v411 = vadd.f32 %v388, %v410
    %412 = vmatmul.f32.gmra.mxu0 %v285
    %v413 = vpop.f32.mrf.mxu0
    %v414 = vadd.f32 %v388, %v413
    %415 = vmatmul.f32.gmra.mxu0 %v288
    %v416 = vpop.f32.mrf.mxu0
    %v417 = vadd.f32 %v388, %v416
    %418 = vmatmul.f32.gmra.mxu0 %v291
    %v419 = vpop.f32.mrf.mxu0
    %v420 = vadd.f32 %v388, %v419
    %421 = vmatmul.f32.gmra.mxu0 %v294
    %v422 = vpop.f32.mrf.mxu0
    %v423 = vadd.f32 %v388, %v422
    %424 = vmatmul.f32.gmra.mxu0 %v297
    %v425 = vpop.f32.mrf.mxu0
    %v426 = vadd.f32 %v388, %v425
    %427 = vmatmul.f32.gmra.mxu0 %v300
    %v428 = vpop.f32.mrf.mxu0
    %v429 = vadd.f32 %v388, %v428
    %430 = vdwg.mxu0
    %vm431 = vcmask 64512
    %v433 = vsel %vm431, %v320, 0
    %v436 = vsel %vm431, %v364, 0
    %438 = vmatpush.xpose.msra.mxu0 0.0
    %439 = vmatpush.xpose.msra.mxu0 0.0
    %440 = vmatpush.xpose.msra.mxu0 0.0
    %441 = vmatpush.xpose.msra.mxu0 0.0
    %442 = vmatpush.xpose.msra.mxu0 0.0
    %443 = vmatpush.xpose.msra.mxu0 0.0
    %444 = vmatpush.xpose.msra.mxu0 0.0
    %445 = vmatpush.xpose.msra.mxu0 0.0
    %446 = vmatpush.xpose.msra.mxu0 0.0
    %447 = vmatpush.xpose.msra.mxu0 0.0
    %448 = vmatpush.xpose.msra.mxu0 0.0
    %449 = vmatpush.xpose.msra.mxu0 0.0
    %450 = vmatpush.xpose.msra.mxu0 0.0
    %451 = vmatpush.xpose.msra.mxu0 0.0
    %452 = vmatpush.xpose.msra.mxu0 0.0
    %453 = vmatpush.xpose.msra.mxu0 %v436
    %454 = vmatmul.f32.gmra.mxu0 %v433
    %v455 = vpop.f32.mrf.mxu0
    %v456 = vadd.f32 0.0, %v455
    %457 = vdwg.mxu0
    %v459 = vsel %vm431, %v323, 0
    %v462 = vsel %vm431, %v367, 0
    %464 = vmatpush.xpose.msra.mxu0 0.0
    %465 = vmatpush.xpose.msra.mxu0 0.0
    %466 = vmatpush.xpose.msra.mxu0 0.0
    %467 = vmatpush.xpose.msra.mxu0 0.0
    %468 = vmatpush.xpose.msra.mxu0 0.0
    %469 = vmatpush.xpose.msra.mxu0 0.0
    %470 = vmatpush.xpose.msra.mxu0 0.0
    %471 = vmatpush.xpose.msra.mxu0 0.0
    %472 = vmatpush.xpose.msra.mxu0 0.0
    %473 = vmatpush.xpose.msra.mxu0 0.0
    %474 = vmatpush.xpose.msra.mxu0 0.0
    %475 = vmatpush.xpose.msra.mxu0 0.0
    %476 = vmatpush.xpose.msra.mxu0 0.0
    %477 = vmatpush.xpose.msra.mxu0 0.0
    %478 = vmatpush.xpose.msra.mxu0 0.0
    %479 = vmatpush.xpose.msra.mxu0 %v462
    %480 = vmatmul.f32.gmra.mxu0 %v459
    %v481 = vpop.f32.mrf.mxu0
    %v482 = vadd.f32 0.0, %v481
    %483 = vdwg.mxu0
    %v485 = vsel %vm431, %v326, 0
    %v488 = vsel %vm431, %v370, 0
    %490 = vmatpush.xpose.msra.mxu0 0.0
    %491 = vmatpush.xpose.msra.mxu0 0.0
    %492 = vmatpush.xpose.msra.mxu0 0.0
    %493 = vmatpush.xpose.msra.mxu0 0.0
    %494 = vmatpush.xpose.msra.mxu0 0.0
    %495 = vmatpush.xpose.msra.mxu0 0.0
    %496 = vmatpush.xpose.msra.mxu0 0.0
    %497 = vmatpush.xpose.msra.mxu0 0.0
    %498 = vmatpush.xpose.msra.mxu0 0.0
    %499 = vmatpush.xpose.msra.mxu0 0.0
    %500 = vmatpush.xpose.msra.mxu0 0.0
    %501 = vmatpush.xpose.msra.mxu0 0.0
    %502 = vmatpush.xpose.msra.mxu0 0.0
    %503 = vmatpush.xpose.msra.mxu0 0.0
    %504 = vmatpush.xpose.msra.mxu0 0.0
    %505 = vmatpush.xpose.msra.mxu0 %v488
    %506 = vmatmul.f32.gmra.mxu0 %v485
    %v507 = vpop.f32.mrf.mxu0
    %v508 = vadd.f32 0.0, %v507
    %509 = vdwg.mxu0
    %v511 = vsel %vm431, %v329, 0
    %v514 = vsel %vm431, %v373, 0
    %516 = vmatpush.xpose.msra.mxu0 0.0
    %517 = vmatpush.xpose.msra.mxu0 0.0
    %518 = vmatpush.xpose.msra.mxu0 0.0
    %519 = vmatpush.xpose.msra.mxu0 0.0
    %520 = vmatpush.xpose.msra.mxu0 0.0
    %521 = vmatpush.xpose.msra.mxu0 0.0
    %522 = vmatpush.xpose.msra.mxu0 0.0
    %523 = vmatpush.xpose.msra.mxu0 0.0
    %524 = vmatpush.xpose.msra.mxu0 0.0
    %525 = vmatpush.xpose.msra.mxu0 0.0
    %526 = vmatpush.xpose.msra.mxu0 0.0
    %527 = vmatpush.xpose.msra.mxu0 0.0
    %528 = vmatpush.xpose.msra.mxu0 0.0
    %529 = vmatpush.xpose.msra.mxu0 0.0
    %530 = vmatpush.xpose.msra.mxu0 0.0
    %531 = vmatpush.xpose.msra.mxu0 %v514
    %532 = vmatmul.f32.gmra.mxu0 %v511
    %v533 = vpop.f32.mrf.mxu0
    %v534 = vadd.f32 0.0, %v533
    %535 = vdwg.mxu0
    %v537 = vsel %vm431, %v332, 0
    %v540 = vsel %vm431, %v376, 0
    %542 = vmatpush.xpose.msra.mxu0 0.0
    %543 = vmatpush.xpose.msra.mxu0 0.0
    %544 = vmatpush.xpose.msra.mxu0 0.0
    %545 = vmatpush.xpose.msra.mxu0 0.0
    %546 = vmatpush.xpose.msra.mxu0 0.0
    %547 = vmatpush.xpose.msra.mxu0 0.0
    %548 = vmatpush.xpose.msra.mxu0 0.0
    %549 = vmatpush.xpose.msra.mxu0 0.0
    %550 = vmatpush.xpose.msra.mxu0 0.0
    %551 = vmatpush.xpose.msra.mxu0 0.0
    %552 = vmatpush.xpose.msra.mxu0 0.0
    %553 = vmatpush.xpose.msra.mxu0 0.0
    %554 = vmatpush.xpose.msra.mxu0 0.0
    %555 = vmatpush.xpose.msra.mxu0 0.0
    %556 = vmatpush.xpose.msra.mxu0 0.0
    %557 = vmatpush.xpose.msra.mxu0 %v540
    %558 = vmatmul.f32.gmra.mxu0 %v537
    %v559 = vpop.f32.mrf.mxu0
    %v560 = vadd.f32 0.0, %v559
    %561 = vdwg.mxu0
    %v563 = vsel %vm431, %v335, 0
    %v566 = vsel %vm431, %v379, 0
    %568 = vmatpush.xpose.msra.mxu0 0.0
    %569 = vmatpush.xpose.msra.mxu0 0.0
    %570 = vmatpush.xpose.msra.mxu0 0.0
    %571 = vmatpush.xpose.msra.mxu0 0.0
    %572 = vmatpush.xpose.msra.mxu0 0.0
    %573 = vmatpush.xpose.msra.mxu0 0.0
    %574 = vmatpush.xpose.msra.mxu0 0.0
    %575 = vmatpush.xpose.msra.mxu0 0.0
    %576 = vmatpush.xpose.msra.mxu0 0.0
    %577 = vmatpush.xpose.msra.mxu0 0.0
    %578 = vmatpush.xpose.msra.mxu0 0.0
    %579 = vmatpush.xpose.msra.mxu0 0.0
    %580 = vmatpush.xpose.msra.mxu0 0.0
    %581 = vmatpush.xpose.msra.mxu0 0.0
    %582 = vmatpush.xpose.msra.mxu0 0.0
    %583 = vmatpush.xpose.msra.mxu0 %v566
    %584 = vmatmul.f32.gmra.mxu0 %v563
    %v585 = vpop.f32.mrf.mxu0
    %v586 = vadd.f32 0.0, %v585
    %587 = vdwg.mxu0
    %v589 = vsel %vm431, %v338, 0
    %v592 = vsel %vm431, %v382, 0
    %594 = vmatpush.xpose.msra.mxu0 0.0
    %595 = vmatpush.xpose.msra.mxu0 0.0
    %596 = vmatpush.xpose.msra.mxu0 0.0
    %597 = vmatpush.xpose.msra.mxu0 0.0
    %598 = vmatpush.xpose.msra.mxu0 0.0
    %599 = vmatpush.xpose.msra.mxu0 0.0
    %600 = vmatpush.xpose.msra.mxu0 0.0
    %601 = vmatpush.xpose.msra.mxu0 0.0
    %602 = vmatpush.xpose.msra.mxu0 0.0
    %603 = vmatpush.xpose.msra.mxu0 0.0
    %604 = vmatpush.xpose.msra.mxu0 0.0
    %605 = vmatpush.xpose.msra.mxu0 0.0
    %606 = vmatpush.xpose.msra.mxu0 0.0
    %607 = vmatpush.xpose.msra.mxu0 0.0
    %608 = vmatpush.xpose.msra.mxu0 0.0
    %609 = vmatpush.xpose.msra.mxu0 %v592
    %610 = vmatmul.f32.gmra.mxu0 %v589
    %v611 = vpop.f32.mrf.mxu0
    %v612 = vadd.f32 0.0, %v611
    %613 = vdwg.mxu0
    %v615 = vsel %vm431, %v341, 0
    %v618 = vsel %vm431, %v385, 0
    %620 = vmatpush.xpose.msra.mxu0 0.0
    %621 = vmatpush.xpose.msra.mxu0 0.0
    %622 = vmatpush.xpose.msra.mxu0 0.0
    %623 = vmatpush.xpose.msra.mxu0 0.0
    %624 = vmatpush.xpose.msra.mxu0 0.0
    %625 = vmatpush.xpose.msra.mxu0 0.0
    %626 = vmatpush.xpose.msra.mxu0 0.0
    %627 = vmatpush.xpose.msra.mxu0 0.0
    %628 = vmatpush.xpose.msra.mxu0 0.0
    %629 = vmatpush.xpose.msra.mxu0 0.0
    %630 = vmatpush.xpose.msra.mxu0 0.0
    %631 = vmatpush.xpose.msra.mxu0 0.0
    %632 = vmatpush.xpose.msra.mxu0 0.0
    %633 = vmatpush.xpose.msra.mxu0 0.0
    %634 = vmatpush.xpose.msra.mxu0 0.0
    %635 = vmatpush.xpose.msra.mxu0 %v618
    %636 = vmatmul.f32.gmra.mxu0 %v615
    %v637 = vpop.f32.mrf.mxu0
    %v638 = vadd.f32 0.0, %v637
    %639 = vdwg.mxu0
    %v640 = vmul.f32 %v456, 0.35355338
    %v641 = vmul.f32 %v482, 0.35355338
    %v642 = vmul.f32 %v508, 0.35355338
    %v643 = vmul.f32 %v534, 0.35355338
    %v644 = vmul.f32 %v560, 0.35355338
    %v645 = vmul.f32 %v586, 0.35355338
    %v646 = vmul.f32 %v612, 0.35355338
    %v647 = vmul.f32 %v638, 0.35355338
    %v648 = vsel %vm431, %v640, -inf
    %649 = vmax.xlane.f32.xlu0 %v648
    %v650 = vpop.xlane.xlu0 %649
    %v651 = vsel %vm431, %v641, -inf
    %652 = vmax.xlane.f32.xlu0 %v651
    %v653 = vpop.xlane.xlu0 %652
    %v654 = vsel %vm431, %v642, -inf
    %655 = vmax.xlane.f32.xlu0 %v654
    %v656 = vpop.xlane.xlu0 %655
    %v657 = vsel %vm431, %v643, -inf
    %658 = vmax.xlane.f32.xlu0 %v657
    %v659 = vpop.xlane.xlu0 %658
    %v660 = vsel %vm431, %v644, -inf
    %661 = vmax.xlane.f32.xlu0 %v660
    %v662 = vpop.xlane.xlu0 %661
    %v663 = vsel %vm431, %v645, -inf
    %664 = vmax.xlane.f32.xlu0 %v663
    %v665 = vpop.xlane.xlu0 %664
    %v666 = vsel %vm431, %v646, -inf
    %667 = vmax.xlane.f32.xlu0 %v666
    %v668 = vpop.xlane.xlu0 %667
    %v669 = vsel %vm431, %v647, -inf
    %670 = vmax.xlane.f32.xlu0 %v669
    %v671 = vpop.xlane.xlu0 %670
    %v672 = vsub.f32 %v640, %v650
    %v673 = vsub.f32 %v641, %v653
    %v674 = vsub.f32 %v642, %v656
    %v675 = vsub.f32 %v643, %v659
    %v676 = vsub.f32 %v644, %v662
    %v677 = vsub.f32 %v645, %v665
    %v678 = vsub.f32 %v646, %v668
    %v679 = vsub.f32 %v647, %v671
    %v680 = vmul.f32 %v672, 1.442695
    %v681 = vpow.pop %v680
    %v682 = vmul.f32 %v673, 1.442695
    %v683 = vpow.pop %v682
    %v684 = vmul.f32 %v674, 1.442695
    %v685 = vpow.pop %v684
    %v686 = vmul.f32 %v675, 1.442695
    %v687 = vpow.pop %v686
    %v688 = vmul.f32 %v676, 1.442695
    %v689 = vpow.pop %v688
    %v690 = vmul.f32 %v677, 1.442695
    %v691 = vpow.pop %v690
    %v692 = vmul.f32 %v678, 1.442695
    %v693 = vpow.pop %v692
    %v694 = vmul.f32 %v679, 1.442695
    %v695 = vpow.pop %v694
    %v696 = vsel %vm431, %v681, 0.0
    %697 = vadd.xlane.f32.xlu0 %v696
    %v698 = vpop.xlane.xlu0 %697
    %v699 = vsel %vm431, %v683, 0.0
    %700 = vadd.xlane.f32.xlu0 %v699
    %v701 = vpop.xlane.xlu0 %700
    %v702 = vsel %vm431, %v685, 0.0
    %703 = vadd.xlane.f32.xlu0 %v702
    %v704 = vpop.xlane.xlu0 %703
    %v705 = vsel %vm431, %v687, 0.0
    %706 = vadd.xlane.f32.xlu0 %v705
    %v707 = vpop.xlane.xlu0 %706
    %v708 = vsel %vm431, %v689, 0.0
    %709 = vadd.xlane.f32.xlu0 %v708
    %v710 = vpop.xlane.xlu0 %709
    %v711 = vsel %vm431, %v691, 0.0
    %712 = vadd.xlane.f32.xlu0 %v711
    %v713 = vpop.xlane.xlu0 %712
    %v714 = vsel %vm431, %v693, 0.0
    %715 = vadd.xlane.f32.xlu0 %v714
    %v716 = vpop.xlane.xlu0 %715
    %v717 = vsel %vm431, %v695, 0.0
    %718 = vadd.xlane.f32.xlu0 %v717
    %v719 = vpop.xlane.xlu0 %718
    %v720 = vrcp.pop %v698
    %v721 = vrcp.pop %v701
    %v722 = vrcp.pop %v704
    %v723 = vrcp.pop %v707
    %v724 = vrcp.pop %v710
    %v725 = vrcp.pop %v713
    %v726 = vrcp.pop %v716
    %v727 = vrcp.pop %v719
    %v728 = vmul.f32 %v681, %v720
    %v729 = vmul.f32 %v683, %v721
    %v730 = vmul.f32 %v685, %v722
    %v731 = vmul.f32 %v687, %v723
    %v732 = vmul.f32 %v689, %v724
    %v733 = vmul.f32 %v691, %v725
    %v734 = vmul.f32 %v693, %v726
    %v735 = vmul.f32 %v695, %v727
    %v737 = vsel %vm431, %v728, 0
    %739 = vmatpush.msra.mxu0 0.0
    %740 = vmatpush.msra.mxu0 0.0
    %741 = vmatpush.msra.mxu0 0.0
    %742 = vmatpush.msra.mxu0 0.0
    %743 = vmatpush.msra.mxu0 0.0
    %744 = vmatpush.msra.mxu0 0.0
    %745 = vmatpush.msra.mxu0 0.0
    %746 = vmatpush.msra.mxu0 0.0
    %747 = vmatpush.msra.mxu0 0.0
    %748 = vmatpush.msra.mxu0 0.0
    %749 = vmatpush.msra.mxu0 0.0
    %750 = vmatpush.msra.mxu0 0.0
    %751 = vmatpush.msra.mxu0 0.0
    %752 = vmatpush.msra.mxu0 0.0
    %753 = vmatpush.msra.mxu0 0.0
    %754 = vmatpush.msra.mxu0 %v408
    %755 = vmatmul.f32.gmra.mxu0 %v737
    %v756 = vpop.f32.mrf.mxu0
    %v757 = vadd.f32 0.0, %v756
    %758 = vdwg.mxu0
    %v760 = vsel %vm431, %v729, 0
    %762 = vmatpush.msra.mxu0 0.0
    %763 = vmatpush.msra.mxu0 0.0
    %764 = vmatpush.msra.mxu0 0.0
    %765 = vmatpush.msra.mxu0 0.0
    %766 = vmatpush.msra.mxu0 0.0
    %767 = vmatpush.msra.mxu0 0.0
    %768 = vmatpush.msra.mxu0 0.0
    %769 = vmatpush.msra.mxu0 0.0
    %770 = vmatpush.msra.mxu0 0.0
    %771 = vmatpush.msra.mxu0 0.0
    %772 = vmatpush.msra.mxu0 0.0
    %773 = vmatpush.msra.mxu0 0.0
    %774 = vmatpush.msra.mxu0 0.0
    %775 = vmatpush.msra.mxu0 0.0
    %776 = vmatpush.msra.mxu0 0.0
    %777 = vmatpush.msra.mxu0 %v411
    %778 = vmatmul.f32.gmra.mxu0 %v760
    %v779 = vpop.f32.mrf.mxu0
    %v780 = vadd.f32 0.0, %v779
    %781 = vdwg.mxu0
    %v783 = vsel %vm431, %v730, 0
    %785 = vmatpush.msra.mxu0 0.0
    %786 = vmatpush.msra.mxu0 0.0
    %787 = vmatpush.msra.mxu0 0.0
    %788 = vmatpush.msra.mxu0 0.0
    %789 = vmatpush.msra.mxu0 0.0
    %790 = vmatpush.msra.mxu0 0.0
    %791 = vmatpush.msra.mxu0 0.0
    %792 = vmatpush.msra.mxu0 0.0
    %793 = vmatpush.msra.mxu0 0.0
    %794 = vmatpush.msra.mxu0 0.0
    %795 = vmatpush.msra.mxu0 0.0
    %796 = vmatpush.msra.mxu0 0.0
    %797 = vmatpush.msra.mxu0 0.0
    %798 = vmatpush.msra.mxu0 0.0
    %799 = vmatpush.msra.mxu0 0.0
    %800 = vmatpush.msra.mxu0 %v414
    %801 = vmatmul.f32.gmra.mxu0 %v783
    %v802 = vpop.f32.mrf.mxu0
    %v803 = vadd.f32 0.0, %v802
    %804 = vdwg.mxu0
    %v806 = vsel %vm431, %v731, 0
    %808 = vmatpush.msra.mxu0 0.0
    %809 = vmatpush.msra.mxu0 0.0
    %810 = vmatpush.msra.mxu0 0.0
    %811 = vmatpush.msra.mxu0 0.0
    %812 = vmatpush.msra.mxu0 0.0
    %813 = vmatpush.msra.mxu0 0.0
    %814 = vmatpush.msra.mxu0 0.0
    %815 = vmatpush.msra.mxu0 0.0
    %816 = vmatpush.msra.mxu0 0.0
    %817 = vmatpush.msra.mxu0 0.0
    %818 = vmatpush.msra.mxu0 0.0
    %819 = vmatpush.msra.mxu0 0.0
    %820 = vmatpush.msra.mxu0 0.0
    %821 = vmatpush.msra.mxu0 0.0
    %822 = vmatpush.msra.mxu0 0.0
    %823 = vmatpush.msra.mxu0 %v417
    %824 = vmatmul.f32.gmra.mxu0 %v806
    %v825 = vpop.f32.mrf.mxu0
    %v826 = vadd.f32 0.0, %v825
    %827 = vdwg.mxu0
    %v829 = vsel %vm431, %v732, 0
    %831 = vmatpush.msra.mxu0 0.0
    %832 = vmatpush.msra.mxu0 0.0
    %833 = vmatpush.msra.mxu0 0.0
    %834 = vmatpush.msra.mxu0 0.0
    %835 = vmatpush.msra.mxu0 0.0
    %836 = vmatpush.msra.mxu0 0.0
    %837 = vmatpush.msra.mxu0 0.0
    %838 = vmatpush.msra.mxu0 0.0
    %839 = vmatpush.msra.mxu0 0.0
    %840 = vmatpush.msra.mxu0 0.0
    %841 = vmatpush.msra.mxu0 0.0
    %842 = vmatpush.msra.mxu0 0.0
    %843 = vmatpush.msra.mxu0 0.0
    %844 = vmatpush.msra.mxu0 0.0
    %845 = vmatpush.msra.mxu0 0.0
    %846 = vmatpush.msra.mxu0 %v420
    %847 = vmatmul.f32.gmra.mxu0 %v829
    %v848 = vpop.f32.mrf.mxu0
    %v849 = vadd.f32 0.0, %v848
    %850 = vdwg.mxu0
    %v852 = vsel %vm431, %v733, 0
    %854 = vmatpush.msra.mxu0 0.0
    %855 = vmatpush.msra.mxu0 0.0
    %856 = vmatpush.msra.mxu0 0.0
    %857 = vmatpush.msra.mxu0 0.0
    %858 = vmatpush.msra.mxu0 0.0
    %859 = vmatpush.msra.mxu0 0.0
    %860 = vmatpush.msra.mxu0 0.0
    %861 = vmatpush.msra.mxu0 0.0
    %862 = vmatpush.msra.mxu0 0.0
    %863 = vmatpush.msra.mxu0 0.0
    %864 = vmatpush.msra.mxu0 0.0
    %865 = vmatpush.msra.mxu0 0.0
    %866 = vmatpush.msra.mxu0 0.0
    %867 = vmatpush.msra.mxu0 0.0
    %868 = vmatpush.msra.mxu0 0.0
    %869 = vmatpush.msra.mxu0 %v423
    %870 = vmatmul.f32.gmra.mxu0 %v852
    %v871 = vpop.f32.mrf.mxu0
    %v872 = vadd.f32 0.0, %v871
    %873 = vdwg.mxu0
    %v875 = vsel %vm431, %v734, 0
    %877 = vmatpush.msra.mxu0 0.0
    %878 = vmatpush.msra.mxu0 0.0
    %879 = vmatpush.msra.mxu0 0.0
    %880 = vmatpush.msra.mxu0 0.0
    %881 = vmatpush.msra.mxu0 0.0
    %882 = vmatpush.msra.mxu0 0.0
    %883 = vmatpush.msra.mxu0 0.0
    %884 = vmatpush.msra.mxu0 0.0
    %885 = vmatpush.msra.mxu0 0.0
    %886 = vmatpush.msra.mxu0 0.0
    %887 = vmatpush.msra.mxu0 0.0
    %888 = vmatpush.msra.mxu0 0.0
    %889 = vmatpush.msra.mxu0 0.0
    %890 = vmatpush.msra.mxu0 0.0
    %891 = vmatpush.msra.mxu0 0.0
    %892 = vmatpush.msra.mxu0 %v426
    %893 = vmatmul.f32.gmra.mxu0 %v875
    %v894 = vpop.f32.mrf.mxu0
    %v895 = vadd.f32 0.0, %v894
    %896 = vdwg.mxu0
    %v898 = vsel %vm431, %v735, 0
    %900 = vmatpush.msra.mxu0 0.0
    %901 = vmatpush.msra.mxu0 0.0
    %902 = vmatpush.msra.mxu0 0.0
    %903 = vmatpush.msra.mxu0 0.0
    %904 = vmatpush.msra.mxu0 0.0
    %905 = vmatpush.msra.mxu0 0.0
    %906 = vmatpush.msra.mxu0 0.0
    %907 = vmatpush.msra.mxu0 0.0
    %908 = vmatpush.msra.mxu0 0.0
    %909 = vmatpush.msra.mxu0 0.0
    %910 = vmatpush.msra.mxu0 0.0
    %911 = vmatpush.msra.mxu0 0.0
    %912 = vmatpush.msra.mxu0 0.0
    %913 = vmatpush.msra.mxu0 0.0
    %914 = vmatpush.msra.mxu0 0.0
    %915 = vmatpush.msra.mxu0 %v429
    %916 = vmatmul.f32.gmra.mxu0 %v898
    %v917 = vpop.f32.mrf.mxu0
    %v918 = vadd.f32 0.0, %v917
    %919 = vdwg.mxu0
    %v921 = vperm.slane %v259, 0
    %923 = vmatpush.msra.mxu0 0.0
    %924 = vmatpush.msra.mxu0 0.0
    %925 = vmatpush.msra.mxu0 0.0
    %926 = vmatpush.msra.mxu0 0.0
    %927 = vmatpush.msra.mxu0 0.0
    %928 = vmatpush.msra.mxu0 0.0
    %929 = vmatpush.msra.mxu0 0.0
    %930 = vmatpush.msra.mxu0 0.0
    %931 = vmatpush.msra.mxu0 0.0
    %932 = vmatpush.msra.mxu0 0.0
    %933 = vmatpush.msra.mxu0 0.0
    %934 = vmatpush.msra.mxu0 0.0
    %935 = vmatpush.msra.mxu0 %v217
    %936 = vmatpush.msra.mxu0 %v216
    %937 = vmatpush.msra.mxu0 %v215
    %938 = vmatpush.msra.mxu0 %v214
    %939 = vmatmul.f32.gmra.mxu0 %v279
    %v940 = vpop.f32.mrf.mxu0
    %v941 = vadd.f32 %v921, %v940
    %942 = vmatmul.f32.gmra.mxu0 %v282
    %v943 = vpop.f32.mrf.mxu0
    %v944 = vadd.f32 %v921, %v943
    %945 = vmatmul.f32.gmra.mxu0 %v285
    %v946 = vpop.f32.mrf.mxu0
    %v947 = vadd.f32 %v921, %v946
    %948 = vmatmul.f32.gmra.mxu0 %v288
    %v949 = vpop.f32.mrf.mxu0
    %v950 = vadd.f32 %v921, %v949
    %951 = vmatmul.f32.gmra.mxu0 %v291
    %v952 = vpop.f32.mrf.mxu0
    %v953 = vadd.f32 %v921, %v952
    %954 = vmatmul.f32.gmra.mxu0 %v294
    %v955 = vpop.f32.mrf.mxu0
    %v956 = vadd.f32 %v921, %v955
    %957 = vmatmul.f32.gmra.mxu0 %v297
    %v958 = vpop.f32.mrf.mxu0
    %v959 = vadd.f32 %v921, %v958
    %960 = vmatmul.f32.gmra.mxu0 %v300
    %v961 = vpop.f32.mrf.mxu0
    %v962 = vadd.f32 %v921, %v961
    %963 = vdwg.mxu0
    %v965 = vperm.slane %v263, 0
    %967 = vmatpush.msra.mxu0 0.0
    %968 = vmatpush.msra.mxu0 0.0
    %969 = vmatpush.msra.mxu0 0.0
    %970 = vmatpush.msra.mxu0 0.0
    %971 = vmatpush.msra.mxu0 0.0
    %972 = vmatpush.msra.mxu0 0.0
    %973 = vmatpush.msra.mxu0 0.0
    %974 = vmatpush.msra.mxu0 0.0
    %975 = vmatpush.msra.mxu0 0.0
    %976 = vmatpush.msra.mxu0 0.0
    %977 = vmatpush.msra.mxu0 0.0
    %978 = vmatpush.msra.mxu0 0.0
    %979 = vmatpush.msra.mxu0 %v233
    %980 = vmatpush.msra.mxu0 %v232
    %981 = vmatpush.msra.mxu0 %v231
    %982 = vmatpush.msra.mxu0 %v230
    %983 = vmatmul.f32.gmra.mxu0 %v279
    %v984 = vpop.f32.mrf.mxu0
    %v985 = vadd.f32 %v965, %v984
    %986 = vmatmul.f32.gmra.mxu0 %v282
    %v987 = vpop.f32.mrf.mxu0
    %v988 = vadd.f32 %v965, %v987
    %989 = vmatmul.f32.gmra.mxu0 %v285
    %v990 = vpop.f32.mrf.mxu0
    %v991 = vadd.f32 %v965, %v990
    %992 = vmatmul.f32.gmra.mxu0 %v288
    %v993 = vpop.f32.mrf.mxu0
    %v994 = vadd.f32 %v965, %v993
    %995 = vmatmul.f32.gmra.mxu0 %v291
    %v996 = vpop.f32.mrf.mxu0
    %v997 = vadd.f32 %v965, %v996
    %998 = vmatmul.f32.gmra.mxu0 %v294
    %v999 = vpop.f32.mrf.mxu0
    %v1000 = vadd.f32 %v965, %v999
    %1001 = vmatmul.f32.gmra.mxu0 %v297
    %v1002 = vpop.f32.mrf.mxu0
    %v1003 = vadd.f32 %v965, %v1002
    %1004 = vmatmul.f32.gmra.mxu0 %v300
    %v1005 = vpop.f32.mrf.mxu0
    %v1006 = vadd.f32 %v965, %v1005
    %1007 = vdwg.mxu0
    %v1009 = vperm.slane %v267, 0
    %1011 = vmatpush.msra.mxu0 0.0
    %1012 = vmatpush.msra.mxu0 0.0
    %1013 = vmatpush.msra.mxu0 0.0
    %1014 = vmatpush.msra.mxu0 0.0
    %1015 = vmatpush.msra.mxu0 0.0
    %1016 = vmatpush.msra.mxu0 0.0
    %1017 = vmatpush.msra.mxu0 0.0
    %1018 = vmatpush.msra.mxu0 0.0
    %1019 = vmatpush.msra.mxu0 0.0
    %1020 = vmatpush.msra.mxu0 0.0
    %1021 = vmatpush.msra.mxu0 0.0
    %1022 = vmatpush.msra.mxu0 0.0
    %1023 = vmatpush.msra.mxu0 %v249
    %1024 = vmatpush.msra.mxu0 %v248
    %1025 = vmatpush.msra.mxu0 %v247
    %1026 = vmatpush.msra.mxu0 %v246
    %1027 = vmatmul.f32.gmra.mxu0 %v279
    %v1028 = vpop.f32.mrf.mxu0
    %v1029 = vadd.f32 %v1009, %v1028
    %1030 = vmatmul.f32.gmra.mxu0 %v282
    %v1031 = vpop.f32.mrf.mxu0
    %v1032 = vadd.f32 %v1009, %v1031
    %1033 = vmatmul.f32.gmra.mxu0 %v285
    %v1034 = vpop.f32.mrf.mxu0
    %v1035 = vadd.f32 %v1009, %v1034
    %1036 = vmatmul.f32.gmra.mxu0 %v288
    %v1037 = vpop.f32.mrf.mxu0
    %v1038 = vadd.f32 %v1009, %v1037
    %1039 = vmatmul.f32.gmra.mxu0 %v291
    %v1040 = vpop.f32.mrf.mxu0
    %v1041 = vadd.f32 %v1009, %v1040
    %1042 = vmatmul.f32.gmra.mxu0 %v294
    %v1043 = vpop.f32.mrf.mxu0
    %v1044 = vadd.f32 %v1009, %v1043
    %1045 = vmatmul.f32.gmra.mxu0 %v297
    %v1046 = vpop.f32.mrf.mxu0
    %v1047 = vadd.f32 %v1009, %v1046
    %1048 = vmatmul.f32.gmra.mxu0 %v300
    %v1049 = vpop.f32.mrf.mxu0
    %v1050 = vadd.f32 %v1009, %v1049
    %1051 = vdwg.mxu0
    %v1053 = vsel %vm431, %v941, 0
    %v1056 = vsel %vm431, %v985, 0
    %1058 = vmatpush.xpose.msra.mxu0 0.0
    %1059 = vmatpush.xpose.msra.mxu0 0.0
    %1060 = vmatpush.xpose.msra.mxu0 0.0
    %1061 = vmatpush.xpose.msra.mxu0 0.0
    %1062 = vmatpush.xpose.msra.mxu0 0.0
    %1063 = vmatpush.xpose.msra.mxu0 0.0
    %1064 = vmatpush.xpose.msra.mxu0 0.0
    %1065 = vmatpush.xpose.msra.mxu0 0.0
    %1066 = vmatpush.xpose.msra.mxu0 0.0
    %1067 = vmatpush.xpose.msra.mxu0 0.0
    %1068 = vmatpush.xpose.msra.mxu0 0.0
    %1069 = vmatpush.xpose.msra.mxu0 0.0
    %1070 = vmatpush.xpose.msra.mxu0 0.0
    %1071 = vmatpush.xpose.msra.mxu0 0.0
    %1072 = vmatpush.xpose.msra.mxu0 0.0
    %1073 = vmatpush.xpose.msra.mxu0 %v1056
    %1074 = vmatmul.f32.gmra.mxu0 %v1053
    %v1075 = vpop.f32.mrf.mxu0
    %v1076 = vadd.f32 0.0, %v1075
    %1077 = vdwg.mxu0
    %v1079 = vsel %vm431, %v944, 0
    %v1082 = vsel %vm431, %v988, 0
    %1084 = vmatpush.xpose.msra.mxu0 0.0
    %1085 = vmatpush.xpose.msra.mxu0 0.0
    %1086 = vmatpush.xpose.msra.mxu0 0.0
    %1087 = vmatpush.xpose.msra.mxu0 0.0
    %1088 = vmatpush.xpose.msra.mxu0 0.0
    %1089 = vmatpush.xpose.msra.mxu0 0.0
    %1090 = vmatpush.xpose.msra.mxu0 0.0
    %1091 = vmatpush.xpose.msra.mxu0 0.0
    %1092 = vmatpush.xpose.msra.mxu0 0.0
    %1093 = vmatpush.xpose.msra.mxu0 0.0
    %1094 = vmatpush.xpose.msra.mxu0 0.0
    %1095 = vmatpush.xpose.msra.mxu0 0.0
    %1096 = vmatpush.xpose.msra.mxu0 0.0
    %1097 = vmatpush.xpose.msra.mxu0 0.0
    %1098 = vmatpush.xpose.msra.mxu0 0.0
    %1099 = vmatpush.xpose.msra.mxu0 %v1082
    %1100 = vmatmul.f32.gmra.mxu0 %v1079
    %v1101 = vpop.f32.mrf.mxu0
    %v1102 = vadd.f32 0.0, %v1101
    %1103 = vdwg.mxu0
    %v1105 = vsel %vm431, %v947, 0
    %v1108 = vsel %vm431, %v991, 0
    %1110 = vmatpush.xpose.msra.mxu0 0.0
    %1111 = vmatpush.xpose.msra.mxu0 0.0
    %1112 = vmatpush.xpose.msra.mxu0 0.0
    %1113 = vmatpush.xpose.msra.mxu0 0.0
    %1114 = vmatpush.xpose.msra.mxu0 0.0
    %1115 = vmatpush.xpose.msra.mxu0 0.0
    %1116 = vmatpush.xpose.msra.mxu0 0.0
    %1117 = vmatpush.xpose.msra.mxu0 0.0
    %1118 = vmatpush.xpose.msra.mxu0 0.0
    %1119 = vmatpush.xpose.msra.mxu0 0.0
    %1120 = vmatpush.xpose.msra.mxu0 0.0
    %1121 = vmatpush.xpose.msra.mxu0 0.0
    %1122 = vmatpush.xpose.msra.mxu0 0.0
    %1123 = vmatpush.xpose.msra.mxu0 0.0
    %1124 = vmatpush.xpose.msra.mxu0 0.0
    %1125 = vmatpush.xpose.msra.mxu0 %v1108
    %1126 = vmatmul.f32.gmra.mxu0 %v1105
    %v1127 = vpop.f32.mrf.mxu0
    %v1128 = vadd.f32 0.0, %v1127
    %1129 = vdwg.mxu0
    %v1131 = vsel %vm431, %v950, 0
    %v1134 = vsel %vm431, %v994, 0
    %1136 = vmatpush.xpose.msra.mxu0 0.0
    %1137 = vmatpush.xpose.msra.mxu0 0.0
    %1138 = vmatpush.xpose.msra.mxu0 0.0
    %1139 = vmatpush.xpose.msra.mxu0 0.0
    %1140 = vmatpush.xpose.msra.mxu0 0.0
    %1141 = vmatpush.xpose.msra.mxu0 0.0
    %1142 = vmatpush.xpose.msra.mxu0 0.0
    %1143 = vmatpush.xpose.msra.mxu0 0.0
    %1144 = vmatpush.xpose.msra.mxu0 0.0
    %1145 = vmatpush.xpose.msra.mxu0 0.0
    %1146 = vmatpush.xpose.msra.mxu0 0.0
    %1147 = vmatpush.xpose.msra.mxu0 0.0
    %1148 = vmatpush.xpose.msra.mxu0 0.0
    %1149 = vmatpush.xpose.msra.mxu0 0.0
    %1150 = vmatpush.xpose.msra.mxu0 0.0
    %1151 = vmatpush.xpose.msra.mxu0 %v1134
    %1152 = vmatmul.f32.gmra.mxu0 %v1131
    %v1153 = vpop.f32.mrf.mxu0
    %v1154 = vadd.f32 0.0, %v1153
    %1155 = vdwg.mxu0
    %v1157 = vsel %vm431, %v953, 0
    %v1160 = vsel %vm431, %v997, 0
    %1162 = vmatpush.xpose.msra.mxu0 0.0
    %1163 = vmatpush.xpose.msra.mxu0 0.0
    %1164 = vmatpush.xpose.msra.mxu0 0.0
    %1165 = vmatpush.xpose.msra.mxu0 0.0
    %1166 = vmatpush.xpose.msra.mxu0 0.0
    %1167 = vmatpush.xpose.msra.mxu0 0.0
    %1168 = vmatpush.xpose.msra.mxu0 0.0
    %1169 = vmatpush.xpose.msra.mxu0 0.0
    %1170 = vmatpush.xpose.msra.mxu0 0.0
    %1171 = vmatpush.xpose.msra.mxu0 0.0
    %1172 = vmatpush.xpose.msra.mxu0 0.0
    %1173 = vmatpush.xpose.msra.mxu0 0.0
    %1174 = vmatpush.xpose.msra.mxu0 0.0
    %1175 = vmatpush.xpose.msra.mxu0 0.0
    %1176 = vmatpush.xpose.msra.mxu0 0.0
    %1177 = vmatpush.xpose.msra.mxu0 %v1160
    %1178 = vmatmul.f32.gmra.mxu0 %v1157
    %v1179 = vpop.f32.mrf.mxu0
    %v1180 = vadd.f32 0.0, %v1179
    %1181 = vdwg.mxu0
    %v1183 = vsel %vm431, %v956, 0
    %v1186 = vsel %vm431, %v1000, 0
    %1188 = vmatpush.xpose.msra.mxu0 0.0
    %1189 = vmatpush.xpose.msra.mxu0 0.0
    %1190 = vmatpush.xpose.msra.mxu0 0.0
    %1191 = vmatpush.xpose.msra.mxu0 0.0
    %1192 = vmatpush.xpose.msra.mxu0 0.0
    %1193 = vmatpush.xpose.msra.mxu0 0.0
    %1194 = vmatpush.xpose.msra.mxu0 0.0
    %1195 = vmatpush.xpose.msra.mxu0 0.0
    %1196 = vmatpush.xpose.msra.mxu0 0.0
    %1197 = vmatpush.xpose.msra.mxu0 0.0
    %1198 = vmatpush.xpose.msra.mxu0 0.0
    %1199 = vmatpush.xpose.msra.mxu0 0.0
    %1200 = vmatpush.xpose.msra.mxu0 0.0
    %1201 = vmatpush.xpose.msra.mxu0 0.0
    %1202 = vmatpush.xpose.msra.mxu0 0.0
    %1203 = vmatpush.xpose.msra.mxu0 %v1186
    %1204 = vmatmul.f32.gmra.mxu0 %v1183
    %v1205 = vpop.f32.mrf.mxu0
    %v1206 = vadd.f32 0.0, %v1205
    %1207 = vdwg.mxu0
    %v1209 = vsel %vm431, %v959, 0
    %v1212 = vsel %vm431, %v1003, 0
    %1214 = vmatpush.xpose.msra.mxu0 0.0
    %1215 = vmatpush.xpose.msra.mxu0 0.0
    %1216 = vmatpush.xpose.msra.mxu0 0.0
    %1217 = vmatpush.xpose.msra.mxu0 0.0
    %1218 = vmatpush.xpose.msra.mxu0 0.0
    %1219 = vmatpush.xpose.msra.mxu0 0.0
    %1220 = vmatpush.xpose.msra.mxu0 0.0
    %1221 = vmatpush.xpose.msra.mxu0 0.0
    %1222 = vmatpush.xpose.msra.mxu0 0.0
    %1223 = vmatpush.xpose.msra.mxu0 0.0
    %1224 = vmatpush.xpose.msra.mxu0 0.0
    %1225 = vmatpush.xpose.msra.mxu0 0.0
    %1226 = vmatpush.xpose.msra.mxu0 0.0
    %1227 = vmatpush.xpose.msra.mxu0 0.0
    %1228 = vmatpush.xpose.msra.mxu0 0.0
    %1229 = vmatpush.xpose.msra.mxu0 %v1212
    %1230 = vmatmul.f32.gmra.mxu0 %v1209
    %v1231 = vpop.f32.mrf.mxu0
    %v1232 = vadd.f32 0.0, %v1231
    %1233 = vdwg.mxu0
    %v1235 = vsel %vm431, %v962, 0
    %v1238 = vsel %vm431, %v1006, 0
    %1240 = vmatpush.xpose.msra.mxu0 0.0
    %1241 = vmatpush.xpose.msra.mxu0 0.0
    %1242 = vmatpush.xpose.msra.mxu0 0.0
    %1243 = vmatpush.xpose.msra.mxu0 0.0
    %1244 = vmatpush.xpose.msra.mxu0 0.0
    %1245 = vmatpush.xpose.msra.mxu0 0.0
    %1246 = vmatpush.xpose.msra.mxu0 0.0
    %1247 = vmatpush.xpose.msra.mxu0 0.0
    %1248 = vmatpush.xpose.msra.mxu0 0.0
    %1249 = vmatpush.xpose.msra.mxu0 0.0
    %1250 = vmatpush.xpose.msra.mxu0 0.0
    %1251 = vmatpush.xpose.msra.mxu0 0.0
    %1252 = vmatpush.xpose.msra.mxu0 0.0
    %1253 = vmatpush.xpose.msra.mxu0 0.0
    %1254 = vmatpush.xpose.msra.mxu0 0.0
    %1255 = vmatpush.xpose.msra.mxu0 %v1238
    %1256 = vmatmul.f32.gmra.mxu0 %v1235
    %v1257 = vpop.f32.mrf.mxu0
    %v1258 = vadd.f32 0.0, %v1257
    %1259 = vdwg.mxu0
    %v1260 = vmul.f32 %v1076, 0.35355338
    %v1261 = vmul.f32 %v1102, 0.35355338
    %v1262 = vmul.f32 %v1128, 0.35355338
    %v1263 = vmul.f32 %v1154, 0.35355338
    %v1264 = vmul.f32 %v1180, 0.35355338
    %v1265 = vmul.f32 %v1206, 0.35355338
    %v1266 = vmul.f32 %v1232, 0.35355338
    %v1267 = vmul.f32 %v1258, 0.35355338
    %v1268 = vsel %vm431, %v1260, -inf
    %1269 = vmax.xlane.f32.xlu0 %v1268
    %v1270 = vpop.xlane.xlu0 %1269
    %v1271 = vsel %vm431, %v1261, -inf
    %1272 = vmax.xlane.f32.xlu0 %v1271
    %v1273 = vpop.xlane.xlu0 %1272
    %v1274 = vsel %vm431, %v1262, -inf
    %1275 = vmax.xlane.f32.xlu0 %v1274
    %v1276 = vpop.xlane.xlu0 %1275
    %v1277 = vsel %vm431, %v1263, -inf
    %1278 = vmax.xlane.f32.xlu0 %v1277
    %v1279 = vpop.xlane.xlu0 %1278
    %v1280 = vsel %vm431, %v1264, -inf
    %1281 = vmax.xlane.f32.xlu0 %v1280
    %v1282 = vpop.xlane.xlu0 %1281
    %v1283 = vsel %vm431, %v1265, -inf
    %1284 = vmax.xlane.f32.xlu0 %v1283
    %v1285 = vpop.xlane.xlu0 %1284
    %v1286 = vsel %vm431, %v1266, -inf
    %1287 = vmax.xlane.f32.xlu0 %v1286
    %v1288 = vpop.xlane.xlu0 %1287
    %v1289 = vsel %vm431, %v1267, -inf
    %1290 = vmax.xlane.f32.xlu0 %v1289
    %v1291 = vpop.xlane.xlu0 %1290
    %v1292 = vsub.f32 %v1260, %v1270
    %v1293 = vsub.f32 %v1261, %v1273
    %v1294 = vsub.f32 %v1262, %v1276
    %v1295 = vsub.f32 %v1263, %v1279
    %v1296 = vsub.f32 %v1264, %v1282
    %v1297 = vsub.f32 %v1265, %v1285
    %v1298 = vsub.f32 %v1266, %v1288
    %v1299 = vsub.f32 %v1267, %v1291
    %v1300 = vmul.f32 %v1292, 1.442695
    %v1301 = vpow.pop %v1300
    %v1302 = vmul.f32 %v1293, 1.442695
    %v1303 = vpow.pop %v1302
    %v1304 = vmul.f32 %v1294, 1.442695
    %v1305 = vpow.pop %v1304
    %v1306 = vmul.f32 %v1295, 1.442695
    %v1307 = vpow.pop %v1306
    %v1308 = vmul.f32 %v1296, 1.442695
    %v1309 = vpow.pop %v1308
    %v1310 = vmul.f32 %v1297, 1.442695
    %v1311 = vpow.pop %v1310
    %v1312 = vmul.f32 %v1298, 1.442695
    %v1313 = vpow.pop %v1312
    %v1314 = vmul.f32 %v1299, 1.442695
    %v1315 = vpow.pop %v1314
    %v1316 = vsel %vm431, %v1301, 0.0
    %1317 = vadd.xlane.f32.xlu0 %v1316
    %v1318 = vpop.xlane.xlu0 %1317
    %v1319 = vsel %vm431, %v1303, 0.0
    %1320 = vadd.xlane.f32.xlu0 %v1319
    %v1321 = vpop.xlane.xlu0 %1320
    %v1322 = vsel %vm431, %v1305, 0.0
    %1323 = vadd.xlane.f32.xlu0 %v1322
    %v1324 = vpop.xlane.xlu0 %1323
    %v1325 = vsel %vm431, %v1307, 0.0
    %1326 = vadd.xlane.f32.xlu0 %v1325
    %v1327 = vpop.xlane.xlu0 %1326
    %v1328 = vsel %vm431, %v1309, 0.0
    %1329 = vadd.xlane.f32.xlu0 %v1328
    %v1330 = vpop.xlane.xlu0 %1329
    %v1331 = vsel %vm431, %v1311, 0.0
    %1332 = vadd.xlane.f32.xlu0 %v1331
    %v1333 = vpop.xlane.xlu0 %1332
    %v1334 = vsel %vm431, %v1313, 0.0
    %1335 = vadd.xlane.f32.xlu0 %v1334
    %v1336 = vpop.xlane.xlu0 %1335
    %v1337 = vsel %vm431, %v1315, 0.0
    %1338 = vadd.xlane.f32.xlu0 %v1337
    %v1339 = vpop.xlane.xlu0 %1338
    %v1340 = vrcp.pop %v1318
    %v1341 = vrcp.pop %v1321
    %v1342 = vrcp.pop %v1324
    %v1343 = vrcp.pop %v1327
    %v1344 = vrcp.pop %v1330
    %v1345 = vrcp.pop %v1333
    %v1346 = vrcp.pop %v1336
    %v1347 = vrcp.pop %v1339
    %v1348 = vmul.f32 %v1301, %v1340
    %v1349 = vmul.f32 %v1303, %v1341
    %v1350 = vmul.f32 %v1305, %v1342
    %v1351 = vmul.f32 %v1307, %v1343
    %v1352 = vmul.f32 %v1309, %v1344
    %v1353 = vmul.f32 %v1311, %v1345
    %v1354 = vmul.f32 %v1313, %v1346
    %v1355 = vmul.f32 %v1315, %v1347
    %v1357 = vsel %vm431, %v1348, 0
    %1359 = vmatpush.msra.mxu0 0.0
    %1360 = vmatpush.msra.mxu0 0.0
    %1361 = vmatpush.msra.mxu0 0.0
    %1362 = vmatpush.msra.mxu0 0.0
    %1363 = vmatpush.msra.mxu0 0.0
    %1364 = vmatpush.msra.mxu0 0.0
    %1365 = vmatpush.msra.mxu0 0.0
    %1366 = vmatpush.msra.mxu0 0.0
    %1367 = vmatpush.msra.mxu0 0.0
    %1368 = vmatpush.msra.mxu0 0.0
    %1369 = vmatpush.msra.mxu0 0.0
    %1370 = vmatpush.msra.mxu0 0.0
    %1371 = vmatpush.msra.mxu0 0.0
    %1372 = vmatpush.msra.mxu0 0.0
    %1373 = vmatpush.msra.mxu0 0.0
    %1374 = vmatpush.msra.mxu0 %v1029
    %1375 = vmatmul.f32.gmra.mxu0 %v1357
    %v1376 = vpop.f32.mrf.mxu0
    %v1377 = vadd.f32 0.0, %v1376
    %1378 = vdwg.mxu0
    %v1380 = vsel %vm431, %v1349, 0
    %1382 = vmatpush.msra.mxu0 0.0
    %1383 = vmatpush.msra.mxu0 0.0
    %1384 = vmatpush.msra.mxu0 0.0
    %1385 = vmatpush.msra.mxu0 0.0
    %1386 = vmatpush.msra.mxu0 0.0
    %1387 = vmatpush.msra.mxu0 0.0
    %1388 = vmatpush.msra.mxu0 0.0
    %1389 = vmatpush.msra.mxu0 0.0
    %1390 = vmatpush.msra.mxu0 0.0
    %1391 = vmatpush.msra.mxu0 0.0
    %1392 = vmatpush.msra.mxu0 0.0
    %1393 = vmatpush.msra.mxu0 0.0
    %1394 = vmatpush.msra.mxu0 0.0
    %1395 = vmatpush.msra.mxu0 0.0
    %1396 = vmatpush.msra.mxu0 0.0
    %1397 = vmatpush.msra.mxu0 %v1032
    %1398 = vmatmul.f32.gmra.mxu0 %v1380
    %v1399 = vpop.f32.mrf.mxu0
    %v1400 = vadd.f32 0.0, %v1399
    %1401 = vdwg.mxu0
    %v1403 = vsel %vm431, %v1350, 0
    %1405 = vmatpush.msra.mxu0 0.0
    %1406 = vmatpush.msra.mxu0 0.0
    %1407 = vmatpush.msra.mxu0 0.0
    %1408 = vmatpush.msra.mxu0 0.0
    %1409 = vmatpush.msra.mxu0 0.0
    %1410 = vmatpush.msra.mxu0 0.0
    %1411 = vmatpush.msra.mxu0 0.0
    %1412 = vmatpush.msra.mxu0 0.0
    %1413 = vmatpush.msra.mxu0 0.0
    %1414 = vmatpush.msra.mxu0 0.0
    %1415 = vmatpush.msra.mxu0 0.0
    %1416 = vmatpush.msra.mxu0 0.0
    %1417 = vmatpush.msra.mxu0 0.0
    %1418 = vmatpush.msra.mxu0 0.0
    %1419 = vmatpush.msra.mxu0 0.0
    %1420 = vmatpush.msra.mxu0 %v1035
    %1421 = vmatmul.f32.gmra.mxu0 %v1403
    %v1422 = vpop.f32.mrf.mxu0
    %v1423 = vadd.f32 0.0, %v1422
    %1424 = vdwg.mxu0
    %v1426 = vsel %vm431, %v1351, 0
    %1428 = vmatpush.msra.mxu0 0.0
    %1429 = vmatpush.msra.mxu0 0.0
    %1430 = vmatpush.msra.mxu0 0.0
    %1431 = vmatpush.msra.mxu0 0.0
    %1432 = vmatpush.msra.mxu0 0.0
    %1433 = vmatpush.msra.mxu0 0.0
    %1434 = vmatpush.msra.mxu0 0.0
    %1435 = vmatpush.msra.mxu0 0.0
    %1436 = vmatpush.msra.mxu0 0.0
    %1437 = vmatpush.msra.mxu0 0.0
    %1438 = vmatpush.msra.mxu0 0.0
    %1439 = vmatpush.msra.mxu0 0.0
    %1440 = vmatpush.msra.mxu0 0.0
    %1441 = vmatpush.msra.mxu0 0.0
    %1442 = vmatpush.msra.mxu0 0.0
    %1443 = vmatpush.msra.mxu0 %v1038
    %1444 = vmatmul.f32.gmra.mxu0 %v1426
    %v1445 = vpop.f32.mrf.mxu0
    %v1446 = vadd.f32 0.0, %v1445
    %1447 = vdwg.mxu0
    %v1449 = vsel %vm431, %v1352, 0
    %1451 = vmatpush.msra.mxu0 0.0
    %1452 = vmatpush.msra.mxu0 0.0
    %1453 = vmatpush.msra.mxu0 0.0
    %1454 = vmatpush.msra.mxu0 0.0
    %1455 = vmatpush.msra.mxu0 0.0
    %1456 = vmatpush.msra.mxu0 0.0
    %1457 = vmatpush.msra.mxu0 0.0
    %1458 = vmatpush.msra.mxu0 0.0
    %1459 = vmatpush.msra.mxu0 0.0
    %1460 = vmatpush.msra.mxu0 0.0
    %1461 = vmatpush.msra.mxu0 0.0
    %1462 = vmatpush.msra.mxu0 0.0
    %1463 = vmatpush.msra.mxu0 0.0
    %1464 = vmatpush.msra.mxu0 0.0
    %1465 = vmatpush.msra.mxu0 0.0
    %1466 = vmatpush.msra.mxu0 %v1041
    %1467 = vmatmul.f32.gmra.mxu0 %v1449
    %v1468 = vpop.f32.mrf.mxu0
    %v1469 = vadd.f32 0.0, %v1468
    %1470 = vdwg.mxu0
    %v1472 = vsel %vm431, %v1353, 0
    %1474 = vmatpush.msra.mxu0 0.0
    %1475 = vmatpush.msra.mxu0 0.0
    %1476 = vmatpush.msra.mxu0 0.0
    %1477 = vmatpush.msra.mxu0 0.0
    %1478 = vmatpush.msra.mxu0 0.0
    %1479 = vmatpush.msra.mxu0 0.0
    %1480 = vmatpush.msra.mxu0 0.0
    %1481 = vmatpush.msra.mxu0 0.0
    %1482 = vmatpush.msra.mxu0 0.0
    %1483 = vmatpush.msra.mxu0 0.0
    %1484 = vmatpush.msra.mxu0 0.0
    %1485 = vmatpush.msra.mxu0 0.0
    %1486 = vmatpush.msra.mxu0 0.0
    %1487 = vmatpush.msra.mxu0 0.0
    %1488 = vmatpush.msra.mxu0 0.0
    %1489 = vmatpush.msra.mxu0 %v1044
    %1490 = vmatmul.f32.gmra.mxu0 %v1472
    %v1491 = vpop.f32.mrf.mxu0
    %v1492 = vadd.f32 0.0, %v1491
    %1493 = vdwg.mxu0
    %v1495 = vsel %vm431, %v1354, 0
    %1497 = vmatpush.msra.mxu0 0.0
    %1498 = vmatpush.msra.mxu0 0.0
    %1499 = vmatpush.msra.mxu0 0.0
    %1500 = vmatpush.msra.mxu0 0.0
    %1501 = vmatpush.msra.mxu0 0.0
    %1502 = vmatpush.msra.mxu0 0.0
    %1503 = vmatpush.msra.mxu0 0.0
    %1504 = vmatpush.msra.mxu0 0.0
    %1505 = vmatpush.msra.mxu0 0.0
    %1506 = vmatpush.msra.mxu0 0.0
    %1507 = vmatpush.msra.mxu0 0.0
    %1508 = vmatpush.msra.mxu0 0.0
    %1509 = vmatpush.msra.mxu0 0.0
    %1510 = vmatpush.msra.mxu0 0.0
    %1511 = vmatpush.msra.mxu0 0.0
    %1512 = vmatpush.msra.mxu0 %v1047
    %1513 = vmatmul.f32.gmra.mxu0 %v1495
    %v1514 = vpop.f32.mrf.mxu0
    %v1515 = vadd.f32 0.0, %v1514
    %1516 = vdwg.mxu0
    %v1518 = vsel %vm431, %v1355, 0
    %1520 = vmatpush.msra.mxu0 0.0
    %1521 = vmatpush.msra.mxu0 0.0
    %1522 = vmatpush.msra.mxu0 0.0
    %1523 = vmatpush.msra.mxu0 0.0
    %1524 = vmatpush.msra.mxu0 0.0
    %1525 = vmatpush.msra.mxu0 0.0
    %1526 = vmatpush.msra.mxu0 0.0
    %1527 = vmatpush.msra.mxu0 0.0
    %1528 = vmatpush.msra.mxu0 0.0
    %1529 = vmatpush.msra.mxu0 0.0
    %1530 = vmatpush.msra.mxu0 0.0
    %1531 = vmatpush.msra.mxu0 0.0
    %1532 = vmatpush.msra.mxu0 0.0
    %1533 = vmatpush.msra.mxu0 0.0
    %1534 = vmatpush.msra.mxu0 0.0
    %1535 = vmatpush.msra.mxu0 %v1050
    %1536 = vmatmul.f32.gmra.mxu0 %v1518
    %v1537 = vpop.f32.mrf.mxu0
    %v1538 = vadd.f32 0.0, %v1537
    %1539 = vdwg.mxu0
    %v1541 = vsel %vm431, %v1377, 0
    %v1544 = vsel %vm431, %v1400, 0
    %v1547 = vsel %vm431, %v1423, 0
    %v1550 = vsel %vm431, %v1446, 0
    %v1553 = vsel %vm431, %v1469, 0
    %v1556 = vsel %vm431, %v1492, 0
    %v1559 = vsel %vm431, %v1515, 0
    %v1562 = vsel %vm431, %v1538, 0
    %1564 = vmatpush.msra.mxu0 0.0
    %1565 = vmatpush.msra.mxu0 0.0
    %1566 = vmatpush.msra.mxu0 0.0
    %1567 = vmatpush.msra.mxu0 0.0
    %1568 = vmatpush.msra.mxu0 0.0
    %1569 = vmatpush.msra.mxu0 0.0
    %1570 = vmatpush.msra.mxu0 0.0
    %1571 = vmatpush.msra.mxu0 0.0
    %1572 = vmatpush.msra.mxu0 0.0
    %1573 = vmatpush.msra.mxu0 0.0
    %1574 = vmatpush.msra.mxu0 0.0
    %1575 = vmatpush.msra.mxu0 0.0
    %1576 = vmatpush.msra.mxu0 0.0
    %1577 = vmatpush.msra.mxu0 0.0
    %1578 = vmatpush.msra.mxu0 0.0
    %1579 = vmatpush.msra.mxu0 %v271
    %1580 = vmatmul.f32.gmra.mxu0 %v1541
    %v1581 = vpop.f32.mrf.mxu0
    %v1582 = vadd.f32 0.0, %v1581
    %1583 = vmatmul.f32.gmra.mxu0 %v1544
    %v1584 = vpop.f32.mrf.mxu0
    %v1585 = vadd.f32 0.0, %v1584
    %1586 = vmatmul.f32.gmra.mxu0 %v1547
    %v1587 = vpop.f32.mrf.mxu0
    %v1588 = vadd.f32 0.0, %v1587
    %1589 = vmatmul.f32.gmra.mxu0 %v1550
    %v1590 = vpop.f32.mrf.mxu0
    %v1591 = vadd.f32 0.0, %v1590
    %1592 = vmatmul.f32.gmra.mxu0 %v1553
    %v1593 = vpop.f32.mrf.mxu0
    %v1594 = vadd.f32 0.0, %v1593
    %1595 = vmatmul.f32.gmra.mxu0 %v1556
    %v1596 = vpop.f32.mrf.mxu0
    %v1597 = vadd.f32 0.0, %v1596
    %1598 = vmatmul.f32.gmra.mxu0 %v1559
    %v1599 = vpop.f32.mrf.mxu0
    %v1600 = vadd.f32 0.0, %v1599
    %1601 = vmatmul.f32.gmra.mxu0 %v1562
    %v1602 = vpop.f32.mrf.mxu0
    %v1603 = vadd.f32 0.0, %v1602
    %1604 = vdwg.mxu0
    %v1606 = vsel %vm431, %v757, 0
    %v1609 = vsel %vm431, %v780, 0
    %v1612 = vsel %vm431, %v803, 0
    %v1615 = vsel %vm431, %v826, 0
    %v1618 = vsel %vm431, %v849, 0
    %v1621 = vsel %vm431, %v872, 0
    %v1624 = vsel %vm431, %v895, 0
    %v1627 = vsel %vm431, %v918, 0
    %1629 = vmatpush.msra.mxu0 0.0
    %1630 = vmatpush.msra.mxu0 0.0
    %1631 = vmatpush.msra.mxu0 0.0
    %1632 = vmatpush.msra.mxu0 0.0
    %1633 = vmatpush.msra.mxu0 0.0
    %1634 = vmatpush.msra.mxu0 0.0
    %1635 = vmatpush.msra.mxu0 0.0
    %1636 = vmatpush.msra.mxu0 0.0
    %1637 = vmatpush.msra.mxu0 0.0
    %1638 = vmatpush.msra.mxu0 0.0
    %1639 = vmatpush.msra.mxu0 0.0
    %1640 = vmatpush.msra.mxu0 0.0
    %1641 = vmatpush.msra.mxu0 0.0
    %1642 = vmatpush.msra.mxu0 0.0
    %1643 = vmatpush.msra.mxu0 0.0
    %1644 = vmatpush.msra.mxu0 %v270
    %1645 = vmatmul.f32.gmra.mxu0 %v1606
    %v1646 = vpop.f32.mrf.mxu0
    %v1647 = vadd.f32 %v1582, %v1646
    %1648 = vmatmul.f32.gmra.mxu0 %v1609
    %v1649 = vpop.f32.mrf.mxu0
    %v1650 = vadd.f32 %v1585, %v1649
    %1651 = vmatmul.f32.gmra.mxu0 %v1612
    %v1652 = vpop.f32.mrf.mxu0
    %v1653 = vadd.f32 %v1588, %v1652
    %1654 = vmatmul.f32.gmra.mxu0 %v1615
    %v1655 = vpop.f32.mrf.mxu0
    %v1656 = vadd.f32 %v1591, %v1655
    %1657 = vmatmul.f32.gmra.mxu0 %v1618
    %v1658 = vpop.f32.mrf.mxu0
    %v1659 = vadd.f32 %v1594, %v1658
    %1660 = vmatmul.f32.gmra.mxu0 %v1621
    %v1661 = vpop.f32.mrf.mxu0
    %v1662 = vadd.f32 %v1597, %v1661
    %1663 = vmatmul.f32.gmra.mxu0 %v1624
    %v1664 = vpop.f32.mrf.mxu0
    %v1665 = vadd.f32 %v1600, %v1664
    %1666 = vmatmul.f32.gmra.mxu0 %v1627
    %v1667 = vpop.f32.mrf.mxu0
    %v1668 = vadd.f32 %v1603, %v1667
    %1669 = vdwg.mxu0
    %v1671 = vperm.slane %v260, 0
    %1673 = vmatpush.msra.mxu0 0.0
    %1674 = vmatpush.msra.mxu0 0.0
    %1675 = vmatpush.msra.mxu0 0.0
    %1676 = vmatpush.msra.mxu0 0.0
    %1677 = vmatpush.msra.mxu0 0.0
    %1678 = vmatpush.msra.mxu0 0.0
    %1679 = vmatpush.msra.mxu0 0.0
    %1680 = vmatpush.msra.mxu0 0.0
    %1681 = vmatpush.msra.mxu0 0.0
    %1682 = vmatpush.msra.mxu0 0.0
    %1683 = vmatpush.msra.mxu0 0.0
    %1684 = vmatpush.msra.mxu0 0.0
    %1685 = vmatpush.msra.mxu0 %v221
    %1686 = vmatpush.msra.mxu0 %v220
    %1687 = vmatpush.msra.mxu0 %v219
    %1688 = vmatpush.msra.mxu0 %v218
    %1689 = vmatmul.f32.gmra.mxu0 %v279
    %v1690 = vpop.f32.mrf.mxu0
    %v1691 = vadd.f32 %v1671, %v1690
    %1692 = vmatmul.f32.gmra.mxu0 %v282
    %v1693 = vpop.f32.mrf.mxu0
    %v1694 = vadd.f32 %v1671, %v1693
    %1695 = vmatmul.f32.gmra.mxu0 %v285
    %v1696 = vpop.f32.mrf.mxu0
    %v1697 = vadd.f32 %v1671, %v1696
    %1698 = vmatmul.f32.gmra.mxu0 %v288
    %v1699 = vpop.f32.mrf.mxu0
    %v1700 = vadd.f32 %v1671, %v1699
    %1701 = vmatmul.f32.gmra.mxu0 %v291
    %v1702 = vpop.f32.mrf.mxu0
    %v1703 = vadd.f32 %v1671, %v1702
    %1704 = vmatmul.f32.gmra.mxu0 %v294
    %v1705 = vpop.f32.mrf.mxu0
    %v1706 = vadd.f32 %v1671, %v1705
    %1707 = vmatmul.f32.gmra.mxu0 %v297
    %v1708 = vpop.f32.mrf.mxu0
    %v1709 = vadd.f32 %v1671, %v1708
    %1710 = vmatmul.f32.gmra.mxu0 %v300
    %v1711 = vpop.f32.mrf.mxu0
    %v1712 = vadd.f32 %v1671, %v1711
    %1713 = vdwg.mxu0
    %v1715 = vperm.slane %v264, 0
    %1717 = vmatpush.msra.mxu0 0.0
    %1718 = vmatpush.msra.mxu0 0.0
    %1719 = vmatpush.msra.mxu0 0.0
    %1720 = vmatpush.msra.mxu0 0.0
    %1721 = vmatpush.msra.mxu0 0.0
    %1722 = vmatpush.msra.mxu0 0.0
    %1723 = vmatpush.msra.mxu0 0.0
    %1724 = vmatpush.msra.mxu0 0.0
    %1725 = vmatpush.msra.mxu0 0.0
    %1726 = vmatpush.msra.mxu0 0.0
    %1727 = vmatpush.msra.mxu0 0.0
    %1728 = vmatpush.msra.mxu0 0.0
    %1729 = vmatpush.msra.mxu0 %v237
    %1730 = vmatpush.msra.mxu0 %v236
    %1731 = vmatpush.msra.mxu0 %v235
    %1732 = vmatpush.msra.mxu0 %v234
    %1733 = vmatmul.f32.gmra.mxu0 %v279
    %v1734 = vpop.f32.mrf.mxu0
    %v1735 = vadd.f32 %v1715, %v1734
    %1736 = vmatmul.f32.gmra.mxu0 %v282
    %v1737 = vpop.f32.mrf.mxu0
    %v1738 = vadd.f32 %v1715, %v1737
    %1739 = vmatmul.f32.gmra.mxu0 %v285
    %v1740 = vpop.f32.mrf.mxu0
    %v1741 = vadd.f32 %v1715, %v1740
    %1742 = vmatmul.f32.gmra.mxu0 %v288
    %v1743 = vpop.f32.mrf.mxu0
    %v1744 = vadd.f32 %v1715, %v1743
    %1745 = vmatmul.f32.gmra.mxu0 %v291
    %v1746 = vpop.f32.mrf.mxu0
    %v1747 = vadd.f32 %v1715, %v1746
    %1748 = vmatmul.f32.gmra.mxu0 %v294
    %v1749 = vpop.f32.mrf.mxu0
    %v1750 = vadd.f32 %v1715, %v1749
    %1751 = vmatmul.f32.gmra.mxu0 %v297
    %v1752 = vpop.f32.mrf.mxu0
    %v1753 = vadd.f32 %v1715, %v1752
    %1754 = vmatmul.f32.gmra.mxu0 %v300
    %v1755 = vpop.f32.mrf.mxu0
    %v1756 = vadd.f32 %v1715, %v1755
    %1757 = vdwg.mxu0
    %v1759 = vperm.slane %v268, 0
    %1761 = vmatpush.msra.mxu0 0.0
    %1762 = vmatpush.msra.mxu0 0.0
    %1763 = vmatpush.msra.mxu0 0.0
    %1764 = vmatpush.msra.mxu0 0.0
    %1765 = vmatpush.msra.mxu0 0.0
    %1766 = vmatpush.msra.mxu0 0.0
    %1767 = vmatpush.msra.mxu0 0.0
    %1768 = vmatpush.msra.mxu0 0.0
    %1769 = vmatpush.msra.mxu0 0.0
    %1770 = vmatpush.msra.mxu0 0.0
    %1771 = vmatpush.msra.mxu0 0.0
    %1772 = vmatpush.msra.mxu0 0.0
    %1773 = vmatpush.msra.mxu0 %v253
    %1774 = vmatpush.msra.mxu0 %v252
    %1775 = vmatpush.msra.mxu0 %v251
    %1776 = vmatpush.msra.mxu0 %v250
    %1777 = vmatmul.f32.gmra.mxu0 %v279
    %v1778 = vpop.f32.mrf.mxu0
    %v1779 = vadd.f32 %v1759, %v1778
    %1780 = vmatmul.f32.gmra.mxu0 %v282
    %v1781 = vpop.f32.mrf.mxu0
    %v1782 = vadd.f32 %v1759, %v1781
    %1783 = vmatmul.f32.gmra.mxu0 %v285
    %v1784 = vpop.f32.mrf.mxu0
    %v1785 = vadd.f32 %v1759, %v1784
    %1786 = vmatmul.f32.gmra.mxu0 %v288
    %v1787 = vpop.f32.mrf.mxu0
    %v1788 = vadd.f32 %v1759, %v1787
    %1789 = vmatmul.f32.gmra.mxu0 %v291
    %v1790 = vpop.f32.mrf.mxu0
    %v1791 = vadd.f32 %v1759, %v1790
    %1792 = vmatmul.f32.gmra.mxu0 %v294
    %v1793 = vpop.f32.mrf.mxu0
    %v1794 = vadd.f32 %v1759, %v1793
    %1795 = vmatmul.f32.gmra.mxu0 %v297
    %v1796 = vpop.f32.mrf.mxu0
    %v1797 = vadd.f32 %v1759, %v1796
    %1798 = vmatmul.f32.gmra.mxu0 %v300
    %v1799 = vpop.f32.mrf.mxu0
    %v1800 = vadd.f32 %v1759, %v1799
    %1801 = vdwg.mxu0
    %v1803 = vsel %vm431, %v1691, 0
    %v1806 = vsel %vm431, %v1735, 0
    %1808 = vmatpush.xpose.msra.mxu0 0.0
    %1809 = vmatpush.xpose.msra.mxu0 0.0
    %1810 = vmatpush.xpose.msra.mxu0 0.0
    %1811 = vmatpush.xpose.msra.mxu0 0.0
    %1812 = vmatpush.xpose.msra.mxu0 0.0
    %1813 = vmatpush.xpose.msra.mxu0 0.0
    %1814 = vmatpush.xpose.msra.mxu0 0.0
    %1815 = vmatpush.xpose.msra.mxu0 0.0
    %1816 = vmatpush.xpose.msra.mxu0 0.0
    %1817 = vmatpush.xpose.msra.mxu0 0.0
    %1818 = vmatpush.xpose.msra.mxu0 0.0
    %1819 = vmatpush.xpose.msra.mxu0 0.0
    %1820 = vmatpush.xpose.msra.mxu0 0.0
    %1821 = vmatpush.xpose.msra.mxu0 0.0
    %1822 = vmatpush.xpose.msra.mxu0 0.0
    %1823 = vmatpush.xpose.msra.mxu0 %v1806
    %1824 = vmatmul.f32.gmra.mxu0 %v1803
    %v1825 = vpop.f32.mrf.mxu0
    %v1826 = vadd.f32 0.0, %v1825
    %1827 = vdwg.mxu0
    %v1829 = vsel %vm431, %v1694, 0
    %v1832 = vsel %vm431, %v1738, 0
    %1834 = vmatpush.xpose.msra.mxu0 0.0
    %1835 = vmatpush.xpose.msra.mxu0 0.0
    %1836 = vmatpush.xpose.msra.mxu0 0.0
    %1837 = vmatpush.xpose.msra.mxu0 0.0
    %1838 = vmatpush.xpose.msra.mxu0 0.0
    %1839 = vmatpush.xpose.msra.mxu0 0.0
    %1840 = vmatpush.xpose.msra.mxu0 0.0
    %1841 = vmatpush.xpose.msra.mxu0 0.0
    %1842 = vmatpush.xpose.msra.mxu0 0.0
    %1843 = vmatpush.xpose.msra.mxu0 0.0
    %1844 = vmatpush.xpose.msra.mxu0 0.0
    %1845 = vmatpush.xpose.msra.mxu0 0.0
    %1846 = vmatpush.xpose.msra.mxu0 0.0
    %1847 = vmatpush.xpose.msra.mxu0 0.0
    %1848 = vmatpush.xpose.msra.mxu0 0.0
    %1849 = vmatpush.xpose.msra.mxu0 %v1832
    %1850 = vmatmul.f32.gmra.mxu0 %v1829
    %v1851 = vpop.f32.mrf.mxu0
    %v1852 = vadd.f32 0.0, %v1851
    %1853 = vdwg.mxu0
    %v1855 = vsel %vm431, %v1697, 0
    %v1858 = vsel %vm431, %v1741, 0
    %1860 = vmatpush.xpose.msra.mxu0 0.0
    %1861 = vmatpush.xpose.msra.mxu0 0.0
    %1862 = vmatpush.xpose.msra.mxu0 0.0
    %1863 = vmatpush.xpose.msra.mxu0 0.0
    %1864 = vmatpush.xpose.msra.mxu0 0.0
    %1865 = vmatpush.xpose.msra.mxu0 0.0
    %1866 = vmatpush.xpose.msra.mxu0 0.0
    %1867 = vmatpush.xpose.msra.mxu0 0.0
    %1868 = vmatpush.xpose.msra.mxu0 0.0
    %1869 = vmatpush.xpose.msra.mxu0 0.0
    %1870 = vmatpush.xpose.msra.mxu0 0.0
    %1871 = vmatpush.xpose.msra.mxu0 0.0
    %1872 = vmatpush.xpose.msra.mxu0 0.0
    %1873 = vmatpush.xpose.msra.mxu0 0.0
    %1874 = vmatpush.xpose.msra.mxu0 0.0
    %1875 = vmatpush.xpose.msra.mxu0 %v1858
    %1876 = vmatmul.f32.gmra.mxu0 %v1855
    %v1877 = vpop.f32.mrf.mxu0
    %v1878 = vadd.f32 0.0, %v1877
    %1879 = vdwg.mxu0
    %v1881 = vsel %vm431, %v1700, 0
    %v1884 = vsel %vm431, %v1744, 0
    %1886 = vmatpush.xpose.msra.mxu0 0.0
    %1887 = vmatpush.xpose.msra.mxu0 0.0
    %1888 = vmatpush.xpose.msra.mxu0 0.0
    %1889 = vmatpush.xpose.msra.mxu0 0.0
    %1890 = vmatpush.xpose.msra.mxu0 0.0
    %1891 = vmatpush.xpose.msra.mxu0 0.0
    %1892 = vmatpush.xpose.msra.mxu0 0.0
    %1893 = vmatpush.xpose.msra.mxu0 0.0
    %1894 = vmatpush.xpose.msra.mxu0 0.0
    %1895 = vmatpush.xpose.msra.mxu0 0.0
    %1896 = vmatpush.xpose.msra.mxu0 0.0
    %1897 = vmatpush.xpose.msra.mxu0 0.0
    %1898 = vmatpush.xpose.msra.mxu0 0.0
    %1899 = vmatpush.xpose.msra.mxu0 0.0
    %1900 = vmatpush.xpose.msra.mxu0 0.0
    %1901 = vmatpush.xpose.msra.mxu0 %v1884
    %1902 = vmatmul.f32.gmra.mxu0 %v1881
    %v1903 = vpop.f32.mrf.mxu0
    %v1904 = vadd.f32 0.0, %v1903
    %1905 = vdwg.mxu0
    %v1907 = vsel %vm431, %v1703, 0
    %v1910 = vsel %vm431, %v1747, 0
    %1912 = vmatpush.xpose.msra.mxu0 0.0
    %1913 = vmatpush.xpose.msra.mxu0 0.0
    %1914 = vmatpush.xpose.msra.mxu0 0.0
    %1915 = vmatpush.xpose.msra.mxu0 0.0
    %1916 = vmatpush.xpose.msra.mxu0 0.0
    %1917 = vmatpush.xpose.msra.mxu0 0.0
    %1918 = vmatpush.xpose.msra.mxu0 0.0
    %1919 = vmatpush.xpose.msra.mxu0 0.0
    %1920 = vmatpush.xpose.msra.mxu0 0.0
    %1921 = vmatpush.xpose.msra.mxu0 0.0
    %1922 = vmatpush.xpose.msra.mxu0 0.0
    %1923 = vmatpush.xpose.msra.mxu0 0.0
    %1924 = vmatpush.xpose.msra.mxu0 0.0
    %1925 = vmatpush.xpose.msra.mxu0 0.0
    %1926 = vmatpush.xpose.msra.mxu0 0.0
    %1927 = vmatpush.xpose.msra.mxu0 %v1910
    %1928 = vmatmul.f32.gmra.mxu0 %v1907
    %v1929 = vpop.f32.mrf.mxu0
    %v1930 = vadd.f32 0.0, %v1929
    %1931 = vdwg.mxu0
    %v1933 = vsel %vm431, %v1706, 0
    %v1936 = vsel %vm431, %v1750, 0
    %1938 = vmatpush.xpose.msra.mxu0 0.0
    %1939 = vmatpush.xpose.msra.mxu0 0.0
    %1940 = vmatpush.xpose.msra.mxu0 0.0
    %1941 = vmatpush.xpose.msra.mxu0 0.0
    %1942 = vmatpush.xpose.msra.mxu0 0.0
    %1943 = vmatpush.xpose.msra.mxu0 0.0
    %1944 = vmatpush.xpose.msra.mxu0 0.0
    %1945 = vmatpush.xpose.msra.mxu0 0.0
    %1946 = vmatpush.xpose.msra.mxu0 0.0
    %1947 = vmatpush.xpose.msra.mxu0 0.0
    %1948 = vmatpush.xpose.msra.mxu0 0.0
    %1949 = vmatpush.xpose.msra.mxu0 0.0
    %1950 = vmatpush.xpose.msra.mxu0 0.0
    %1951 = vmatpush.xpose.msra.mxu0 0.0
    %1952 = vmatpush.xpose.msra.mxu0 0.0
    %1953 = vmatpush.xpose.msra.mxu0 %v1936
    %1954 = vmatmul.f32.gmra.mxu0 %v1933
    %v1955 = vpop.f32.mrf.mxu0
    %v1956 = vadd.f32 0.0, %v1955
    %1957 = vdwg.mxu0
    %v1959 = vsel %vm431, %v1709, 0
    %v1962 = vsel %vm431, %v1753, 0
    %1964 = vmatpush.xpose.msra.mxu0 0.0
    %1965 = vmatpush.xpose.msra.mxu0 0.0
    %1966 = vmatpush.xpose.msra.mxu0 0.0
    %1967 = vmatpush.xpose.msra.mxu0 0.0
    %1968 = vmatpush.xpose.msra.mxu0 0.0
    %1969 = vmatpush.xpose.msra.mxu0 0.0
    %1970 = vmatpush.xpose.msra.mxu0 0.0
    %1971 = vmatpush.xpose.msra.mxu0 0.0
    %1972 = vmatpush.xpose.msra.mxu0 0.0
    %1973 = vmatpush.xpose.msra.mxu0 0.0
    %1974 = vmatpush.xpose.msra.mxu0 0.0
    %1975 = vmatpush.xpose.msra.mxu0 0.0
    %1976 = vmatpush.xpose.msra.mxu0 0.0
    %1977 = vmatpush.xpose.msra.mxu0 0.0
    %1978 = vmatpush.xpose.msra.mxu0 0.0
    %1979 = vmatpush.xpose.msra.mxu0 %v1962
    %1980 = vmatmul.f32.gmra.mxu0 %v1959
    %v1981 = vpop.f32.mrf.mxu0
    %v1982 = vadd.f32 0.0, %v1981
    %1983 = vdwg.mxu0
    %v1985 = vsel %vm431, %v1712, 0
    %v1988 = vsel %vm431, %v1756, 0
    %1990 = vmatpush.xpose.msra.mxu0 0.0
    %1991 = vmatpush.xpose.msra.mxu0 0.0
    %1992 = vmatpush.xpose.msra.mxu0 0.0
    %1993 = vmatpush.xpose.msra.mxu0 0.0
    %1994 = vmatpush.xpose.msra.mxu0 0.0
    %1995 = vmatpush.xpose.msra.mxu0 0.0
    %1996 = vmatpush.xpose.msra.mxu0 0.0
    %1997 = vmatpush.xpose.msra.mxu0 0.0
    %1998 = vmatpush.xpose.msra.mxu0 0.0
    %1999 = vmatpush.xpose.msra.mxu0 0.0
    %2000 = vmatpush.xpose.msra.mxu0 0.0
    %2001 = vmatpush.xpose.msra.mxu0 0.0
    %2002 = vmatpush.xpose.msra.mxu0 0.0
    %2003 = vmatpush.xpose.msra.mxu0 0.0
    %2004 = vmatpush.xpose.msra.mxu0 0.0
    %2005 = vmatpush.xpose.msra.mxu0 %v1988
    %2006 = vmatmul.f32.gmra.mxu0 %v1985
    %v2007 = vpop.f32.mrf.mxu0
    %v2008 = vadd.f32 0.0, %v2007
    %2009 = vdwg.mxu0
    %v2010 = vmul.f32 %v1826, 0.35355338
    %v2011 = vmul.f32 %v1852, 0.35355338
    %v2012 = vmul.f32 %v1878, 0.35355338
    %v2013 = vmul.f32 %v1904, 0.35355338
    %v2014 = vmul.f32 %v1930, 0.35355338
    %v2015 = vmul.f32 %v1956, 0.35355338
    %v2016 = vmul.f32 %v1982, 0.35355338
    %v2017 = vmul.f32 %v2008, 0.35355338
    %v2018 = vsel %vm431, %v2010, -inf
    %2019 = vmax.xlane.f32.xlu0 %v2018
    %v2020 = vpop.xlane.xlu0 %2019
    %v2021 = vsel %vm431, %v2011, -inf
    %2022 = vmax.xlane.f32.xlu0 %v2021
    %v2023 = vpop.xlane.xlu0 %2022
    %v2024 = vsel %vm431, %v2012, -inf
    %2025 = vmax.xlane.f32.xlu0 %v2024
    %v2026 = vpop.xlane.xlu0 %2025
    %v2027 = vsel %vm431, %v2013, -inf
    %2028 = vmax.xlane.f32.xlu0 %v2027
    %v2029 = vpop.xlane.xlu0 %2028
    %v2030 = vsel %vm431, %v2014, -inf
    %2031 = vmax.xlane.f32.xlu0 %v2030
    %v2032 = vpop.xlane.xlu0 %2031
    %v2033 = vsel %vm431, %v2015, -inf
    %2034 = vmax.xlane.f32.xlu0 %v2033
    %v2035 = vpop.xlane.xlu0 %2034
    %v2036 = vsel %vm431, %v2016, -inf
    %2037 = vmax.xlane.f32.xlu0 %v2036
    %v2038 = vpop.xlane.xlu0 %2037
    %v2039 = vsel %vm431, %v2017, -inf
    %2040 = vmax.xlane.f32.xlu0 %v2039
    %v2041 = vpop.xlane.xlu0 %2040
    %v2042 = vsub.f32 %v2010, %v2020
    %v2043 = vsub.f32 %v2011, %v2023
    %v2044 = vsub.f32 %v2012, %v2026
    %v2045 = vsub.f32 %v2013, %v2029
    %v2046 = vsub.f32 %v2014, %v2032
    %v2047 = vsub.f32 %v2015, %v2035
    %v2048 = vsub.f32 %v2016, %v2038
    %v2049 = vsub.f32 %v2017, %v2041
    %v2050 = vmul.f32 %v2042, 1.442695
    %v2051 = vpow.pop %v2050
    %v2052 = vmul.f32 %v2043, 1.442695
    %v2053 = vpow.pop %v2052
    %v2054 = vmul.f32 %v2044, 1.442695
    %v2055 = vpow.pop %v2054
    %v2056 = vmul.f32 %v2045, 1.442695
    %v2057 = vpow.pop %v2056
    %v2058 = vmul.f32 %v2046, 1.442695
    %v2059 = vpow.pop %v2058
    %v2060 = vmul.f32 %v2047, 1.442695
    %v2061 = vpow.pop %v2060
    %v2062 = vmul.f32 %v2048, 1.442695
    %v2063 = vpow.pop %v2062
    %v2064 = vmul.f32 %v2049, 1.442695
    %v2065 = vpow.pop %v2064
    %v2066 = vsel %vm431, %v2051, 0.0
    %2067 = vadd.xlane.f32.xlu0 %v2066
    %v2068 = vpop.xlane.xlu0 %2067
    %v2069 = vsel %vm431, %v2053, 0.0
    %2070 = vadd.xlane.f32.xlu0 %v2069
    %v2071 = vpop.xlane.xlu0 %2070
    %v2072 = vsel %vm431, %v2055, 0.0
    %2073 = vadd.xlane.f32.xlu0 %v2072
    %v2074 = vpop.xlane.xlu0 %2073
    %v2075 = vsel %vm431, %v2057, 0.0
    %2076 = vadd.xlane.f32.xlu0 %v2075
    %v2077 = vpop.xlane.xlu0 %2076
    %v2078 = vsel %vm431, %v2059, 0.0
    %2079 = vadd.xlane.f32.xlu0 %v2078
    %v2080 = vpop.xlane.xlu0 %2079
    %v2081 = vsel %vm431, %v2061, 0.0
    %2082 = vadd.xlane.f32.xlu0 %v2081
    %v2083 = vpop.xlane.xlu0 %2082
    %v2084 = vsel %vm431, %v2063, 0.0
    %2085 = vadd.xlane.f32.xlu0 %v2084
    %v2086 = vpop.xlane.xlu0 %2085
    %v2087 = vsel %vm431, %v2065, 0.0
    %2088 = vadd.xlane.f32.xlu0 %v2087
    %v2089 = vpop.xlane.xlu0 %2088
    %v2090 = vrcp.pop %v2068
    %v2091 = vrcp.pop %v2071
    %v2092 = vrcp.pop %v2074
    %v2093 = vrcp.pop %v2077
    %v2094 = vrcp.pop %v2080
    %v2095 = vrcp.pop %v2083
    %v2096 = vrcp.pop %v2086
    %v2097 = vrcp.pop %v2089
    %v2098 = vmul.f32 %v2051, %v2090
    %v2099 = vmul.f32 %v2053, %v2091
    %v2100 = vmul.f32 %v2055, %v2092
    %v2101 = vmul.f32 %v2057, %v2093
    %v2102 = vmul.f32 %v2059, %v2094
    %v2103 = vmul.f32 %v2061, %v2095
    %v2104 = vmul.f32 %v2063, %v2096
    %v2105 = vmul.f32 %v2065, %v2097
    %v2107 = vsel %vm431, %v2098, 0
    %2109 = vmatpush.msra.mxu0 0.0
    %2110 = vmatpush.msra.mxu0 0.0
    %2111 = vmatpush.msra.mxu0 0.0
    %2112 = vmatpush.msra.mxu0 0.0
    %2113 = vmatpush.msra.mxu0 0.0
    %2114 = vmatpush.msra.mxu0 0.0
    %2115 = vmatpush.msra.mxu0 0.0
    %2116 = vmatpush.msra.mxu0 0.0
    %2117 = vmatpush.msra.mxu0 0.0
    %2118 = vmatpush.msra.mxu0 0.0
    %2119 = vmatpush.msra.mxu0 0.0
    %2120 = vmatpush.msra.mxu0 0.0
    %2121 = vmatpush.msra.mxu0 0.0
    %2122 = vmatpush.msra.mxu0 0.0
    %2123 = vmatpush.msra.mxu0 0.0
    %2124 = vmatpush.msra.mxu0 %v1779
    %2125 = vmatmul.f32.gmra.mxu0 %v2107
    %v2126 = vpop.f32.mrf.mxu0
    %v2127 = vadd.f32 0.0, %v2126
    %2128 = vdwg.mxu0
    %v2130 = vsel %vm431, %v2099, 0
    %2132 = vmatpush.msra.mxu0 0.0
    %2133 = vmatpush.msra.mxu0 0.0
    %2134 = vmatpush.msra.mxu0 0.0
    %2135 = vmatpush.msra.mxu0 0.0
    %2136 = vmatpush.msra.mxu0 0.0
    %2137 = vmatpush.msra.mxu0 0.0
    %2138 = vmatpush.msra.mxu0 0.0
    %2139 = vmatpush.msra.mxu0 0.0
    %2140 = vmatpush.msra.mxu0 0.0
    %2141 = vmatpush.msra.mxu0 0.0
    %2142 = vmatpush.msra.mxu0 0.0
    %2143 = vmatpush.msra.mxu0 0.0
    %2144 = vmatpush.msra.mxu0 0.0
    %2145 = vmatpush.msra.mxu0 0.0
    %2146 = vmatpush.msra.mxu0 0.0
    %2147 = vmatpush.msra.mxu0 %v1782
    %2148 = vmatmul.f32.gmra.mxu0 %v2130
    %v2149 = vpop.f32.mrf.mxu0
    %v2150 = vadd.f32 0.0, %v2149
    %2151 = vdwg.mxu0
    %v2153 = vsel %vm431, %v2100, 0
    %2155 = vmatpush.msra.mxu0 0.0
    %2156 = vmatpush.msra.mxu0 0.0
    %2157 = vmatpush.msra.mxu0 0.0
    %2158 = vmatpush.msra.mxu0 0.0
    %2159 = vmatpush.msra.mxu0 0.0
    %2160 = vmatpush.msra.mxu0 0.0
    %2161 = vmatpush.msra.mxu0 0.0
    %2162 = vmatpush.msra.mxu0 0.0
    %2163 = vmatpush.msra.mxu0 0.0
    %2164 = vmatpush.msra.mxu0 0.0
    %2165 = vmatpush.msra.mxu0 0.0
    %2166 = vmatpush.msra.mxu0 0.0
    %2167 = vmatpush.msra.mxu0 0.0
    %2168 = vmatpush.msra.mxu0 0.0
    %2169 = vmatpush.msra.mxu0 0.0
    %2170 = vmatpush.msra.mxu0 %v1785
    %2171 = vmatmul.f32.gmra.mxu0 %v2153
    %v2172 = vpop.f32.mrf.mxu0
    %v2173 = vadd.f32 0.0, %v2172
    %2174 = vdwg.mxu0
    %v2176 = vsel %vm431, %v2101, 0
    %2178 = vmatpush.msra.mxu0 0.0
    %2179 = vmatpush.msra.mxu0 0.0
    %2180 = vmatpush.msra.mxu0 0.0
    %2181 = vmatpush.msra.mxu0 0.0
    %2182 = vmatpush.msra.mxu0 0.0
    %2183 = vmatpush.msra.mxu0 0.0
    %2184 = vmatpush.msra.mxu0 0.0
    %2185 = vmatpush.msra.mxu0 0.0
    %2186 = vmatpush.msra.mxu0 0.0
    %2187 = vmatpush.msra.mxu0 0.0
    %2188 = vmatpush.msra.mxu0 0.0
    %2189 = vmatpush.msra.mxu0 0.0
    %2190 = vmatpush.msra.mxu0 0.0
    %2191 = vmatpush.msra.mxu0 0.0
    %2192 = vmatpush.msra.mxu0 0.0
    %2193 = vmatpush.msra.mxu0 %v1788
    %2194 = vmatmul.f32.gmra.mxu0 %v2176
    %v2195 = vpop.f32.mrf.mxu0
    %v2196 = vadd.f32 0.0, %v2195
    %2197 = vdwg.mxu0
    %v2199 = vsel %vm431, %v2102, 0
    %2201 = vmatpush.msra.mxu0 0.0
    %2202 = vmatpush.msra.mxu0 0.0
    %2203 = vmatpush.msra.mxu0 0.0
    %2204 = vmatpush.msra.mxu0 0.0
    %2205 = vmatpush.msra.mxu0 0.0
    %2206 = vmatpush.msra.mxu0 0.0
    %2207 = vmatpush.msra.mxu0 0.0
    %2208 = vmatpush.msra.mxu0 0.0
    %2209 = vmatpush.msra.mxu0 0.0
    %2210 = vmatpush.msra.mxu0 0.0
    %2211 = vmatpush.msra.mxu0 0.0
    %2212 = vmatpush.msra.mxu0 0.0
    %2213 = vmatpush.msra.mxu0 0.0
    %2214 = vmatpush.msra.mxu0 0.0
    %2215 = vmatpush.msra.mxu0 0.0
    %2216 = vmatpush.msra.mxu0 %v1791
    %2217 = vmatmul.f32.gmra.mxu0 %v2199
    %v2218 = vpop.f32.mrf.mxu0
    %v2219 = vadd.f32 0.0, %v2218
    %2220 = vdwg.mxu0
    %v2222 = vsel %vm431, %v2103, 0
    %2224 = vmatpush.msra.mxu0 0.0
    %2225 = vmatpush.msra.mxu0 0.0
    %2226 = vmatpush.msra.mxu0 0.0
    %2227 = vmatpush.msra.mxu0 0.0
    %2228 = vmatpush.msra.mxu0 0.0
    %2229 = vmatpush.msra.mxu0 0.0
    %2230 = vmatpush.msra.mxu0 0.0
    %2231 = vmatpush.msra.mxu0 0.0
    %2232 = vmatpush.msra.mxu0 0.0
    %2233 = vmatpush.msra.mxu0 0.0
    %2234 = vmatpush.msra.mxu0 0.0
    %2235 = vmatpush.msra.mxu0 0.0
    %2236 = vmatpush.msra.mxu0 0.0
    %2237 = vmatpush.msra.mxu0 0.0
    %2238 = vmatpush.msra.mxu0 0.0
    %2239 = vmatpush.msra.mxu0 %v1794
    %2240 = vmatmul.f32.gmra.mxu0 %v2222
    %v2241 = vpop.f32.mrf.mxu0
    %v2242 = vadd.f32 0.0, %v2241
    %2243 = vdwg.mxu0
    %v2245 = vsel %vm431, %v2104, 0
    %2247 = vmatpush.msra.mxu0 0.0
    %2248 = vmatpush.msra.mxu0 0.0
    %2249 = vmatpush.msra.mxu0 0.0
    %2250 = vmatpush.msra.mxu0 0.0
    %2251 = vmatpush.msra.mxu0 0.0
    %2252 = vmatpush.msra.mxu0 0.0
    %2253 = vmatpush.msra.mxu0 0.0
    %2254 = vmatpush.msra.mxu0 0.0
    %2255 = vmatpush.msra.mxu0 0.0
    %2256 = vmatpush.msra.mxu0 0.0
    %2257 = vmatpush.msra.mxu0 0.0
    %2258 = vmatpush.msra.mxu0 0.0
    %2259 = vmatpush.msra.mxu0 0.0
    %2260 = vmatpush.msra.mxu0 0.0
    %2261 = vmatpush.msra.mxu0 0.0
    %2262 = vmatpush.msra.mxu0 %v1797
    %2263 = vmatmul.f32.gmra.mxu0 %v2245
    %v2264 = vpop.f32.mrf.mxu0
    %v2265 = vadd.f32 0.0, %v2264
    %2266 = vdwg.mxu0
    %v2268 = vsel %vm431, %v2105, 0
    %2270 = vmatpush.msra.mxu0 0.0
    %2271 = vmatpush.msra.mxu0 0.0
    %2272 = vmatpush.msra.mxu0 0.0
    %2273 = vmatpush.msra.mxu0 0.0
    %2274 = vmatpush.msra.mxu0 0.0
    %2275 = vmatpush.msra.mxu0 0.0
    %2276 = vmatpush.msra.mxu0 0.0
    %2277 = vmatpush.msra.mxu0 0.0
    %2278 = vmatpush.msra.mxu0 0.0
    %2279 = vmatpush.msra.mxu0 0.0
    %2280 = vmatpush.msra.mxu0 0.0
    %2281 = vmatpush.msra.mxu0 0.0
    %2282 = vmatpush.msra.mxu0 0.0
    %2283 = vmatpush.msra.mxu0 0.0
    %2284 = vmatpush.msra.mxu0 0.0
    %2285 = vmatpush.msra.mxu0 %v1800
    %2286 = vmatmul.f32.gmra.mxu0 %v2268
    %v2287 = vpop.f32.mrf.mxu0
    %v2288 = vadd.f32 0.0, %v2287
    %2289 = vdwg.mxu0
    %v2291 = vsel %vm431, %v2127, 0
    %v2294 = vsel %vm431, %v2150, 0
    %v2297 = vsel %vm431, %v2173, 0
    %v2300 = vsel %vm431, %v2196, 0
    %v2303 = vsel %vm431, %v2219, 0
    %v2306 = vsel %vm431, %v2242, 0
    %v2309 = vsel %vm431, %v2265, 0
    %v2312 = vsel %vm431, %v2288, 0
    %2314 = vmatpush.msra.mxu0 0.0
    %2315 = vmatpush.msra.mxu0 0.0
    %2316 = vmatpush.msra.mxu0 0.0
    %2317 = vmatpush.msra.mxu0 0.0
    %2318 = vmatpush.msra.mxu0 0.0
    %2319 = vmatpush.msra.mxu0 0.0
    %2320 = vmatpush.msra.mxu0 0.0
    %2321 = vmatpush.msra.mxu0 0.0
    %2322 = vmatpush.msra.mxu0 0.0
    %2323 = vmatpush.msra.mxu0 0.0
    %2324 = vmatpush.msra.mxu0 0.0
    %2325 = vmatpush.msra.mxu0 0.0
    %2326 = vmatpush.msra.mxu0 0.0
    %2327 = vmatpush.msra.mxu0 0.0
    %2328 = vmatpush.msra.mxu0 0.0
    %2329 = vmatpush.msra.mxu0 %v272
    %2330 = vmatmul.f32.gmra.mxu0 %v2291
    %v2331 = vpop.f32.mrf.mxu0
    %v2332 = vadd.f32 0.0, %v2331
    %2333 = vmatmul.f32.gmra.mxu0 %v2294
    %v2334 = vpop.f32.mrf.mxu0
    %v2335 = vadd.f32 0.0, %v2334
    %2336 = vmatmul.f32.gmra.mxu0 %v2297
    %v2337 = vpop.f32.mrf.mxu0
    %v2338 = vadd.f32 0.0, %v2337
    %2339 = vmatmul.f32.gmra.mxu0 %v2300
    %v2340 = vpop.f32.mrf.mxu0
    %v2341 = vadd.f32 0.0, %v2340
    %2342 = vmatmul.f32.gmra.mxu0 %v2303
    %v2343 = vpop.f32.mrf.mxu0
    %v2344 = vadd.f32 0.0, %v2343
    %2345 = vmatmul.f32.gmra.mxu0 %v2306
    %v2346 = vpop.f32.mrf.mxu0
    %v2347 = vadd.f32 0.0, %v2346
    %2348 = vmatmul.f32.gmra.mxu0 %v2309
    %v2349 = vpop.f32.mrf.mxu0
    %v2350 = vadd.f32 0.0, %v2349
    %2351 = vmatmul.f32.gmra.mxu0 %v2312
    %v2352 = vpop.f32.mrf.mxu0
    %v2353 = vadd.f32 0.0, %v2352
    %2354 = vdwg.mxu0
    %v2355 = vadd.f32 %v1647, %v2332
    %v2356 = vadd.f32 %v1650, %v2335
    %v2357 = vadd.f32 %v1653, %v2338
    %v2358 = vadd.f32 %v1656, %v2341
    %v2359 = vadd.f32 %v1659, %v2344
    %v2360 = vadd.f32 %v1662, %v2347
    %v2361 = vadd.f32 %v1665, %v2350
    %v2362 = vadd.f32 %v1668, %v2353
    %v2364 = vperm.slane %v261, 0
    %2366 = vmatpush.msra.mxu0 0.0
    %2367 = vmatpush.msra.mxu0 0.0
    %2368 = vmatpush.msra.mxu0 0.0
    %2369 = vmatpush.msra.mxu0 0.0
    %2370 = vmatpush.msra.mxu0 0.0
    %2371 = vmatpush.msra.mxu0 0.0
    %2372 = vmatpush.msra.mxu0 0.0
    %2373 = vmatpush.msra.mxu0 0.0
    %2374 = vmatpush.msra.mxu0 0.0
    %2375 = vmatpush.msra.mxu0 0.0
    %2376 = vmatpush.msra.mxu0 0.0
    %2377 = vmatpush.msra.mxu0 0.0
    %2378 = vmatpush.msra.mxu0 %v225
    %2379 = vmatpush.msra.mxu0 %v224
    %2380 = vmatpush.msra.mxu0 %v223
    %2381 = vmatpush.msra.mxu0 %v222
    %2382 = vmatmul.f32.gmra.mxu0 %v279
    %v2383 = vpop.f32.mrf.mxu0
    %v2384 = vadd.f32 %v2364, %v2383
    %2385 = vmatmul.f32.gmra.mxu0 %v282
    %v2386 = vpop.f32.mrf.mxu0
    %v2387 = vadd.f32 %v2364, %v2386
    %2388 = vmatmul.f32.gmra.mxu0 %v285
    %v2389 = vpop.f32.mrf.mxu0
    %v2390 = vadd.f32 %v2364, %v2389
    %2391 = vmatmul.f32.gmra.mxu0 %v288
    %v2392 = vpop.f32.mrf.mxu0
    %v2393 = vadd.f32 %v2364, %v2392
    %2394 = vmatmul.f32.gmra.mxu0 %v291
    %v2395 = vpop.f32.mrf.mxu0
    %v2396 = vadd.f32 %v2364, %v2395
    %2397 = vmatmul.f32.gmra.mxu0 %v294
    %v2398 = vpop.f32.mrf.mxu0
    %v2399 = vadd.f32 %v2364, %v2398
    %2400 = vmatmul.f32.gmra.mxu0 %v297
    %v2401 = vpop.f32.mrf.mxu0
    %v2402 = vadd.f32 %v2364, %v2401
    %2403 = vmatmul.f32.gmra.mxu0 %v300
    %v2404 = vpop.f32.mrf.mxu0
    %v2405 = vadd.f32 %v2364, %v2404
    %2406 = vdwg.mxu0
    %v2408 = vperm.slane %v265, 0
    %2410 = vmatpush.msra.mxu0 0.0
    %2411 = vmatpush.msra.mxu0 0.0
    %2412 = vmatpush.msra.mxu0 0.0
    %2413 = vmatpush.msra.mxu0 0.0
    %2414 = vmatpush.msra.mxu0 0.0
    %2415 = vmatpush.msra.mxu0 0.0
    %2416 = vmatpush.msra.mxu0 0.0
    %2417 = vmatpush.msra.mxu0 0.0
    %2418 = vmatpush.msra.mxu0 0.0
    %2419 = vmatpush.msra.mxu0 0.0
    %2420 = vmatpush.msra.mxu0 0.0
    %2421 = vmatpush.msra.mxu0 0.0
    %2422 = vmatpush.msra.mxu0 %v241
    %2423 = vmatpush.msra.mxu0 %v240
    %2424 = vmatpush.msra.mxu0 %v239
    %2425 = vmatpush.msra.mxu0 %v238
    %2426 = vmatmul.f32.gmra.mxu0 %v279
    %v2427 = vpop.f32.mrf.mxu0
    %v2428 = vadd.f32 %v2408, %v2427
    %2429 = vmatmul.f32.gmra.mxu0 %v282
    %v2430 = vpop.f32.mrf.mxu0
    %v2431 = vadd.f32 %v2408, %v2430
    %2432 = vmatmul.f32.gmra.mxu0 %v285
    %v2433 = vpop.f32.mrf.mxu0
    %v2434 = vadd.f32 %v2408, %v2433
    %2435 = vmatmul.f32.gmra.mxu0 %v288
    %v2436 = vpop.f32.mrf.mxu0
    %v2437 = vadd.f32 %v2408, %v2436
    %2438 = vmatmul.f32.gmra.mxu0 %v291
    %v2439 = vpop.f32.mrf.mxu0
    %v2440 = vadd.f32 %v2408, %v2439
    %2441 = vmatmul.f32.gmra.mxu0 %v294
    %v2442 = vpop.f32.mrf.mxu0
    %v2443 = vadd.f32 %v2408, %v2442
    %2444 = vmatmul.f32.gmra.mxu0 %v297
    %v2445 = vpop.f32.mrf.mxu0
    %v2446 = vadd.f32 %v2408, %v2445
    %2447 = vmatmul.f32.gmra.mxu0 %v300
    %v2448 = vpop.f32.mrf.mxu0
    %v2449 = vadd.f32 %v2408, %v2448
    %2450 = vdwg.mxu0
    %v2452 = vperm.slane %v269, 0
    %2454 = vmatpush.msra.mxu0 0.0
    %2455 = vmatpush.msra.mxu0 0.0
    %2456 = vmatpush.msra.mxu0 0.0
    %2457 = vmatpush.msra.mxu0 0.0
    %2458 = vmatpush.msra.mxu0 0.0
    %2459 = vmatpush.msra.mxu0 0.0
    %2460 = vmatpush.msra.mxu0 0.0
    %2461 = vmatpush.msra.mxu0 0.0
    %2462 = vmatpush.msra.mxu0 0.0
    %2463 = vmatpush.msra.mxu0 0.0
    %2464 = vmatpush.msra.mxu0 0.0
    %2465 = vmatpush.msra.mxu0 0.0
    %2466 = vmatpush.msra.mxu0 %v257
    %2467 = vmatpush.msra.mxu0 %v256
    %2468 = vmatpush.msra.mxu0 %v255
    %2469 = vmatpush.msra.mxu0 %v254
    %2470 = vmatmul.f32.gmra.mxu0 %v279
    %v2471 = vpop.f32.mrf.mxu0
    %v2472 = vadd.f32 %v2452, %v2471
    %2473 = vmatmul.f32.gmra.mxu0 %v282
    %v2474 = vpop.f32.mrf.mxu0
    %v2475 = vadd.f32 %v2452, %v2474
    %2476 = vmatmul.f32.gmra.mxu0 %v285
    %v2477 = vpop.f32.mrf.mxu0
    %v2478 = vadd.f32 %v2452, %v2477
    %2479 = vmatmul.f32.gmra.mxu0 %v288
    %v2480 = vpop.f32.mrf.mxu0
    %v2481 = vadd.f32 %v2452, %v2480
    %2482 = vmatmul.f32.gmra.mxu0 %v291
    %v2483 = vpop.f32.mrf.mxu0
    %v2484 = vadd.f32 %v2452, %v2483
    %2485 = vmatmul.f32.gmra.mxu0 %v294
    %v2486 = vpop.f32.mrf.mxu0
    %v2487 = vadd.f32 %v2452, %v2486
    %2488 = vmatmul.f32.gmra.mxu0 %v297
    %v2489 = vpop.f32.mrf.mxu0
    %v2490 = vadd.f32 %v2452, %v2489
    %2491 = vmatmul.f32.gmra.mxu0 %v300
    %v2492 = vpop.f32.mrf.mxu0
    %v2493 = vadd.f32 %v2452, %v2492
    %2494 = vdwg.mxu0
    %v2496 = vsel %vm431, %v2384, 0
    %v2499 = vsel %vm431, %v2428, 0
    %2501 = vmatpush.xpose.msra.mxu0 0.0
    %2502 = vmatpush.xpose.msra.mxu0 0.0
    %2503 = vmatpush.xpose.msra.mxu0 0.0
    %2504 = vmatpush.xpose.msra.mxu0 0.0
    %2505 = vmatpush.xpose.msra.mxu0 0.0
    %2506 = vmatpush.xpose.msra.mxu0 0.0
    %2507 = vmatpush.xpose.msra.mxu0 0.0
    %2508 = vmatpush.xpose.msra.mxu0 0.0
    %2509 = vmatpush.xpose.msra.mxu0 0.0
    %2510 = vmatpush.xpose.msra.mxu0 0.0
    %2511 = vmatpush.xpose.msra.mxu0 0.0
    %2512 = vmatpush.xpose.msra.mxu0 0.0
    %2513 = vmatpush.xpose.msra.mxu0 0.0
    %2514 = vmatpush.xpose.msra.mxu0 0.0
    %2515 = vmatpush.xpose.msra.mxu0 0.0
    %2516 = vmatpush.xpose.msra.mxu0 %v2499
    %2517 = vmatmul.f32.gmra.mxu0 %v2496
    %v2518 = vpop.f32.mrf.mxu0
    %v2519 = vadd.f32 0.0, %v2518
    %2520 = vdwg.mxu0
    %v2522 = vsel %vm431, %v2387, 0
    %v2525 = vsel %vm431, %v2431, 0
    %2527 = vmatpush.xpose.msra.mxu0 0.0
    %2528 = vmatpush.xpose.msra.mxu0 0.0
    %2529 = vmatpush.xpose.msra.mxu0 0.0
    %2530 = vmatpush.xpose.msra.mxu0 0.0
    %2531 = vmatpush.xpose.msra.mxu0 0.0
    %2532 = vmatpush.xpose.msra.mxu0 0.0
    %2533 = vmatpush.xpose.msra.mxu0 0.0
    %2534 = vmatpush.xpose.msra.mxu0 0.0
    %2535 = vmatpush.xpose.msra.mxu0 0.0
    %2536 = vmatpush.xpose.msra.mxu0 0.0
    %2537 = vmatpush.xpose.msra.mxu0 0.0
    %2538 = vmatpush.xpose.msra.mxu0 0.0
    %2539 = vmatpush.xpose.msra.mxu0 0.0
    %2540 = vmatpush.xpose.msra.mxu0 0.0
    %2541 = vmatpush.xpose.msra.mxu0 0.0
    %2542 = vmatpush.xpose.msra.mxu0 %v2525
    %2543 = vmatmul.f32.gmra.mxu0 %v2522
    %v2544 = vpop.f32.mrf.mxu0
    %v2545 = vadd.f32 0.0, %v2544
    %2546 = vdwg.mxu0
    %v2548 = vsel %vm431, %v2390, 0
    %v2551 = vsel %vm431, %v2434, 0
    %2553 = vmatpush.xpose.msra.mxu0 0.0
    %2554 = vmatpush.xpose.msra.mxu0 0.0
    %2555 = vmatpush.xpose.msra.mxu0 0.0
    %2556 = vmatpush.xpose.msra.mxu0 0.0
    %2557 = vmatpush.xpose.msra.mxu0 0.0
    %2558 = vmatpush.xpose.msra.mxu0 0.0
    %2559 = vmatpush.xpose.msra.mxu0 0.0
    %2560 = vmatpush.xpose.msra.mxu0 0.0
    %2561 = vmatpush.xpose.msra.mxu0 0.0
    %2562 = vmatpush.xpose.msra.mxu0 0.0
    %2563 = vmatpush.xpose.msra.mxu0 0.0
    %2564 = vmatpush.xpose.msra.mxu0 0.0
    %2565 = vmatpush.xpose.msra.mxu0 0.0
    %2566 = vmatpush.xpose.msra.mxu0 0.0
    %2567 = vmatpush.xpose.msra.mxu0 0.0
    %2568 = vmatpush.xpose.msra.mxu0 %v2551
    %2569 = vmatmul.f32.gmra.mxu0 %v2548
    %v2570 = vpop.f32.mrf.mxu0
    %v2571 = vadd.f32 0.0, %v2570
    %2572 = vdwg.mxu0
    %v2574 = vsel %vm431, %v2393, 0
    %v2577 = vsel %vm431, %v2437, 0
    %2579 = vmatpush.xpose.msra.mxu0 0.0
    %2580 = vmatpush.xpose.msra.mxu0 0.0
    %2581 = vmatpush.xpose.msra.mxu0 0.0
    %2582 = vmatpush.xpose.msra.mxu0 0.0
    %2583 = vmatpush.xpose.msra.mxu0 0.0
    %2584 = vmatpush.xpose.msra.mxu0 0.0
    %2585 = vmatpush.xpose.msra.mxu0 0.0
    %2586 = vmatpush.xpose.msra.mxu0 0.0
    %2587 = vmatpush.xpose.msra.mxu0 0.0
    %2588 = vmatpush.xpose.msra.mxu0 0.0
    %2589 = vmatpush.xpose.msra.mxu0 0.0
    %2590 = vmatpush.xpose.msra.mxu0 0.0
    %2591 = vmatpush.xpose.msra.mxu0 0.0
    %2592 = vmatpush.xpose.msra.mxu0 0.0
    %2593 = vmatpush.xpose.msra.mxu0 0.0
    %2594 = vmatpush.xpose.msra.mxu0 %v2577
    %2595 = vmatmul.f32.gmra.mxu0 %v2574
    %v2596 = vpop.f32.mrf.mxu0
    %v2597 = vadd.f32 0.0, %v2596
    %2598 = vdwg.mxu0
    %v2600 = vsel %vm431, %v2396, 0
    %v2603 = vsel %vm431, %v2440, 0
    %2605 = vmatpush.xpose.msra.mxu0 0.0
    %2606 = vmatpush.xpose.msra.mxu0 0.0
    %2607 = vmatpush.xpose.msra.mxu0 0.0
    %2608 = vmatpush.xpose.msra.mxu0 0.0
    %2609 = vmatpush.xpose.msra.mxu0 0.0
    %2610 = vmatpush.xpose.msra.mxu0 0.0
    %2611 = vmatpush.xpose.msra.mxu0 0.0
    %2612 = vmatpush.xpose.msra.mxu0 0.0
    %2613 = vmatpush.xpose.msra.mxu0 0.0
    %2614 = vmatpush.xpose.msra.mxu0 0.0
    %2615 = vmatpush.xpose.msra.mxu0 0.0
    %2616 = vmatpush.xpose.msra.mxu0 0.0
    %2617 = vmatpush.xpose.msra.mxu0 0.0
    %2618 = vmatpush.xpose.msra.mxu0 0.0
    %2619 = vmatpush.xpose.msra.mxu0 0.0
    %2620 = vmatpush.xpose.msra.mxu0 %v2603
    %2621 = vmatmul.f32.gmra.mxu0 %v2600
    %v2622 = vpop.f32.mrf.mxu0
    %v2623 = vadd.f32 0.0, %v2622
    %2624 = vdwg.mxu0
    %v2626 = vsel %vm431, %v2399, 0
    %v2629 = vsel %vm431, %v2443, 0
    %2631 = vmatpush.xpose.msra.mxu0 0.0
    %2632 = vmatpush.xpose.msra.mxu0 0.0
    %2633 = vmatpush.xpose.msra.mxu0 0.0
    %2634 = vmatpush.xpose.msra.mxu0 0.0
    %2635 = vmatpush.xpose.msra.mxu0 0.0
    %2636 = vmatpush.xpose.msra.mxu0 0.0
    %2637 = vmatpush.xpose.msra.mxu0 0.0
    %2638 = vmatpush.xpose.msra.mxu0 0.0
    %2639 = vmatpush.xpose.msra.mxu0 0.0
    %2640 = vmatpush.xpose.msra.mxu0 0.0
    %2641 = vmatpush.xpose.msra.mxu0 0.0
    %2642 = vmatpush.xpose.msra.mxu0 0.0
    %2643 = vmatpush.xpose.msra.mxu0 0.0
    %2644 = vmatpush.xpose.msra.mxu0 0.0
    %2645 = vmatpush.xpose.msra.mxu0 0.0
    %2646 = vmatpush.xpose.msra.mxu0 %v2629
    %2647 = vmatmul.f32.gmra.mxu0 %v2626
    %v2648 = vpop.f32.mrf.mxu0
    %v2649 = vadd.f32 0.0, %v2648
    %2650 = vdwg.mxu0
    %v2652 = vsel %vm431, %v2402, 0
    %v2655 = vsel %vm431, %v2446, 0
    %2657 = vmatpush.xpose.msra.mxu0 0.0
    %2658 = vmatpush.xpose.msra.mxu0 0.0
    %2659 = vmatpush.xpose.msra.mxu0 0.0
    %2660 = vmatpush.xpose.msra.mxu0 0.0
    %2661 = vmatpush.xpose.msra.mxu0 0.0
    %2662 = vmatpush.xpose.msra.mxu0 0.0
    %2663 = vmatpush.xpose.msra.mxu0 0.0
    %2664 = vmatpush.xpose.msra.mxu0 0.0
    %2665 = vmatpush.xpose.msra.mxu0 0.0
    %2666 = vmatpush.xpose.msra.mxu0 0.0
    %2667 = vmatpush.xpose.msra.mxu0 0.0
    %2668 = vmatpush.xpose.msra.mxu0 0.0
    %2669 = vmatpush.xpose.msra.mxu0 0.0
    %2670 = vmatpush.xpose.msra.mxu0 0.0
    %2671 = vmatpush.xpose.msra.mxu0 0.0
    %2672 = vmatpush.xpose.msra.mxu0 %v2655
    %2673 = vmatmul.f32.gmra.mxu0 %v2652
    %v2674 = vpop.f32.mrf.mxu0
    %v2675 = vadd.f32 0.0, %v2674
    %2676 = vdwg.mxu0
    %v2678 = vsel %vm431, %v2405, 0
    %v2681 = vsel %vm431, %v2449, 0
    %2683 = vmatpush.xpose.msra.mxu0 0.0
    %2684 = vmatpush.xpose.msra.mxu0 0.0
    %2685 = vmatpush.xpose.msra.mxu0 0.0
    %2686 = vmatpush.xpose.msra.mxu0 0.0
    %2687 = vmatpush.xpose.msra.mxu0 0.0
    %2688 = vmatpush.xpose.msra.mxu0 0.0
    %2689 = vmatpush.xpose.msra.mxu0 0.0
    %2690 = vmatpush.xpose.msra.mxu0 0.0
    %2691 = vmatpush.xpose.msra.mxu0 0.0
    %2692 = vmatpush.xpose.msra.mxu0 0.0
    %2693 = vmatpush.xpose.msra.mxu0 0.0
    %2694 = vmatpush.xpose.msra.mxu0 0.0
    %2695 = vmatpush.xpose.msra.mxu0 0.0
    %2696 = vmatpush.xpose.msra.mxu0 0.0
    %2697 = vmatpush.xpose.msra.mxu0 0.0
    %2698 = vmatpush.xpose.msra.mxu0 %v2681
    %2699 = vmatmul.f32.gmra.mxu0 %v2678
    %v2700 = vpop.f32.mrf.mxu0
    %v2701 = vadd.f32 0.0, %v2700
    %2702 = vdwg.mxu0
    %v2703 = vmul.f32 %v2519, 0.35355338
    %v2704 = vmul.f32 %v2545, 0.35355338
    %v2705 = vmul.f32 %v2571, 0.35355338
    %v2706 = vmul.f32 %v2597, 0.35355338
    %v2707 = vmul.f32 %v2623, 0.35355338
    %v2708 = vmul.f32 %v2649, 0.35355338
    %v2709 = vmul.f32 %v2675, 0.35355338
    %v2710 = vmul.f32 %v2701, 0.35355338
    %v2711 = vsel %vm431, %v2703, -inf
    %2712 = vmax.xlane.f32.xlu0 %v2711
    %v2713 = vpop.xlane.xlu0 %2712
    %v2714 = vsel %vm431, %v2704, -inf
    %2715 = vmax.xlane.f32.xlu0 %v2714
    %v2716 = vpop.xlane.xlu0 %2715
    %v2717 = vsel %vm431, %v2705, -inf
    %2718 = vmax.xlane.f32.xlu0 %v2717
    %v2719 = vpop.xlane.xlu0 %2718
    %v2720 = vsel %vm431, %v2706, -inf
    %2721 = vmax.xlane.f32.xlu0 %v2720
    %v2722 = vpop.xlane.xlu0 %2721
    %v2723 = vsel %vm431, %v2707, -inf
    %2724 = vmax.xlane.f32.xlu0 %v2723
    %v2725 = vpop.xlane.xlu0 %2724
    %v2726 = vsel %vm431, %v2708, -inf
    %2727 = vmax.xlane.f32.xlu0 %v2726
    %v2728 = vpop.xlane.xlu0 %2727
    %v2729 = vsel %vm431, %v2709, -inf
    %2730 = vmax.xlane.f32.xlu0 %v2729
    %v2731 = vpop.xlane.xlu0 %2730
    %v2732 = vsel %vm431, %v2710, -inf
    %2733 = vmax.xlane.f32.xlu0 %v2732
    %v2734 = vpop.xlane.xlu0 %2733
    %v2735 = vsub.f32 %v2703, %v2713
    %v2736 = vsub.f32 %v2704, %v2716
    %v2737 = vsub.f32 %v2705, %v2719
    %v2738 = vsub.f32 %v2706, %v2722
    %v2739 = vsub.f32 %v2707, %v2725
    %v2740 = vsub.f32 %v2708, %v2728
    %v2741 = vsub.f32 %v2709, %v2731
    %v2742 = vsub.f32 %v2710, %v2734
    %v2743 = vmul.f32 %v2735, 1.442695
    %v2744 = vpow.pop %v2743
    %v2745 = vmul.f32 %v2736, 1.442695
    %v2746 = vpow.pop %v2745
    %v2747 = vmul.f32 %v2737, 1.442695
    %v2748 = vpow.pop %v2747
    %v2749 = vmul.f32 %v2738, 1.442695
    %v2750 = vpow.pop %v2749
    %v2751 = vmul.f32 %v2739, 1.442695
    %v2752 = vpow.pop %v2751
    %v2753 = vmul.f32 %v2740, 1.442695
    %v2754 = vpow.pop %v2753
    %v2755 = vmul.f32 %v2741, 1.442695
    %v2756 = vpow.pop %v2755
    %v2757 = vmul.f32 %v2742, 1.442695
    %v2758 = vpow.pop %v2757
    %v2759 = vsel %vm431, %v2744, 0.0
    %2760 = vadd.xlane.f32.xlu0 %v2759
    %v2761 = vpop.xlane.xlu0 %2760
    %v2762 = vsel %vm431, %v2746, 0.0
    %2763 = vadd.xlane.f32.xlu0 %v2762
    %v2764 = vpop.xlane.xlu0 %2763
    %v2765 = vsel %vm431, %v2748, 0.0
    %2766 = vadd.xlane.f32.xlu0 %v2765
    %v2767 = vpop.xlane.xlu0 %2766
    %v2768 = vsel %vm431, %v2750, 0.0
    %2769 = vadd.xlane.f32.xlu0 %v2768
    %v2770 = vpop.xlane.xlu0 %2769
    %v2771 = vsel %vm431, %v2752, 0.0
    %2772 = vadd.xlane.f32.xlu0 %v2771
    %v2773 = vpop.xlane.xlu0 %2772
    %v2774 = vsel %vm431, %v2754, 0.0
    %2775 = vadd.xlane.f32.xlu0 %v2774
    %v2776 = vpop.xlane.xlu0 %2775
    %v2777 = vsel %vm431, %v2756, 0.0
    %2778 = vadd.xlane.f32.xlu0 %v2777
    %v2779 = vpop.xlane.xlu0 %2778
    %v2780 = vsel %vm431, %v2758, 0.0
    %2781 = vadd.xlane.f32.xlu0 %v2780
    %v2782 = vpop.xlane.xlu0 %2781
    %v2783 = vrcp.pop %v2761
    %v2784 = vrcp.pop %v2764
    %v2785 = vrcp.pop %v2767
    %v2786 = vrcp.pop %v2770
    %v2787 = vrcp.pop %v2773
    %v2788 = vrcp.pop %v2776
    %v2789 = vrcp.pop %v2779
    %v2790 = vrcp.pop %v2782
    %v2791 = vmul.f32 %v2744, %v2783
    %v2792 = vmul.f32 %v2746, %v2784
    %v2793 = vmul.f32 %v2748, %v2785
    %v2794 = vmul.f32 %v2750, %v2786
    %v2795 = vmul.f32 %v2752, %v2787
    %v2796 = vmul.f32 %v2754, %v2788
    %v2797 = vmul.f32 %v2756, %v2789
    %v2798 = vmul.f32 %v2758, %v2790
    %v2800 = vsel %vm431, %v2791, 0
    %2802 = vmatpush.msra.mxu0 0.0
    %2803 = vmatpush.msra.mxu0 0.0
    %2804 = vmatpush.msra.mxu0 0.0
    %2805 = vmatpush.msra.mxu0 0.0
    %2806 = vmatpush.msra.mxu0 0.0
    %2807 = vmatpush.msra.mxu0 0.0
    %2808 = vmatpush.msra.mxu0 0.0
    %2809 = vmatpush.msra.mxu0 0.0
    %2810 = vmatpush.msra.mxu0 0.0
    %2811 = vmatpush.msra.mxu0 0.0
    %2812 = vmatpush.msra.mxu0 0.0
    %2813 = vmatpush.msra.mxu0 0.0
    %2814 = vmatpush.msra.mxu0 0.0
    %2815 = vmatpush.msra.mxu0 0.0
    %2816 = vmatpush.msra.mxu0 0.0
    %2817 = vmatpush.msra.mxu0 %v2472
    %2818 = vmatmul.f32.gmra.mxu0 %v2800
    %v2819 = vpop.f32.mrf.mxu0
    %v2820 = vadd.f32 0.0, %v2819
    %2821 = vdwg.mxu0
    %v2823 = vsel %vm431, %v2792, 0
    %2825 = vmatpush.msra.mxu0 0.0
    %2826 = vmatpush.msra.mxu0 0.0
    %2827 = vmatpush.msra.mxu0 0.0
    %2828 = vmatpush.msra.mxu0 0.0
    %2829 = vmatpush.msra.mxu0 0.0
    %2830 = vmatpush.msra.mxu0 0.0
    %2831 = vmatpush.msra.mxu0 0.0
    %2832 = vmatpush.msra.mxu0 0.0
    %2833 = vmatpush.msra.mxu0 0.0
    %2834 = vmatpush.msra.mxu0 0.0
    %2835 = vmatpush.msra.mxu0 0.0
    %2836 = vmatpush.msra.mxu0 0.0
    %2837 = vmatpush.msra.mxu0 0.0
    %2838 = vmatpush.msra.mxu0 0.0
    %2839 = vmatpush.msra.mxu0 0.0
    %2840 = vmatpush.msra.mxu0 %v2475
    %2841 = vmatmul.f32.gmra.mxu0 %v2823
    %v2842 = vpop.f32.mrf.mxu0
    %v2843 = vadd.f32 0.0, %v2842
    %2844 = vdwg.mxu0
    %v2846 = vsel %vm431, %v2793, 0
    %2848 = vmatpush.msra.mxu0 0.0
    %2849 = vmatpush.msra.mxu0 0.0
    %2850 = vmatpush.msra.mxu0 0.0
    %2851 = vmatpush.msra.mxu0 0.0
    %2852 = vmatpush.msra.mxu0 0.0
    %2853 = vmatpush.msra.mxu0 0.0
    %2854 = vmatpush.msra.mxu0 0.0
    %2855 = vmatpush.msra.mxu0 0.0
    %2856 = vmatpush.msra.mxu0 0.0
    %2857 = vmatpush.msra.mxu0 0.0
    %2858 = vmatpush.msra.mxu0 0.0
    %2859 = vmatpush.msra.mxu0 0.0
    %2860 = vmatpush.msra.mxu0 0.0
    %2861 = vmatpush.msra.mxu0 0.0
    %2862 = vmatpush.msra.mxu0 0.0
    %2863 = vmatpush.msra.mxu0 %v2478
    %2864 = vmatmul.f32.gmra.mxu0 %v2846
    %v2865 = vpop.f32.mrf.mxu0
    %v2866 = vadd.f32 0.0, %v2865
    %2867 = vdwg.mxu0
    %v2869 = vsel %vm431, %v2794, 0
    %2871 = vmatpush.msra.mxu0 0.0
    %2872 = vmatpush.msra.mxu0 0.0
    %2873 = vmatpush.msra.mxu0 0.0
    %2874 = vmatpush.msra.mxu0 0.0
    %2875 = vmatpush.msra.mxu0 0.0
    %2876 = vmatpush.msra.mxu0 0.0
    %2877 = vmatpush.msra.mxu0 0.0
    %2878 = vmatpush.msra.mxu0 0.0
    %2879 = vmatpush.msra.mxu0 0.0
    %2880 = vmatpush.msra.mxu0 0.0
    %2881 = vmatpush.msra.mxu0 0.0
    %2882 = vmatpush.msra.mxu0 0.0
    %2883 = vmatpush.msra.mxu0 0.0
    %2884 = vmatpush.msra.mxu0 0.0
    %2885 = vmatpush.msra.mxu0 0.0
    %2886 = vmatpush.msra.mxu0 %v2481
    %2887 = vmatmul.f32.gmra.mxu0 %v2869
    %v2888 = vpop.f32.mrf.mxu0
    %v2889 = vadd.f32 0.0, %v2888
    %2890 = vdwg.mxu0
    %v2892 = vsel %vm431, %v2795, 0
    %2894 = vmatpush.msra.mxu0 0.0
    %2895 = vmatpush.msra.mxu0 0.0
    %2896 = vmatpush.msra.mxu0 0.0
    %2897 = vmatpush.msra.mxu0 0.0
    %2898 = vmatpush.msra.mxu0 0.0
    %2899 = vmatpush.msra.mxu0 0.0
    %2900 = vmatpush.msra.mxu0 0.0
    %2901 = vmatpush.msra.mxu0 0.0
    %2902 = vmatpush.msra.mxu0 0.0
    %2903 = vmatpush.msra.mxu0 0.0
    %2904 = vmatpush.msra.mxu0 0.0
    %2905 = vmatpush.msra.mxu0 0.0
    %2906 = vmatpush.msra.mxu0 0.0
    %2907 = vmatpush.msra.mxu0 0.0
    %2908 = vmatpush.msra.mxu0 0.0
    %2909 = vmatpush.msra.mxu0 %v2484
    %2910 = vmatmul.f32.gmra.mxu0 %v2892
    %v2911 = vpop.f32.mrf.mxu0
    %v2912 = vadd.f32 0.0, %v2911
    %2913 = vdwg.mxu0
    %v2915 = vsel %vm431, %v2796, 0
    %2917 = vmatpush.msra.mxu0 0.0
    %2918 = vmatpush.msra.mxu0 0.0
    %2919 = vmatpush.msra.mxu0 0.0
    %2920 = vmatpush.msra.mxu0 0.0
    %2921 = vmatpush.msra.mxu0 0.0
    %2922 = vmatpush.msra.mxu0 0.0
    %2923 = vmatpush.msra.mxu0 0.0
    %2924 = vmatpush.msra.mxu0 0.0
    %2925 = vmatpush.msra.mxu0 0.0
    %2926 = vmatpush.msra.mxu0 0.0
    %2927 = vmatpush.msra.mxu0 0.0
    %2928 = vmatpush.msra.mxu0 0.0
    %2929 = vmatpush.msra.mxu0 0.0
    %2930 = vmatpush.msra.mxu0 0.0
    %2931 = vmatpush.msra.mxu0 0.0
    %2932 = vmatpush.msra.mxu0 %v2487
    %2933 = vmatmul.f32.gmra.mxu0 %v2915
    %v2934 = vpop.f32.mrf.mxu0
    %v2935 = vadd.f32 0.0, %v2934
    %2936 = vdwg.mxu0
    %v2938 = vsel %vm431, %v2797, 0
    %2940 = vmatpush.msra.mxu0 0.0
    %2941 = vmatpush.msra.mxu0 0.0
    %2942 = vmatpush.msra.mxu0 0.0
    %2943 = vmatpush.msra.mxu0 0.0
    %2944 = vmatpush.msra.mxu0 0.0
    %2945 = vmatpush.msra.mxu0 0.0
    %2946 = vmatpush.msra.mxu0 0.0
    %2947 = vmatpush.msra.mxu0 0.0
    %2948 = vmatpush.msra.mxu0 0.0
    %2949 = vmatpush.msra.mxu0 0.0
    %2950 = vmatpush.msra.mxu0 0.0
    %2951 = vmatpush.msra.mxu0 0.0
    %2952 = vmatpush.msra.mxu0 0.0
    %2953 = vmatpush.msra.mxu0 0.0
    %2954 = vmatpush.msra.mxu0 0.0
    %2955 = vmatpush.msra.mxu0 %v2490
    %2956 = vmatmul.f32.gmra.mxu0 %v2938
    %v2957 = vpop.f32.mrf.mxu0
    %v2958 = vadd.f32 0.0, %v2957
    %2959 = vdwg.mxu0
    %v2961 = vsel %vm431, %v2798, 0
    %2963 = vmatpush.msra.mxu0 0.0
    %2964 = vmatpush.msra.mxu0 0.0
    %2965 = vmatpush.msra.mxu0 0.0
    %2966 = vmatpush.msra.mxu0 0.0
    %2967 = vmatpush.msra.mxu0 0.0
    %2968 = vmatpush.msra.mxu0 0.0
    %2969 = vmatpush.msra.mxu0 0.0
    %2970 = vmatpush.msra.mxu0 0.0
    %2971 = vmatpush.msra.mxu0 0.0
    %2972 = vmatpush.msra.mxu0 0.0
    %2973 = vmatpush.msra.mxu0 0.0
    %2974 = vmatpush.msra.mxu0 0.0
    %2975 = vmatpush.msra.mxu0 0.0
    %2976 = vmatpush.msra.mxu0 0.0
    %2977 = vmatpush.msra.mxu0 0.0
    %2978 = vmatpush.msra.mxu0 %v2493
    %2979 = vmatmul.f32.gmra.mxu0 %v2961
    %v2980 = vpop.f32.mrf.mxu0
    %v2981 = vadd.f32 0.0, %v2980
    %2982 = vdwg.mxu0
    %v2984 = vsel %vm431, %v2820, 0
    %v2987 = vsel %vm431, %v2843, 0
    %v2990 = vsel %vm431, %v2866, 0
    %v2993 = vsel %vm431, %v2889, 0
    %v2996 = vsel %vm431, %v2912, 0
    %v2999 = vsel %vm431, %v2935, 0
    %v3002 = vsel %vm431, %v2958, 0
    %v3005 = vsel %vm431, %v2981, 0
    %3007 = vmatpush.msra.mxu0 0.0
    %3008 = vmatpush.msra.mxu0 0.0
    %3009 = vmatpush.msra.mxu0 0.0
    %3010 = vmatpush.msra.mxu0 0.0
    %3011 = vmatpush.msra.mxu0 0.0
    %3012 = vmatpush.msra.mxu0 0.0
    %3013 = vmatpush.msra.mxu0 0.0
    %3014 = vmatpush.msra.mxu0 0.0
    %3015 = vmatpush.msra.mxu0 0.0
    %3016 = vmatpush.msra.mxu0 0.0
    %3017 = vmatpush.msra.mxu0 0.0
    %3018 = vmatpush.msra.mxu0 0.0
    %3019 = vmatpush.msra.mxu0 0.0
    %3020 = vmatpush.msra.mxu0 0.0
    %3021 = vmatpush.msra.mxu0 0.0
    %3022 = vmatpush.msra.mxu0 %v273
    %3023 = vmatmul.f32.gmra.mxu0 %v2984
    %v3024 = vpop.f32.mrf.mxu0
    %v3025 = vadd.f32 0.0, %v3024
    %3026 = vmatmul.f32.gmra.mxu0 %v2987
    %v3027 = vpop.f32.mrf.mxu0
    %v3028 = vadd.f32 0.0, %v3027
    %3029 = vmatmul.f32.gmra.mxu0 %v2990
    %v3030 = vpop.f32.mrf.mxu0
    %v3031 = vadd.f32 0.0, %v3030
    %3032 = vmatmul.f32.gmra.mxu0 %v2993
    %v3033 = vpop.f32.mrf.mxu0
    %v3034 = vadd.f32 0.0, %v3033
    %3035 = vmatmul.f32.gmra.mxu0 %v2996
    %v3036 = vpop.f32.mrf.mxu0
    %v3037 = vadd.f32 0.0, %v3036
    %3038 = vmatmul.f32.gmra.mxu0 %v2999
    %v3039 = vpop.f32.mrf.mxu0
    %v3040 = vadd.f32 0.0, %v3039
    %3041 = vmatmul.f32.gmra.mxu0 %v3002
    %v3042 = vpop.f32.mrf.mxu0
    %v3043 = vadd.f32 0.0, %v3042
    %3044 = vmatmul.f32.gmra.mxu0 %v3005
    %v3045 = vpop.f32.mrf.mxu0
    %v3046 = vadd.f32 0.0, %v3045
    %3047 = vdwg.mxu0
    %v3048 = vadd.f32 %v2355, %v3025
    %v3049 = vadd.f32 %v2356, %v3028
    %v3050 = vadd.f32 %v2357, %v3031
    %v3051 = vadd.f32 %v2358, %v3034
    %v3052 = vadd.f32 %v2359, %v3037
    %v3053 = vadd.f32 %v2360, %v3040
    %v3054 = vadd.f32 %v2361, %v3043
    %v3055 = vadd.f32 %v2362, %v3046
    %v3056 = vld [vmem:[%s8] sm:$0x1]
    %v3058 = vperm.slane %v3056, 0
    %v3060 = vadd.f32 %v3048, %v3058
    %v3061 = vadd.f32 %v3049, %v3058
    %v3062 = vadd.f32 %v3050, %v3058
    %v3063 = vadd.f32 %v3051, %v3058
    %v3064 = vadd.f32 %v3052, %v3058
    %v3065 = vadd.f32 %v3053, %v3058
    %v3066 = vadd.f32 %v3054, %v3058
    %v3067 = vadd.f32 %v3055, %v3058
    %v3068 = vsel %vm277, %v3060, 0.0
    %v3069 = vrot.slane %v3068, 4
    %v3070 = vadd.f32 %v3068, %v3069
    %v3071 = vrot.slane %v3070, 2
    %v3072 = vadd.f32 %v3070, %v3071
    %v3073 = vrot.slane %v3072, 1
    %v3074 = vadd.f32 %v3072, %v3073
    %v3075 = vsel %vm277, %v3061, 0.0
    %v3076 = vrot.slane %v3075, 4
    %v3077 = vadd.f32 %v3075, %v3076
    %v3078 = vrot.slane %v3077, 2
    %v3079 = vadd.f32 %v3077, %v3078
    %v3080 = vrot.slane %v3079, 1
    %v3081 = vadd.f32 %v3079, %v3080
    %v3082 = vsel %vm277, %v3062, 0.0
    %v3083 = vrot.slane %v3082, 4
    %v3084 = vadd.f32 %v3082, %v3083
    %v3085 = vrot.slane %v3084, 2
    %v3086 = vadd.f32 %v3084, %v3085
    %v3087 = vrot.slane %v3086, 1
    %v3088 = vadd.f32 %v3086, %v3087
    %v3089 = vsel %vm277, %v3063, 0.0
    %v3090 = vrot.slane %v3089, 4
    %v3091 = vadd.f32 %v3089, %v3090
    %v3092 = vrot.slane %v3091, 2
    %v3093 = vadd.f32 %v3091, %v3092
    %v3094 = vrot.slane %v3093, 1
    %v3095 = vadd.f32 %v3093, %v3094
    %v3096 = vsel %vm277, %v3064, 0.0
    %v3097 = vrot.slane %v3096, 4
    %v3098 = vadd.f32 %v3096, %v3097
    %v3099 = vrot.slane %v3098, 2
    %v3100 = vadd.f32 %v3098, %v3099
    %v3101 = vrot.slane %v3100, 1
    %v3102 = vadd.f32 %v3100, %v3101
    %v3103 = vsel %vm277, %v3065, 0.0
    %v3104 = vrot.slane %v3103, 4
    %v3105 = vadd.f32 %v3103, %v3104
    %v3106 = vrot.slane %v3105, 2
    %v3107 = vadd.f32 %v3105, %v3106
    %v3108 = vrot.slane %v3107, 1
    %v3109 = vadd.f32 %v3107, %v3108
    %v3110 = vsel %vm277, %v3066, 0.0
    %v3111 = vrot.slane %v3110, 4
    %v3112 = vadd.f32 %v3110, %v3111
    %v3113 = vrot.slane %v3112, 2
    %v3114 = vadd.f32 %v3112, %v3113
    %v3115 = vrot.slane %v3114, 1
    %v3116 = vadd.f32 %v3114, %v3115
    %v3117 = vsel %vm277, %v3067, 0.0
    %v3118 = vrot.slane %v3117, 4
    %v3119 = vadd.f32 %v3117, %v3118
    %v3120 = vrot.slane %v3119, 2
    %v3121 = vadd.f32 %v3119, %v3120
    %v3122 = vrot.slane %v3121, 1
    %v3123 = vadd.f32 %v3121, %v3122
    %v3124 = vmul.f32 %v3074, 0.125
    %v3125 = vmul.f32 %v3081, 0.125
    %v3126 = vmul.f32 %v3088, 0.125
    %v3127 = vmul.f32 %v3095, 0.125
    %v3128 = vmul.f32 %v3102, 0.125
    %v3129 = vmul.f32 %v3109, 0.125
    %v3130 = vmul.f32 %v3116, 0.125
    %v3131 = vmul.f32 %v3123, 0.125
    %v3132 = vld [vmem:[%s9] sm:$0xff]
    %v3133 = vld [vmem:[%s9 + $0x8] sm:$0xff]
    %v3134 = vld [vmem:[%s9 + $0x10] sm:$0xff]
    %v3135 = vld [vmem:[%s9 + $0x18] sm:$0xff]
    %v3136 = vld [vmem:[%s10] sm:$0x1]
    %v3138 = vperm.slane %v3136, 0
    %vm3148 = vcmask 1041409
    %v3149 = vsel %vm3148, %v3125, %v3124
    %vm3150 = vcmask 1042434
    %v3151 = vsel %vm3150, %v3126, %v3149
    %vm3152 = vcmask 1043459
    %v3153 = vsel %vm3152, %v3127, %v3151
    %vm3154 = vcmask 1044484
    %v3155 = vsel %vm3154, %v3128, %v3153
    %vm3156 = vcmask 1045509
    %v3157 = vsel %vm3156, %v3129, %v3155
    %vm3158 = vcmask 1046534
    %v3159 = vsel %vm3158, %v3130, %v3157
    %vm3160 = vcmask 1047559
    %v3161 = vsel %vm3160, %v3131, %v3159
    %v3162 = vsel %vm277, %v3161, 0
    %3164 = vmatpush.msra.mxu0 0.0
    %3165 = vmatpush.msra.mxu0 0.0
    %3166 = vmatpush.msra.mxu0 0.0
    %3167 = vmatpush.msra.mxu0 0.0
    %3168 = vmatpush.msra.mxu0 0.0
    %3169 = vmatpush.msra.mxu0 0.0
    %3170 = vmatpush.msra.mxu0 0.0
    %3171 = vmatpush.msra.mxu0 0.0
    %3172 = vmatpush.msra.mxu0 0.0
    %3173 = vmatpush.msra.mxu0 0.0
    %3174 = vmatpush.msra.mxu0 0.0
    %3175 = vmatpush.msra.mxu0 0.0
    %3176 = vmatpush.msra.mxu0 %v3135
    %3177 = vmatpush.msra.mxu0 %v3134
    %3178 = vmatpush.msra.mxu0 %v3133
    %3179 = vmatpush.msra.mxu0 %v3132
    %3180 = vmatmul.f32.gmra.mxu0 %v3162
    %v3181 = vpop.f32.mrf.mxu0
    %v3182 = vadd.f32 %v3138, %v3181
    %3183 = vdwg.mxu0
    %3184 = vst.msk [vmem:[#allocation2] sm:$0xff] %vm277, %v3182
    // Predicated region
    $region46: #{tpu_custom_call.1} parent=1 // pred_check
      _
    $region47: #{tpu_custom_call.1} parent=1 // pred_check_branch
      %3186 = sbr.rel (0) target = $region49
    $region48: #{tpu_custom_call.1} parent=1 // pred_region
      %3188 = vsyncadd [#allocation3], 0
      %s3190 = sshll.u32 [#allocation2], 4
      %s3191 = int_to_ptr.vmem [resolvable:$true] %s3190
      %s3192 = sshll.u32 %s11, 4
      %s3193 = int_to_ptr.hbm [resolvable:$true] %s3192
      %3195 = dma.vmem_to_hbm [thread:$0]  %s3191, 128, %s3193, [#allocation3]
    $region49: #{tpu_custom_call.1} parent=1 // pred_fallthru
      _
    // Predicated region
    $region50: #{tpu_custom_call.1} parent=1 // pred_check
      _
    $region51: #{tpu_custom_call.1} parent=1 // pred_check_branch
      %3197 = sbr.rel (0) target = $region53
    $region52: #{tpu_custom_call.1} parent=1 // pred_region
      %3199 = dma.done [#allocation3], 128
    $region53: #{tpu_custom_call.1} parent=1 // pred_fallthru
      _
    %3200 = vsyncpa [#allocation3], 1

</llo_original>
